<compile_context>
chip_gen: v7x
topology: tpu7x:2x2x1
jax: 0.10.0
libtpu: 0.0.40
codegen_flags: <defaults>
</compile_context>

<pallas_src>
import jax
import jax.numpy as jnp
from jax import lax
from jax.experimental import pallas as pl
from jax.experimental.pallas import tpu as pltpu

_LN2 = 0.6931471805599453


def _shifted_softplus(x):
    # schnetpack.shifted_softplus: softplus(x) - ln(2)
    return jax.nn.softplus(x) - _LN2


def _round_up(n, m):
    return ((n + m - 1) // m) * m


def _pad2(a, rows, cols, dtype=jnp.float32):
    a = jnp.asarray(a, dtype)
    return jnp.pad(a, ((0, rows - a.shape[0]), (0, cols - a.shape[1])))


def _cfconv_kernel(h_ref, f_ref, idx_i_ref, idx_j_ref, rcut_ref,
                   w_f1_ref, b_f1_ref, w_f2_ref, b_f2_ref,
                   out_ref):
    """One edge tile of the continuous-filter convolution.

    out_ref is the per-core partial aggregate [1, A, F] (f32); its block index
    is constant across the edge axis, so it stays VMEM-resident and doubles as
    the scatter accumulator.
    """
    e = pl.program_id(1)
    A = h_ref.shape[0]           # padded atom count
    TE = f_ref.shape[0]          # edge tile size

    @pl.when(e == 0)
    def _init():
        out_ref[...] = jnp.zeros_like(out_ref)

    # ---- filter network: Dense(R->F, shifted_softplus); Dense(F->F) ---------
    w1 = jnp.dot(f_ref[...].astype(jnp.bfloat16), w_f1_ref[...],
                 preferred_element_type=jnp.float32) + b_f1_ref[...]
    w1 = _shifted_softplus(w1)
    wij = jnp.dot(w1.astype(jnp.bfloat16), w_f2_ref[...],
                  preferred_element_type=jnp.float32) + b_f2_ref[...]   # [TE, F]
    # Cutoff factor applied in f32 (exact); padded edges carry rcut == 0 so
    # they contribute exactly zero below regardless of their idx_j gather.
    wij = wij * rcut_ref[...]                                           # [TE,F]*[TE,1]

    # ---- one-hot gather / scatter on the MXU --------------------------------
    # One shared sublane iota (atoms on sublanes, edges on lanes); both index
    # streams are lane-dense [1, TE], so the compare only needs a cheap sublane
    # broadcast.  Padded edges use idx = -1 and match no atom row.
    atom_sub = lax.broadcasted_iota(jnp.int32, (A, TE), 0)
    onehot_j = (atom_sub == idx_j_ref[...]).astype(jnp.bfloat16)        # [A, TE]
    onehot_i = (atom_sub == idx_i_ref[...]).astype(jnp.bfloat16)        # [A, TE]

    # gather h[idx_j]: contract over atoms (transposed-LHS matmul on the MXU).
    x_j = lax.dot_general(onehot_j, h_ref[...], (((0,), (0,)), ((), ())),
                          preferred_element_type=jnp.float32)           # [TE, F]
    x_ij = (x_j * wij).astype(jnp.bfloat16)                             # [TE, F]

    # scatter_add over idx_i into the resident f32 accumulator.
    out_ref[0] = out_ref[0] + jnp.dot(onehot_i, x_ij,
                                      preferred_element_type=jnp.float32)


def schnet_interaction(x, f_ij, idx_i, idx_j, rcut_ij, params, *,
                       tile_e=None, core_split=2):
    """SchNet interaction block forward pass (matches the PyTorch module)."""
    n_atoms, n_atom_basis = x.shape
    n_edges, n_rbf = f_ij.shape
    n_filters = params["w_in2f"].shape[1]

    A_pad = _round_up(max(n_atoms, 8), 8)
    F_pad = _round_up(n_filters, 128)
    R_pad = _round_up(n_rbf, 8)          # no 128-lane padding on the RBF stream

    # ---- generation-aware VMEM budget (v5e/v6e: 128 MiB, v7x: 64 MiB) -------
    try:
        vmem_cap = int(getattr(pltpu.get_tpu_info(), "vmem_capacity_bytes",
                               64 << 20))
    except Exception:
        vmem_cap = 64 << 20
    vmem_budget = int(0.8 * vmem_cap)

    def vmem_est(te):
        resident = (A_pad * F_pad * 2                      # h (bf16)
                    + R_pad * F_pad * 2 + F_pad * 4        # w_f1, b_f1
                    + F_pad * F_pad * 2 + F_pad * 4)       # w_f2, b_f2
        out_blk = 2 * A_pad * F_pad * 4                    # out block (<=2 bufs)
        streamed = 2 * (te * max(R_pad, 128) * 4           # f_ij tile
                        + 2 * 8 * te * 4                   # idx_i, idx_j [1,te]
                        + te * 128 * 4)                    # rcut [te,1]
        live = A_pad * te * (4 + 2 + 2) + te * F_pad * (3 * 4 + 2)
        return int(1.25 * (2 * resident + out_blk + streamed + live)) + (2 << 20)

    if tile_e is None:
        max_useful = _round_up(max(-(-n_edges // core_split), 1), 128)
        tile_e = 128
        for cand in (2048, 1024, 512, 256, 128):
            if cand > max(max_useful, 128):
                continue
            if vmem_est(cand) <= vmem_budget:
                tile_e = cand
                break
    vmem_limit = int(min(max(int(0.8 * vmem_cap), vmem_est(tile_e)),
                         vmem_cap - (4 << 20)))

    n_tiles = -(-n_edges // tile_e)
    n_inner = max(-(-n_tiles // core_split), 1)
    E_pad = core_split * n_inner * tile_e

    # ---- in2f outside the kernel (plain XLA GEMM, full MXU rate) ------------
    h = jnp.dot(x.astype(jnp.float32), params["w_in2f"].astype(jnp.float32))
    h_p = _pad2(h, A_pad, F_pad, jnp.bfloat16)

    # Padding is inert: padded edges use idx = -1 (match no atom) and rcut = 0;
    # padded weight rows/cols are zero.
    f_p = _pad2(f_ij, E_pad, R_pad)
    idx_i_p = jnp.full((1, E_pad), -1, jnp.int32).at[0, :n_edges].set(
        idx_i.astype(jnp.int32))
    idx_j_p = jnp.full((1, E_pad), -1, jnp.int32).at[0, :n_edges].set(
        idx_j.astype(jnp.int32))
    rcut_p = jnp.zeros((E_pad, 1), jnp.float32).at[:n_edges, 0].set(
        rcut_ij.astype(jnp.float32))

    bf = jnp.bfloat16   # MXU operands; biases stay f32
    w_f1 = _pad2(params["w_f1"], R_pad, F_pad, bf)
    b_f1 = _pad2(params["b_f1"], 1, F_pad)
    w_f2 = _pad2(params["w_f2"], F_pad, F_pad, bf)
    b_f2 = _pad2(params["b_f2"], 1, F_pad)

    args = (h_p, f_p, idx_i_p, idx_j_p, rcut_p, w_f1, b_f1, w_f2, b_f2)

    def build(single_buffer_residents):
        def resident(r, c):
            if single_buffer_residents:
                return pl.BlockSpec((r, c), lambda ci, ei: (0, 0),
                                    pipeline_mode=pl.Buffered(1))
            return pl.BlockSpec((r, c), lambda ci, ei: (0, 0))

        in_specs = [
            resident(A_pad, F_pad),                                          # h
            pl.BlockSpec((tile_e, R_pad), lambda ci, ei: (ci * n_inner + ei, 0)),
            pl.BlockSpec((1, tile_e), lambda ci, ei: (0, ci * n_inner + ei)),  # idx_i
            pl.BlockSpec((1, tile_e), lambda ci, ei: (0, ci * n_inner + ei)),  # idx_j
            pl.BlockSpec((tile_e, 1), lambda ci, ei: (ci * n_inner + ei, 0)),  # rcut
            resident(R_pad, F_pad), resident(1, F_pad),                      # w_f1, b_f1
            resident(F_pad, F_pad), resident(1, F_pad),                      # w_f2, b_f2
        ]
        out_spec = pl.BlockSpec((1, A_pad, F_pad), lambda ci, ei: (ci, 0, 0))
        return pl.pallas_call(
            _cfconv_kernel,
            out_shape=jax.ShapeDtypeStruct((core_split, A_pad, F_pad),
                                           jnp.float32),
            grid_spec=pltpu.PrefetchScalarGridSpec(
                num_scalar_prefetch=0,
                grid=(core_split, n_inner),
                in_specs=in_specs,
                out_specs=out_spec,
            ),
            compiler_params=pltpu.CompilerParams(
                dimension_semantics=("parallel", "arbitrary"),
                vmem_limit_bytes=vmem_limit,
            ),
        )

    try:
        agg_parts = build(True)(*args)
        agg_parts = jax.block_until_ready(agg_parts)
    except Exception:
        # Fallback if this JAX build rejects single-buffered resident blocks.
        agg_parts = build(False)(*args)

    # ---- combine partial aggregates (exact: pure f32 sums), then f2out ------
    agg = jnp.sum(agg_parts, axis=0)[:n_atoms, :n_filters].astype(jnp.float32)
    o1 = _shifted_softplus(jnp.dot(agg, params["w_o1"]) + params["b_o1"])
    return jnp.dot(o1, params["w_o2"]) + params["b_o2"]


def _reference(x, f_ij, idx_i, idx_j, rcut_ij, p):
    """Pure-JAX f32 reference mirroring the PyTorch forward exactly."""
    h = x @ p["w_in2f"]
    w = _shifted_softplus(f_ij @ p["w_f1"] + p["b_f1"])
    wij = (w @ p["w_f2"] + p["b_f2"]) * rcut_ij[:, None]
    x_j = h[idx_j]
    x_ij = x_j * wij
    agg = jnp.zeros_like(h).at[idx_i].add(x_ij)
    o1 = _shifted_softplus(agg @ p["w_o1"] + p["b_o1"])
    return o1 @ p["w_o2"] + p["b_o2"]


def _make_params(key, n_atom_basis, n_rbf, n_filters):
    ks = jax.random.split(key, 9)
    def w(k, shape, fan_in):
        return (jax.random.normal(k, shape, jnp.float32) /
                jnp.sqrt(fan_in)).astype(jnp.float32)
    return {
        "w_in2f": w(ks[0], (n_atom_basis, n_filters), n_atom_basis),
        "w_f1":   w(ks[1], (n_rbf, n_filters), n_rbf),
        "b_f1":   0.01 * w(ks[2], (1, n_filters), 1.0),
        "w_f2":   w(ks[3], (n_filters, n_filters), n_filters),
        "b_f2":   0.01 * w(ks[4], (1, n_filters), 1.0),
        "w_o1":   w(ks[5], (n_filters, n_atom_basis), n_filters),
        "b_o1":   0.01 * w(ks[6], (1, n_atom_basis), 1.0),
        "w_o2":   w(ks[7], (n_atom_basis, n_atom_basis), n_atom_basis),
        "b_o2":   0.01 * w(ks[8], (1, n_atom_basis), 1.0),
    }


if __name__ == "__main__":
    # Small synthetic molecular graph.
    n_atoms, n_edges = 8, 32
    n_atom_basis, n_rbf, n_filters = 32, 16, 64

    key = jax.random.PRNGKey(0)
    k_x, k_f, k_i, k_j, k_r, k_p = jax.random.split(key, 6)

    x = jax.random.normal(k_x, (n_atoms, n_atom_basis), jnp.float32)
    f_ij = jax.random.normal(k_f, (n_edges, n_rbf), jnp.float32)
    idx_i = jax.random.randint(k_i, (n_edges,), 0, n_atoms, jnp.int32)
    idx_j = jax.random.randint(k_j, (n_edges,), 0, n_atoms, jnp.int32)
    rcut_ij = jax.random.uniform(k_r, (n_edges,), jnp.float32)

    params = _make_params(k_p, n_atom_basis, n_rbf, n_filters)

    out = schnet_interaction(x, f_ij, idx_i, idx_j, rcut_ij, params)
    out = jax.block_until_ready(out)

    ref = _reference(x, f_ij, idx_i, idx_j, rcut_ij, params)
    assert out.shape == (n_atoms, n_atom_basis)
    err = float(jnp.max(jnp.abs(out - ref)))
    scale = float(jnp.max(jnp.abs(ref))) + 1e-6
    # bf16 MXU operands (h, filter net, x_ij) perturb results at the ~1% level;
    # rcut and the f2out MLP are now applied in exact f32.
    assert err <= 3e-2 * scale + 1e-3, (
        f"mismatch vs reference: max abs err {err}, ref scale {scale}")

    print("KERNEL_OK")
</pallas_src>

<mosaic_0001>
module attributes {stable_mosaic.version = 11 : i64} {
  func.func @_cfconv_kernel(%arg0: i32, %arg1: i32, %arg2: memref<8x128xbf16, #tpu.memory_space<vmem>>, %arg3: memref<128x16xf32, #tpu.memory_space<vmem>>, %arg4: memref<1x128xi32, #tpu.memory_space<vmem>>, %arg5: memref<1x128xi32, #tpu.memory_space<vmem>>, %arg6: memref<128x1xf32, #tpu.memory_space<vmem>>, %arg7: memref<16x128xbf16, #tpu.memory_space<vmem>>, %arg8: memref<1x128xf32, #tpu.memory_space<vmem>>, %arg9: memref<128x128xbf16, #tpu.memory_space<vmem>>, %arg10: memref<1x128xf32, #tpu.memory_space<vmem>>, %arg11: memref<1x8x128xf32, #tpu.memory_space<vmem>>) attributes {dimension_semantics = [#tpu.dimension_semantics<parallel>, #tpu.dimension_semantics<arbitrary>], iteration_bounds = array<i64: 2, 1>, scalar_prefetch = 0 : i64, scratch_operands = 0 : i64, tpu.core_type = #tpu.core_type<tc>, window_params = [{pipeline_mode = #tpu.pipeline_mode<synchronous>, transform_indices = @transform_0, window_bounds = array<i64: 8, 128>}, {transform_indices = @transform_1, window_bounds = array<i64: 128, 16>}, {transform_indices = @transform_2, window_bounds = array<i64: 1, 128>}, {transform_indices = @transform_3, window_bounds = array<i64: 1, 128>}, {transform_indices = @transform_4, window_bounds = array<i64: 128, 1>}, {pipeline_mode = #tpu.pipeline_mode<synchronous>, transform_indices = @transform_5, window_bounds = array<i64: 16, 128>}, {pipeline_mode = #tpu.pipeline_mode<synchronous>, transform_indices = @transform_6, window_bounds = array<i64: 1, 128>}, {pipeline_mode = #tpu.pipeline_mode<synchronous>, transform_indices = @transform_7, window_bounds = array<i64: 128, 128>}, {pipeline_mode = #tpu.pipeline_mode<synchronous>, transform_indices = @transform_8, window_bounds = array<i64: 1, 128>}, {transform_indices = @transform_9, window_bounds = array<i64: 1, 8, 128>}]} {
    %c0_i32 = arith.constant 0 : i32
    %0 = arith.cmpi eq, %arg1, %c0_i32 : i32
    %1 = arith.extui %0 : i1 to i32
    %c0_i32_0 = arith.constant 0 : i32
    %2 = arith.cmpi ne, %1, %c0_i32_0 : i32
    scf.if %2 {
      %cst_30 = arith.constant 0.000000e+00 : f32
      %59 = vector.broadcast %cst_30 : f32 to vector<1x8x128xf32>
      %c0_31 = arith.constant 0 : index
      %c0_32 = arith.constant 0 : index
      %c0_33 = arith.constant 0 : index
      %60 = vector.load %arg11[%c0_31, %c0_32, %c0_33] : memref<1x8x128xf32, #tpu.memory_space<vmem>>, vector<1x8x128xf32>
      tpu.vector_store %arg11[%c0_31, %c0_32, %c0_33], %59 {strides = array<i32>} : memref<1x8x128xf32, #tpu.memory_space<vmem>>, vector<1x8x128xf32>,
    } else {
    }
    %c0 = arith.constant 0 : index
    %c0_1 = arith.constant 0 : index
    %3 = vector.load %arg3[%c0, %c0_1] : memref<128x16xf32, #tpu.memory_space<vmem>>, vector<128x16xf32>
    %4 = arith.truncf %3 : vector<128x16xf32> to vector<128x16xbf16>
    %c0_2 = arith.constant 0 : index
    %c0_3 = arith.constant 0 : index
    %5 = vector.load %arg7[%c0_2, %c0_3] : memref<16x128xbf16, #tpu.memory_space<vmem>>, vector<16x128xbf16>
    %cst = arith.constant dense<0.000000e+00> : vector<128x128xf32>
    %6 = tpu.matmul %4, %5, %cst {dimension_numbers = #tpu.dot_dimension_numbers<[1], [0], [0], [1], [0, 0, 1, 1], [], []>} : vector<128x16xbf16>, vector<16x128xbf16>, vector<128x128xf32> -> vector<128x128xf32>
    %c0_4 = arith.constant 0 : index
    %c0_5 = arith.constant 0 : index
    %7 = vector.load %arg8[%c0_4, %c0_5] : memref<1x128xf32, #tpu.memory_space<vmem>>, vector<1x128xf32>
    %8 = vector.broadcast %7 : vector<1x128xf32> to vector<128x128xf32>
    %9 = arith.addf %6, %8 : vector<128x128xf32>
    %cst_6 = arith.constant 0.000000e+00 : f32
    %10 = vector.broadcast %cst_6 : f32 to vector<128x128xf32>
    %11 = arith.maximumf %9, %10 : vector<128x128xf32>
    %12 = vector.broadcast %cst_6 : f32 to vector<128x128xf32>
    %13 = arith.subf %9, %12 : vector<128x128xf32>
    %14 = arith.cmpf one, %13, %13 : vector<128x128xf32>
    %15 = vector.broadcast %cst_6 : f32 to vector<128x128xf32>
    %16 = arith.addf %9, %15 : vector<128x128xf32>
    %17 = math.absf %13 : vector<128x128xf32>
    %cst_7 = arith.constant 0.000000e+00 : f32
    %18 = vector.broadcast %cst_7 : f32 to vector<128x128xf32>
    %19 = arith.subf %18, %17 : vector<128x128xf32>
    %20 = math.exp %19 : vector<128x128xf32>
    %21 = math.log1p %20 : vector<128x128xf32>
    %22 = arith.addf %11, %21 : vector<128x128xf32>
    %23 = arith.select %14, %16, %22 : vector<128x128xi1>, vector<128x128xf32>
    %cst_8 = arith.constant 0.693147182 : f32
    %24 = vector.broadcast %cst_8 : f32 to vector<128x128xf32>
    %25 = arith.subf %23, %24 : vector<128x128xf32>
    %26 = arith.truncf %25 : vector<128x128xf32> to vector<128x128xbf16>
    %c0_9 = arith.constant 0 : index
    %c0_10 = arith.constant 0 : index
    %27 = vector.load %arg9[%c0_9, %c0_10] : memref<128x128xbf16, #tpu.memory_space<vmem>>, vector<128x128xbf16>
    %cst_11 = arith.constant dense<0.000000e+00> : vector<128x128xf32>
    %28 = tpu.matmul %26, %27, %cst_11 {dimension_numbers = #tpu.dot_dimension_numbers<[1], [0], [0], [1], [0, 0, 1, 1], [], []>} : vector<128x128xbf16>, vector<128x128xbf16>, vector<128x128xf32> -> vector<128x128xf32>
    %c0_12 = arith.constant 0 : index
    %c0_13 = arith.constant 0 : index
    %29 = vector.load %arg10[%c0_12, %c0_13] : memref<1x128xf32, #tpu.memory_space<vmem>>, vector<1x128xf32>
    %30 = vector.broadcast %29 : vector<1x128xf32> to vector<128x128xf32>
    %31 = arith.addf %28, %30 : vector<128x128xf32>
    %c0_14 = arith.constant 0 : index
    %c0_15 = arith.constant 0 : index
    %32 = vector.load %arg6[%c0_14, %c0_15] : memref<128x1xf32, #tpu.memory_space<vmem>>, vector<128x1xf32>
    %33 = vector.broadcast %32 : vector<128x1xf32> to vector<128x128xf32>
    %34 = arith.mulf %31, %33 : vector<128x128xf32>
    %35 = tpu.iota {dimensions = array<i32: 0>} : vector<8x128xi32>
    %c0_16 = arith.constant 0 : index
    %c0_17 = arith.constant 0 : index
    %36 = vector.load %arg5[%c0_16, %c0_17] : memref<1x128xi32, #tpu.memory_space<vmem>>, vector<1x128xi32>
    %37 = vector.broadcast %36 : vector<1x128xi32> to vector<8x128xi32>
    %38 = arith.cmpi eq, %35, %37 : vector<8x128xi32>
    %39 = arith.extui %38 : vector<8x128xi1> to vector<8x128xi32>
    %40 = arith.sitofp %39 : vector<8x128xi32> to vector<8x128xf32>
    %41 = arith.truncf %40 : vector<8x128xf32> to vector<8x128xbf16>
    %c0_18 = arith.constant 0 : index
    %c0_19 = arith.constant 0 : index
    %42 = vector.load %arg4[%c0_18, %c0_19] : memref<1x128xi32, #tpu.memory_space<vmem>>, vector<1x128xi32>
    %43 = vector.broadcast %42 : vector<1x128xi32> to vector<8x128xi32>
    %44 = arith.cmpi eq, %35, %43 : vector<8x128xi32>
    %45 = arith.extui %44 : vector<8x128xi1> to vector<8x128xi32>
    %46 = arith.sitofp %45 : vector<8x128xi32> to vector<8x128xf32>
    %47 = arith.truncf %46 : vector<8x128xf32> to vector<8x128xbf16>
    %c0_20 = arith.constant 0 : index
    %c0_21 = arith.constant 0 : index
    %48 = vector.load %arg2[%c0_20, %c0_21] : memref<8x128xbf16, #tpu.memory_space<vmem>>, vector<8x128xbf16>
    %cst_22 = arith.constant dense<0.000000e+00> : vector<128x128xf32>
    %49 = tpu.matmul %41, %48, %cst_22 {dimension_numbers = #tpu.dot_dimension_numbers<[0], [0], [1], [1], [0, 1, 1, 1], [], []>} : vector<8x128xbf16>, vector<8x128xbf16>, vector<128x128xf32> -> vector<128x128xf32>
    %50 = arith.mulf %49, %34 : vector<128x128xf32>
    %51 = arith.truncf %50 : vector<128x128xf32> to vector<128x128xbf16>
    %c0_23 = arith.constant 0 : index
    %c0_24 = arith.constant 0 : index
    %c0_25 = arith.constant 0 : index
    %52 = vector.load %arg11[%c0_23, %c0_24, %c0_25] : memref<1x8x128xf32, #tpu.memory_space<vmem>>, vector<1x8x128xf32>
    %53 = vector.shape_cast %52 : vector<1x8x128xf32> to vector<8x128xf32>
    %cst_26 = arith.constant dense<0.000000e+00> : vector<8x128xf32>
    %54 = tpu.matmul %47, %51, %cst_26 {dimension_numbers = #tpu.dot_dimension_numbers<[1], [0], [0], [1], [0, 0, 1, 1], [], []>} : vector<8x128xbf16>, vector<128x128xbf16>, vector<8x128xf32> -> vector<8x128xf32>
    %55 = arith.addf %53, %54 : vector<8x128xf32>
    %c0_27 = arith.constant 0 : index
    %c0_28 = arith.constant 0 : index
    %c0_29 = arith.constant 0 : index
    %56 = vector.load %arg11[%c0_27, %c0_28, %c0_29] : memref<1x8x128xf32, #tpu.memory_space<vmem>>, vector<1x8x128xf32>
    %57 = vector.shape_cast %56 : vector<1x8x128xf32> to vector<8x128xf32>
    %58 = vector.shape_cast %55 : vector<8x128xf32> to vector<1x8x128xf32>
    tpu.vector_store %arg11[%c0_27, %c0_28, %c0_29], %58 {strides = array<i32>} : memref<1x8x128xf32, #tpu.memory_space<vmem>>, vector<1x8x128xf32>,
    return
  }
  func.func @transform_0(%arg0: i32, %arg1: i32) -> (i32, i32) {
    %c0_i32 = arith.constant 0 : i32
    %c0_i32_0 = arith.constant 0 : i32
    %c0_i32_1 = arith.constant 0 : i32
    return %c0_i32, %c0_i32_0 : i32, i32
  }
  func.func @transform_1(%arg0: i32, %arg1: i32) -> (i32, i32) {
    %c1_i32 = arith.constant 1 : i32
    %0 = arith.muli %arg0, %c1_i32 : i32
    %1 = arith.addi %0, %arg1 : i32
    %c0_i32 = arith.constant 0 : i32
    %c0_i32_0 = arith.constant 0 : i32
    return %1, %c0_i32 : i32, i32
  }
  func.func @transform_2(%arg0: i32, %arg1: i32) -> (i32, i32) {
    %c1_i32 = arith.constant 1 : i32
    %0 = arith.muli %arg0, %c1_i32 : i32
    %1 = arith.addi %0, %arg1 : i32
    %c0_i32 = arith.constant 0 : i32
    %c0_i32_0 = arith.constant 0 : i32
    return %c0_i32, %1 : i32, i32
  }
  func.func @transform_3(%arg0: i32, %arg1: i32) -> (i32, i32) {
    %c1_i32 = arith.constant 1 : i32
    %0 = arith.muli %arg0, %c1_i32 : i32
    %1 = arith.addi %0, %arg1 : i32
    %c0_i32 = arith.constant 0 : i32
    %c0_i32_0 = arith.constant 0 : i32
    return %c0_i32, %1 : i32, i32
  }
  func.func @transform_4(%arg0: i32, %arg1: i32) -> (i32, i32) {
    %c1_i32 = arith.constant 1 : i32
    %0 = arith.muli %arg0, %c1_i32 : i32
    %1 = arith.addi %0, %arg1 : i32
    %c0_i32 = arith.constant 0 : i32
    %c0_i32_0 = arith.constant 0 : i32
    return %1, %c0_i32 : i32, i32
  }
  func.func @transform_5(%arg0: i32, %arg1: i32) -> (i32, i32) {
    %c0_i32 = arith.constant 0 : i32
    %c0_i32_0 = arith.constant 0 : i32
    %c0_i32_1 = arith.constant 0 : i32
    return %c0_i32, %c0_i32_0 : i32, i32
  }
  func.func @transform_6(%arg0: i32, %arg1: i32) -> (i32, i32) {
    %c0_i32 = arith.constant 0 : i32
    %c0_i32_0 = arith.constant 0 : i32
    %c0_i32_1 = arith.constant 0 : i32
    return %c0_i32, %c0_i32_0 : i32, i32
  }
  func.func @transform_7(%arg0: i32, %arg1: i32) -> (i32, i32) {
    %c0_i32 = arith.constant 0 : i32
    %c0_i32_0 = arith.constant 0 : i32
    %c0_i32_1 = arith.constant 0 : i32
    return %c0_i32, %c0_i32_0 : i32, i32
  }
  func.func @transform_8(%arg0: i32, %arg1: i32) -> (i32, i32) {
    %c0_i32 = arith.constant 0 : i32
    %c0_i32_0 = arith.constant 0 : i32
    %c0_i32_1 = arith.constant 0 : i32
    return %c0_i32, %c0_i32_0 : i32, i32
  }
  func.func @transform_9(%arg0: i32, %arg1: i32) -> (i32, i32, i32) {
    %c0_i32 = arith.constant 0 : i32
    %c0_i32_0 = arith.constant 0 : i32
    %c0_i32_1 = arith.constant 0 : i32
    return %arg0, %c0_i32, %c0_i32_0 : i32, i32, i32
  }
}

module attributes {stable_mosaic.version = 11 : i64} {
  func.func @_cfconv_kernel(%arg0: i32, %arg1: i32, %arg2: memref<8x128xbf16, #tpu.memory_space<vmem>>, %arg3: memref<128x16xf32, #tpu.memory_space<vmem>>, %arg4: memref<1x128xi32, #tpu.memory_space<vmem>>, %arg5: memref<1x128xi32, #tpu.memory_space<vmem>>, %arg6: memref<128x1xf32, #tpu.memory_space<vmem>>, %arg7: memref<16x128xbf16, #tpu.memory_space<vmem>>, %arg8: memref<1x128xf32, #tpu.memory_space<vmem>>, %arg9: memref<128x128xbf16, #tpu.memory_space<vmem>>, %arg10: memref<1x128xf32, #tpu.memory_space<vmem>>, %arg11: memref<1x8x128xf32, #tpu.memory_space<vmem>>) attributes {dimension_semantics = [#tpu.dimension_semantics<parallel>, #tpu.dimension_semantics<arbitrary>], iteration_bounds = array<i64: 2, 1>, scalar_prefetch = 0 : i64, scratch_operands = 0 : i64, tpu.core_type = #tpu.core_type<tc>, window_params = [{pipeline_mode = #tpu.pipeline_mode<synchronous>, transform_indices = @transform_0, window_bounds = array<i64: 8, 128>}, {transform_indices = @transform_1, window_bounds = array<i64: 128, 16>}, {transform_indices = @transform_2, window_bounds = array<i64: 1, 128>}, {transform_indices = @transform_3, window_bounds = array<i64: 1, 128>}, {transform_indices = @transform_4, window_bounds = array<i64: 128, 1>}, {pipeline_mode = #tpu.pipeline_mode<synchronous>, transform_indices = @transform_5, window_bounds = array<i64: 16, 128>}, {pipeline_mode = #tpu.pipeline_mode<synchronous>, transform_indices = @transform_6, window_bounds = array<i64: 1, 128>}, {pipeline_mode = #tpu.pipeline_mode<synchronous>, transform_indices = @transform_7, window_bounds = array<i64: 128, 128>}, {pipeline_mode = #tpu.pipeline_mode<synchronous>, transform_indices = @transform_8, window_bounds = array<i64: 1, 128>}, {transform_indices = @transform_9, window_bounds = array<i64: 1, 8, 128>}]} {
    %c0_i32 = arith.constant 0 : i32
    %0 = arith.cmpi eq, %arg1, %c0_i32 : i32
    %1 = arith.extui %0 : i1 to i32
    %c0_i32_0 = arith.constant 0 : i32
    %2 = arith.cmpi ne, %1, %c0_i32_0 : i32
    scf.if %2 {
      %cst_30 = arith.constant 0.000000e+00 : f32
      %59 = vector.broadcast %cst_30 : f32 to vector<1x8x128xf32>
      %c0_31 = arith.constant 0 : index
      %c0_32 = arith.constant 0 : index
      %c0_33 = arith.constant 0 : index
      %60 = vector.load %arg11[%c0_31, %c0_32, %c0_33] : memref<1x8x128xf32, #tpu.memory_space<vmem>>, vector<1x8x128xf32>
      tpu.vector_store %arg11[%c0_31, %c0_32, %c0_33], %59 {strides = array<i32>} : memref<1x8x128xf32, #tpu.memory_space<vmem>>, vector<1x8x128xf32>,
    } else {
    }
    %c0 = arith.constant 0 : index
    %c0_1 = arith.constant 0 : index
    %3 = vector.load %arg3[%c0, %c0_1] : memref<128x16xf32, #tpu.memory_space<vmem>>, vector<128x16xf32>
    %4 = arith.truncf %3 : vector<128x16xf32> to vector<128x16xbf16>
    %c0_2 = arith.constant 0 : index
    %c0_3 = arith.constant 0 : index
    %5 = vector.load %arg7[%c0_2, %c0_3] : memref<16x128xbf16, #tpu.memory_space<vmem>>, vector<16x128xbf16>
    %cst = arith.constant dense<0.000000e+00> : vector<128x128xf32>
    %6 = tpu.matmul %4, %5, %cst {dimension_numbers = #tpu.dot_dimension_numbers<[1], [0], [0], [1], [0, 0, 1, 1], [], []>} : vector<128x16xbf16>, vector<16x128xbf16>, vector<128x128xf32> -> vector<128x128xf32>
    %c0_4 = arith.constant 0 : index
    %c0_5 = arith.constant 0 : index
    %7 = vector.load %arg8[%c0_4, %c0_5] : memref<1x128xf32, #tpu.memory_space<vmem>>, vector<1x128xf32>
    %8 = vector.broadcast %7 : vector<1x128xf32> to vector<128x128xf32>
    %9 = arith.addf %6, %8 : vector<128x128xf32>
    %cst_6 = arith.constant 0.000000e+00 : f32
    %10 = vector.broadcast %cst_6 : f32 to vector<128x128xf32>
    %11 = arith.maximumf %9, %10 : vector<128x128xf32>
    %12 = vector.broadcast %cst_6 : f32 to vector<128x128xf32>
    %13 = arith.subf %9, %12 : vector<128x128xf32>
    %14 = arith.cmpf one, %13, %13 : vector<128x128xf32>
    %15 = vector.broadcast %cst_6 : f32 to vector<128x128xf32>
    %16 = arith.addf %9, %15 : vector<128x128xf32>
    %17 = math.absf %13 : vector<128x128xf32>
    %cst_7 = arith.constant 0.000000e+00 : f32
    %18 = vector.broadcast %cst_7 : f32 to vector<128x128xf32>
    %19 = arith.subf %18, %17 : vector<128x128xf32>
    %20 = math.exp %19 : vector<128x128xf32>
    %21 = math.log1p %20 : vector<128x128xf32>
    %22 = arith.addf %11, %21 : vector<128x128xf32>
    %23 = arith.select %14, %16, %22 : vector<128x128xi1>, vector<128x128xf32>
    %cst_8 = arith.constant 0.693147182 : f32
    %24 = vector.broadcast %cst_8 : f32 to vector<128x128xf32>
    %25 = arith.subf %23, %24 : vector<128x128xf32>
    %26 = arith.truncf %25 : vector<128x128xf32> to vector<128x128xbf16>
    %c0_9 = arith.constant 0 : index
    %c0_10 = arith.constant 0 : index
    %27 = vector.load %arg9[%c0_9, %c0_10] : memref<128x128xbf16, #tpu.memory_space<vmem>>, vector<128x128xbf16>
    %cst_11 = arith.constant dense<0.000000e+00> : vector<128x128xf32>
    %28 = tpu.matmul %26, %27, %cst_11 {dimension_numbers = #tpu.dot_dimension_numbers<[1], [0], [0], [1], [0, 0, 1, 1], [], []>} : vector<128x128xbf16>, vector<128x128xbf16>, vector<128x128xf32> -> vector<128x128xf32>
    %c0_12 = arith.constant 0 : index
    %c0_13 = arith.constant 0 : index
    %29 = vector.load %arg10[%c0_12, %c0_13] : memref<1x128xf32, #tpu.memory_space<vmem>>, vector<1x128xf32>
    %30 = vector.broadcast %29 : vector<1x128xf32> to vector<128x128xf32>
    %31 = arith.addf %28, %30 : vector<128x128xf32>
    %c0_14 = arith.constant 0 : index
    %c0_15 = arith.constant 0 : index
    %32 = vector.load %arg6[%c0_14, %c0_15] : memref<128x1xf32, #tpu.memory_space<vmem>>, vector<128x1xf32>
    %33 = vector.broadcast %32 : vector<128x1xf32> to vector<128x128xf32>
    %34 = arith.mulf %31, %33 : vector<128x128xf32>
    %35 = tpu.iota {dimensions = array<i32: 0>} : vector<8x128xi32>
    %c0_16 = arith.constant 0 : index
    %c0_17 = arith.constant 0 : index
    %36 = vector.load %arg5[%c0_16, %c0_17] : memref<1x128xi32, #tpu.memory_space<vmem>>, vector<1x128xi32>
    %37 = vector.broadcast %36 : vector<1x128xi32> to vector<8x128xi32>
    %38 = arith.cmpi eq, %35, %37 : vector<8x128xi32>
    %39 = arith.extui %38 : vector<8x128xi1> to vector<8x128xi32>
    %40 = arith.sitofp %39 : vector<8x128xi32> to vector<8x128xf32>
    %41 = arith.truncf %40 : vector<8x128xf32> to vector<8x128xbf16>
    %c0_18 = arith.constant 0 : index
    %c0_19 = arith.constant 0 : index
    %42 = vector.load %arg4[%c0_18, %c0_19] : memref<1x128xi32, #tpu.memory_space<vmem>>, vector<1x128xi32>
    %43 = vector.broadcast %42 : vector<1x128xi32> to vector<8x128xi32>
    %44 = arith.cmpi eq, %35, %43 : vector<8x128xi32>
    %45 = arith.extui %44 : vector<8x128xi1> to vector<8x128xi32>
    %46 = arith.sitofp %45 : vector<8x128xi32> to vector<8x128xf32>
    %47 = arith.truncf %46 : vector<8x128xf32> to vector<8x128xbf16>
    %c0_20 = arith.constant 0 : index
    %c0_21 = arith.constant 0 : index
    %48 = vector.load %arg2[%c0_20, %c0_21] : memref<8x128xbf16, #tpu.memory_space<vmem>>, vector<8x128xbf16>
    %cst_22 = arith.constant dense<0.000000e+00> : vector<128x128xf32>
    %49 = tpu.matmul %41, %48, %cst_22 {dimension_numbers = #tpu.dot_dimension_numbers<[0], [0], [1], [1], [0, 1, 1, 1], [], []>} : vector<8x128xbf16>, vector<8x128xbf16>, vector<128x128xf32> -> vector<128x128xf32>
    %50 = arith.mulf %49, %34 : vector<128x128xf32>
    %51 = arith.truncf %50 : vector<128x128xf32> to vector<128x128xbf16>
    %c0_23 = arith.constant 0 : index
    %c0_24 = arith.constant 0 : index
    %c0_25 = arith.constant 0 : index
    %52 = vector.load %arg11[%c0_23, %c0_24, %c0_25] : memref<1x8x128xf32, #tpu.memory_space<vmem>>, vector<1x8x128xf32>
    %53 = vector.shape_cast %52 : vector<1x8x128xf32> to vector<8x128xf32>
    %cst_26 = arith.constant dense<0.000000e+00> : vector<8x128xf32>
    %54 = tpu.matmul %47, %51, %cst_26 {dimension_numbers = #tpu.dot_dimension_numbers<[1], [0], [0], [1], [0, 0, 1, 1], [], []>} : vector<8x128xbf16>, vector<128x128xbf16>, vector<8x128xf32> -> vector<8x128xf32>
    %55 = arith.addf %53, %54 : vector<8x128xf32>
    %c0_27 = arith.constant 0 : index
    %c0_28 = arith.constant 0 : index
    %c0_29 = arith.constant 0 : index
    %56 = vector.load %arg11[%c0_27, %c0_28, %c0_29] : memref<1x8x128xf32, #tpu.memory_space<vmem>>, vector<1x8x128xf32>
    %57 = vector.shape_cast %56 : vector<1x8x128xf32> to vector<8x128xf32>
    %58 = vector.shape_cast %55 : vector<8x128xf32> to vector<1x8x128xf32>
    tpu.vector_store %arg11[%c0_27, %c0_28, %c0_29], %58 {strides = array<i32>} : memref<1x8x128xf32, #tpu.memory_space<vmem>>, vector<1x8x128xf32>,
    return
  }
  func.func @transform_0(%arg0: i32, %arg1: i32) -> (i32, i32) {
    %c0_i32 = arith.constant 0 : i32
    %c0_i32_0 = arith.constant 0 : i32
    %c0_i32_1 = arith.constant 0 : i32
    return %c0_i32, %c0_i32_0 : i32, i32
  }
  func.func @transform_1(%arg0: i32, %arg1: i32) -> (i32, i32) {
    %c1_i32 = arith.constant 1 : i32
    %0 = arith.muli %arg0, %c1_i32 : i32
    %1 = arith.addi %0, %arg1 : i32
    %c0_i32 = arith.constant 0 : i32
    %c0_i32_0 = arith.constant 0 : i32
    return %1, %c0_i32 : i32, i32
  }
  func.func @transform_2(%arg0: i32, %arg1: i32) -> (i32, i32) {
    %c1_i32 = arith.constant 1 : i32
    %0 = arith.muli %arg0, %c1_i32 : i32
    %1 = arith.addi %0, %arg1 : i32
    %c0_i32 = arith.constant 0 : i32
    %c0_i32_0 = arith.constant 0 : i32
    return %c0_i32, %1 : i32, i32
  }
  func.func @transform_3(%arg0: i32, %arg1: i32) -> (i32, i32) {
    %c1_i32 = arith.constant 1 : i32
    %0 = arith.muli %arg0, %c1_i32 : i32
    %1 = arith.addi %0, %arg1 : i32
    %c0_i32 = arith.constant 0 : i32
    %c0_i32_0 = arith.constant 0 : i32
    return %c0_i32, %1 : i32, i32
  }
  func.func @transform_4(%arg0: i32, %arg1: i32) -> (i32, i32) {
    %c1_i32 = arith.constant 1 : i32
    %0 = arith.muli %arg0, %c1_i32 : i32
    %1 = arith.addi %0, %arg1 : i32
    %c0_i32 = arith.constant 0 : i32
    %c0_i32_0 = arith.constant 0 : i32
    return %1, %c0_i32 : i32, i32
  }
  func.func @transform_5(%arg0: i32, %arg1: i32) -> (i32, i32) {
    %c0_i32 = arith.constant 0 : i32
    %c0_i32_0 = arith.constant 0 : i32
    %c0_i32_1 = arith.constant 0 : i32
    return %c0_i32, %c0_i32_0 : i32, i32
  }
  func.func @transform_6(%arg0: i32, %arg1: i32) -> (i32, i32) {
    %c0_i32 = arith.constant 0 : i32
    %c0_i32_0 = arith.constant 0 : i32
    %c0_i32_1 = arith.constant 0 : i32
    return %c0_i32, %c0_i32_0 : i32, i32
  }
  func.func @transform_7(%arg0: i32, %arg1: i32) -> (i32, i32) {
    %c0_i32 = arith.constant 0 : i32
    %c0_i32_0 = arith.constant 0 : i32
    %c0_i32_1 = arith.constant 0 : i32
    return %c0_i32, %c0_i32_0 : i32, i32
  }
  func.func @transform_8(%arg0: i32, %arg1: i32) -> (i32, i32) {
    %c0_i32 = arith.constant 0 : i32
    %c0_i32_0 = arith.constant 0 : i32
    %c0_i32_1 = arith.constant 0 : i32
    return %c0_i32, %c0_i32_0 : i32, i32
  }
  func.func @transform_9(%arg0: i32, %arg1: i32) -> (i32, i32, i32) {
    %c0_i32 = arith.constant 0 : i32
    %c0_i32_0 = arith.constant 0 : i32
    %c0_i32_1 = arith.constant 0 : i32
    return %arg0, %c0_i32, %c0_i32_0 : i32, i32, i32
  }
}

</mosaic_0001>

<llo_original>
// kernel: tpu_custom_call.1
$region0: #{tpu_custom_call.1}
  #allocation0 [shape = 'u32[]', space=smem, size = 0x4, offset = 0x4, fixed_abs, tag = 'smem constant byte address 0x4 - core index']
  #allocation1 [shape = 'u32[144,128]{1,0:T(1,128)}', space=vmem, size = 0x12000, scoped, tag = 'internal scratch']
  %s0 = inlined_call_operand.vmem [shape: bf16[8,128], index: 0, kind: input, shape index: {}]
  %s1 = inlined_call_operand.vmem [shape: f32[256,16], index: 1, kind: input, shape index: {}]
  %s2 = inlined_call_operand.vmem [shape: s32[1,256], index: 2, kind: input, shape index: {}]
  %s3 = inlined_call_operand.vmem [shape: s32[1,256], index: 3, kind: input, shape index: {}]
  %s4 = inlined_call_operand.vmem [shape: f32[256,1], index: 4, kind: input, shape index: {}]
  %s5 = inlined_call_operand.vmem [shape: bf16[16,128], index: 5, kind: input, shape index: {}]
  %s6 = inlined_call_operand.vmem [shape: f32[1,128], index: 6, kind: input, shape index: {}]
  %s7 = inlined_call_operand.vmem [shape: bf16[128,128], index: 7, kind: input, shape index: {}]
  %s8 = inlined_call_operand.vmem [shape: f32[1,128], index: 8, kind: input, shape index: {}]
  %s9 = inlined_call_operand.hbm [shape: f32[2,8,128], index: 9, kind: output, shape index: {}]
  %s10 = sld [smem:[#allocation0]]
  $region73: #{tpu_custom_call.1} parent=0
    _
  %s12 = ssub.s32 1, %s10
  %s13 = scalar_select 0, %s12, %s10
  $region1: #{tpu_custom_call.1} parent=0
    #allocation2 [shape = 'u8[8192]{0}', space=vmem, size = 0x2000, scoped, tag = 'output window, operand 0']
    #allocation3 [shape = 's32[2]{0}', space=sflag, size = 0x8, scoped, tag = 'scoped memory for tpu_custom_call.1']
    %14 = vsyncpa [#allocation3], 0
    %s15 = scalar_lea.sflag [#allocation3], 1
    %16 = vsyncpa %s15, 0
    loop: start=0, step=1, limit=4
    $region2: #{tpu_custom_call.1} parent=1 // loop_pre_header
      _
    $region3: #{tpu_custom_call.1} parent=1 // loop_header
      %s18 = sphi 0, %s22
      %p19 = scmp.ge.s32.totalorder %s18, 4
      %s25 = sphi 0, %s37
      %s26 = sphi 0, %s33
      %s27 = sphi 0, %s25
      %s28 = sphi 0, %s26
      %s29 = sphi 0, %s27
      %s30 = sphi 0, %s28
      %s38 = sphi 0, %s38
      %s40 = sphi 0, %s38
      %s41 = sphi 0, %s40
      %s55 = sphi 0, %s41
      %s63 = sphi 0, %s65
      %s66 = sphi 0, %s63
      %s67 = sphi 0, %s66
      %s83 = sphi 0, %s67
      %s91 = sphi 0, %s93
      %s94 = sphi 0, %s91
      %s95 = sphi 0, %s94
      %s111 = sphi 0, %s95
      %s119 = sphi 0, %s121
      %s122 = sphi 0, %s119
      %s123 = sphi 0, %s122
      %s139 = sphi 0, %s123
      %s147 = sphi 0, %s149
      %s150 = sphi 0, %s147
      %s151 = sphi 0, %s150
      %s167 = sphi 0, %s151
      %s171 = sphi 0, %s171
      %s173 = sphi 0, %s171
      %s174 = sphi 0, %s173
      %s188 = sphi 0, %s174
      %s192 = sphi 0, %s192
      %s194 = sphi 0, %s192
      %s195 = sphi 0, %s194
      %s209 = sphi 0, %s195
      %s213 = sphi 0, %s213
      %s215 = sphi 0, %s213
      %s216 = sphi 0, %s215
      %s230 = sphi 0, %s216
      %s234 = sphi 0, %s234
      %s236 = sphi 0, %s234
      %s237 = sphi 0, %s236
      %s251 = sphi 0, %s237
      %s257 = sphi 0, %s259
      %s260 = sphi 0, %s257
      %s261 = sphi 0, %s260
      %s277 = sphi 0, %s261
    $region4: #{tpu_custom_call.1} parent=1 // loop_header_branch
      %21 = sbr.rel (%p19) target = $region8
    $region5: #{tpu_custom_call.1} parent=1 // loop_body
      %s23 = ssub.s32 %s18, 1
      %s24 = ssub.s32 %s18, 2
      %s31 = sadd.s32 1, %s26
      %p32 = scmp.ge.s32.totalorder %s31, 1
      %s33 = scalar_select %p32, 0, %s31
      %s34 = sadd.s32 1, %s25
      %s35 = scalar_select %p32, %s34, %s25
      %p36 = scmp.ge.s32.totalorder %s35, 2
      %s37 = scalar_select %p36, 0, %s35
      %s39 = sadd.s32 %s38, 1
      %p42 = scmp.eq.s32.totalorder %s18, 1
      %p43 = scmp.ne.s32.totalorder %s38, %s40
      %p44 = scmp.eq.s32.totalorder %s18, 0
      %p45 = por %p43, %p44
      %p46 = scmp.ne.s32.totalorder %s38, %s40
      %p47 = scmp.eq.s32.totalorder %s23, 1
      %p48 = por %p46, %p47
      %p49 = scmp.ne.s32.totalorder %s40, %s41
      %p50 = scmp.eq.s32.totalorder %s23, 0
      %p51 = por %p49, %p50
      %p52 = scmp.ne.s32.totalorder %s40, %s41
      %p53 = scmp.eq.s32.totalorder %s24, 1
      %p54 = por %p52, %p53
      %p56 = scmp.ne.s32.totalorder %s41, %s55
      %p57 = scmp.eq.s32.totalorder %s24, 0
      %p58 = por %p56, %p57
      %s59 = sadd.s32 %s25, %s26
      %s60 = sadd.s32 %s37, %s33
      %s61 = ssub.s32 %s59, %s60
      %p62 = scmp.eq.s32.totalorder %s61, 0
      %s64 = sadd.s32 %s63, 1
      %s65 = scalar_select %p62, %s63, %s64
      %p68 = pneg %p62
      %p69 = scmp.eq.s32.totalorder %s18, 1
      %p70 = por %p68, %p69
      %p71 = scmp.ne.s32.totalorder %s63, %s66
      %p72 = scmp.eq.s32.totalorder %s18, 0
      %p73 = por %p71, %p72
      %p74 = scmp.ne.s32.totalorder %s63, %s66
      %p75 = scmp.eq.s32.totalorder %s23, 1
      %p76 = por %p74, %p75
      %p77 = scmp.ne.s32.totalorder %s66, %s67
      %p78 = scmp.eq.s32.totalorder %s23, 0
      %p79 = por %p77, %p78
      %p80 = scmp.ne.s32.totalorder %s66, %s67
      %p81 = scmp.eq.s32.totalorder %s24, 1
      %p82 = por %p80, %p81
      %p84 = scmp.ne.s32.totalorder %s67, %s83
      %p85 = scmp.eq.s32.totalorder %s24, 0
      %p86 = por %p84, %p85
      %s87 = sadd.s32 %s25, %s26
      %s88 = sadd.s32 %s37, %s33
      %s89 = ssub.s32 %s87, %s88
      %p90 = scmp.eq.s32.totalorder %s89, 0
      %s92 = sadd.s32 %s91, 1
      %s93 = scalar_select %p90, %s91, %s92
      %p96 = pneg %p90
      %p97 = scmp.eq.s32.totalorder %s18, 1
      %p98 = por %p96, %p97
      %p99 = scmp.ne.s32.totalorder %s91, %s94
      %p100 = scmp.eq.s32.totalorder %s18, 0
      %p101 = por %p99, %p100
      %p102 = scmp.ne.s32.totalorder %s91, %s94
      %p103 = scmp.eq.s32.totalorder %s23, 1
      %p104 = por %p102, %p103
      %p105 = scmp.ne.s32.totalorder %s94, %s95
      %p106 = scmp.eq.s32.totalorder %s23, 0
      %p107 = por %p105, %p106
      %p108 = scmp.ne.s32.totalorder %s94, %s95
      %p109 = scmp.eq.s32.totalorder %s24, 1
      %p110 = por %p108, %p109
      %p112 = scmp.ne.s32.totalorder %s95, %s111
      %p113 = scmp.eq.s32.totalorder %s24, 0
      %p114 = por %p112, %p113
      %s115 = sadd.s32 %s25, %s26
      %s116 = sadd.s32 %s37, %s33
      %s117 = ssub.s32 %s115, %s116
      %p118 = scmp.eq.s32.totalorder %s117, 0
      %s120 = sadd.s32 %s119, 1
      %s121 = scalar_select %p118, %s119, %s120
      %p124 = pneg %p118
      %p125 = scmp.eq.s32.totalorder %s18, 1
      %p126 = por %p124, %p125
      %p127 = scmp.ne.s32.totalorder %s119, %s122
      %p128 = scmp.eq.s32.totalorder %s18, 0
      %p129 = por %p127, %p128
      %p130 = scmp.ne.s32.totalorder %s119, %s122
      %p131 = scmp.eq.s32.totalorder %s23, 1
      %p132 = por %p130, %p131
      %p133 = scmp.ne.s32.totalorder %s122, %s123
      %p134 = scmp.eq.s32.totalorder %s23, 0
      %p135 = por %p133, %p134
      %p136 = scmp.ne.s32.totalorder %s122, %s123
      %p137 = scmp.eq.s32.totalorder %s24, 1
      %p138 = por %p136, %p137
      %p140 = scmp.ne.s32.totalorder %s123, %s139
      %p141 = scmp.eq.s32.totalorder %s24, 0
      %p142 = por %p140, %p141
      %s143 = sadd.s32 %s25, %s26
      %s144 = sadd.s32 %s37, %s33
      %s145 = ssub.s32 %s143, %s144
      %p146 = scmp.eq.s32.totalorder %s145, 0
      %s148 = sadd.s32 %s147, 1
      %s149 = scalar_select %p146, %s147, %s148
      %p152 = pneg %p146
      %p153 = scmp.eq.s32.totalorder %s18, 1
      %p154 = por %p152, %p153
      %p155 = scmp.ne.s32.totalorder %s147, %s150
      %p156 = scmp.eq.s32.totalorder %s18, 0
      %p157 = por %p155, %p156
      %p158 = scmp.ne.s32.totalorder %s147, %s150
      %p159 = scmp.eq.s32.totalorder %s23, 1
      %p160 = por %p158, %p159
      %p161 = scmp.ne.s32.totalorder %s150, %s151
      %p162 = scmp.eq.s32.totalorder %s23, 0
      %p163 = por %p161, %p162
      %p164 = scmp.ne.s32.totalorder %s150, %s151
      %p165 = scmp.eq.s32.totalorder %s24, 1
      %p166 = por %p164, %p165
      %p168 = scmp.ne.s32.totalorder %s151, %s167
      %p169 = scmp.eq.s32.totalorder %s24, 0
      %p170 = por %p168, %p169
      %s172 = sadd.s32 %s171, 1
      %p175 = scmp.eq.s32.totalorder %s18, 1
      %p176 = scmp.ne.s32.totalorder %s171, %s173
      %p177 = scmp.eq.s32.totalorder %s18, 0
      %p178 = por %p176, %p177
      %p179 = scmp.ne.s32.totalorder %s171, %s173
      %p180 = scmp.eq.s32.totalorder %s23, 1
      %p181 = por %p179, %p180
      %p182 = scmp.ne.s32.totalorder %s173, %s174
      %p183 = scmp.eq.s32.totalorder %s23, 0
      %p184 = por %p182, %p183
      %p185 = scmp.ne.s32.totalorder %s173, %s174
      %p186 = scmp.eq.s32.totalorder %s24, 1
      %p187 = por %p185, %p186
      %p189 = scmp.ne.s32.totalorder %s174, %s188
      %p190 = scmp.eq.s32.totalorder %s24, 0
      %p191 = por %p189, %p190
      %s193 = sadd.s32 %s192, 1
      %p196 = scmp.eq.s32.totalorder %s18, 1
      %p197 = scmp.ne.s32.totalorder %s192, %s194
      %p198 = scmp.eq.s32.totalorder %s18, 0
      %p199 = por %p197, %p198
      %p200 = scmp.ne.s32.totalorder %s192, %s194
      %p201 = scmp.eq.s32.totalorder %s23, 1
      %p202 = por %p200, %p201
      %p203 = scmp.ne.s32.totalorder %s194, %s195
      %p204 = scmp.eq.s32.totalorder %s23, 0
      %p205 = por %p203, %p204
      %p206 = scmp.ne.s32.totalorder %s194, %s195
      %p207 = scmp.eq.s32.totalorder %s24, 1
      %p208 = por %p206, %p207
      %p210 = scmp.ne.s32.totalorder %s195, %s209
      %p211 = scmp.eq.s32.totalorder %s24, 0
      %p212 = por %p210, %p211
      %s214 = sadd.s32 %s213, 1
      %p217 = scmp.eq.s32.totalorder %s18, 1
      %p218 = scmp.ne.s32.totalorder %s213, %s215
      %p219 = scmp.eq.s32.totalorder %s18, 0
      %p220 = por %p218, %p219
      %p221 = scmp.ne.s32.totalorder %s213, %s215
      %p222 = scmp.eq.s32.totalorder %s23, 1
      %p223 = por %p221, %p222
      %p224 = scmp.ne.s32.totalorder %s215, %s216
      %p225 = scmp.eq.s32.totalorder %s23, 0
      %p226 = por %p224, %p225
      %p227 = scmp.ne.s32.totalorder %s215, %s216
      %p228 = scmp.eq.s32.totalorder %s24, 1
      %p229 = por %p227, %p228
      %p231 = scmp.ne.s32.totalorder %s216, %s230
      %p232 = scmp.eq.s32.totalorder %s24, 0
      %p233 = por %p231, %p232
      %s235 = sadd.s32 %s234, 1
      %p238 = scmp.eq.s32.totalorder %s18, 1
      %p239 = scmp.ne.s32.totalorder %s234, %s236
      %p240 = scmp.eq.s32.totalorder %s18, 0
      %p241 = por %p239, %p240
      %p242 = scmp.ne.s32.totalorder %s234, %s236
      %p243 = scmp.eq.s32.totalorder %s23, 1
      %p244 = por %p242, %p243
      %p245 = scmp.ne.s32.totalorder %s236, %s237
      %p246 = scmp.eq.s32.totalorder %s23, 0
      %p247 = por %p245, %p246
      %p248 = scmp.ne.s32.totalorder %s236, %s237
      %p249 = scmp.eq.s32.totalorder %s24, 1
      %p250 = por %p248, %p249
      %p252 = scmp.ne.s32.totalorder %s237, %s251
      %p253 = scmp.eq.s32.totalorder %s24, 0
      %p254 = por %p252, %p253
      %s255 = ssub.s32 %s25, %s37
      %p256 = scmp.eq.s32.totalorder %s255, 0
      %s258 = sadd.s32 %s257, 1
      %s259 = scalar_select %p256, %s257, %s258
      %p262 = pneg %p256
      %p263 = scmp.eq.s32.totalorder %s18, 1
      %p264 = por %p262, %p263
      %p265 = scmp.ne.s32.totalorder %s257, %s260
      %p266 = scmp.eq.s32.totalorder %s18, 0
      %p267 = por %p265, %p266
      %p268 = scmp.ne.s32.totalorder %s257, %s260
      %p269 = scmp.eq.s32.totalorder %s23, 1
      %p270 = por %p268, %p269
      %p271 = scmp.ne.s32.totalorder %s260, %s261
      %p272 = scmp.eq.s32.totalorder %s23, 0
      %p273 = por %p271, %p272
      %p274 = scmp.ne.s32.totalorder %s260, %s261
      %p275 = scmp.eq.s32.totalorder %s24, 1
      %p276 = por %p274, %p275
      %p278 = scmp.ne.s32.totalorder %s261, %s277
      %p279 = scmp.eq.s32.totalorder %s24, 0
      %p280 = por %p278, %p279
      %p281 = scmp.le.s32.totalorder 1, %s18
      %p282 = scmp.lt.s32.totalorder %s18, 3
      %p283 = pnand %p281, %p282
      %p284 = pneg %p283
      // Predicated region
      $region9: #{tpu_custom_call.1} parent=5 // pred_check
        _
      $region10: #{tpu_custom_call.1} parent=5 // pred_check_branch
        %286 = sbr.rel (%p283) target = $region12
      $region11: #{tpu_custom_call.1} parent=5 // pred_region
        %s287 = ssub.s32 %s18, 1
        // Predicated region
        $region13: #{tpu_custom_call.1} parent=11 // pred_check
          %p288 = pneg %p51
        $region14: #{tpu_custom_call.1} parent=11 // pred_check_branch
          %290 = sbr.rel (%p288) target = $region16
        $region15: #{tpu_custom_call.1} parent=11 // pred_region
          _
        $region16: #{tpu_custom_call.1} parent=11 // pred_fallthru
          _
        // Predicated region
        $region17: #{tpu_custom_call.1} parent=11 // pred_check
          %p291 = pneg %p184
        $region18: #{tpu_custom_call.1} parent=11 // pred_check_branch
          %293 = sbr.rel (%p291) target = $region20
        $region19: #{tpu_custom_call.1} parent=11 // pred_region
          _
        $region20: #{tpu_custom_call.1} parent=11 // pred_fallthru
          _
        // Predicated region
        $region21: #{tpu_custom_call.1} parent=11 // pred_check
          %p294 = pneg %p205
        $region22: #{tpu_custom_call.1} parent=11 // pred_check_branch
          %296 = sbr.rel (%p294) target = $region24
        $region23: #{tpu_custom_call.1} parent=11 // pred_region
          _
        $region24: #{tpu_custom_call.1} parent=11 // pred_fallthru
          _
        // Predicated region
        $region25: #{tpu_custom_call.1} parent=11 // pred_check
          %p297 = pneg %p226
        $region26: #{tpu_custom_call.1} parent=11 // pred_check_branch
          %299 = sbr.rel (%p297) target = $region28
        $region27: #{tpu_custom_call.1} parent=11 // pred_region
          _
        $region28: #{tpu_custom_call.1} parent=11 // pred_fallthru
          _
        // Predicated region
        $region29: #{tpu_custom_call.1} parent=11 // pred_check
          %p300 = pneg %p247
        $region30: #{tpu_custom_call.1} parent=11 // pred_check_branch
          %302 = sbr.rel (%p300) target = $region32
        $region31: #{tpu_custom_call.1} parent=11 // pred_region
          _
        $region32: #{tpu_custom_call.1} parent=11 // pred_fallthru
          _
      $region12: #{tpu_custom_call.1} parent=5 // pred_fallthru
        _
      %p303 = scmp.lt.s32.totalorder %s18, 2
      // Predicated region
      $region33: #{tpu_custom_call.1} parent=5 // pred_check
        %p304 = pneg %p303
      $region34: #{tpu_custom_call.1} parent=5 // pred_check_branch
        %306 = sbr.rel (%p304) target = $region36
      $region35: #{tpu_custom_call.1} parent=5 // pred_region
        // Predicated region
        $region37: #{tpu_custom_call.1} parent=35 // pred_check
          %p307 = pneg %p73
        $region38: #{tpu_custom_call.1} parent=35 // pred_check_branch
          %309 = sbr.rel (%p307) target = $region40
        $region39: #{tpu_custom_call.1} parent=35 // pred_region
          %s310 = sadd.s32 %s25, %s26
          %s311 = smul.u32 16, %s310
          %p312 = scmp.lt.s32.totalorder %s311, 31
          %s313 = scalar_select %p312, %s311, 31
          %s314 = smul.addr %s313, 8
          %s315 = scalar_lea.vmem %s1, %s314
          %s316 = sadd.s32 %s25, %s26
          %s317 = smul.u32 16, %s316
        $region40: #{tpu_custom_call.1} parent=35 // pred_fallthru
          _
        // Predicated region
        $region41: #{tpu_custom_call.1} parent=35 // pred_check
          %p318 = pneg %p101
        $region42: #{tpu_custom_call.1} parent=35 // pred_check_branch
          %320 = sbr.rel (%p318) target = $region44
        $region43: #{tpu_custom_call.1} parent=35 // pred_region
          %s321 = sadd.s32 %s25, %s26
          %p322 = scmp.lt.s32.totalorder %s321, 1
          %s323 = scalar_select %p322, %s321, 1
          %s324 = scalar_lea.vmem %s2, %s323
          %s325 = sadd.s32 %s25, %s26
        $region44: #{tpu_custom_call.1} parent=35 // pred_fallthru
          _
        // Predicated region
        $region45: #{tpu_custom_call.1} parent=35 // pred_check
          %p326 = pneg %p129
        $region46: #{tpu_custom_call.1} parent=35 // pred_check_branch
          %328 = sbr.rel (%p326) target = $region48
        $region47: #{tpu_custom_call.1} parent=35 // pred_region
          %s329 = sadd.s32 %s25, %s26
          %p330 = scmp.lt.s32.totalorder %s329, 1
          %s331 = scalar_select %p330, %s329, 1
          %s332 = scalar_lea.vmem %s3, %s331
          %s333 = sadd.s32 %s25, %s26
        $region48: #{tpu_custom_call.1} parent=35 // pred_fallthru
          _
        // Predicated region
        $region49: #{tpu_custom_call.1} parent=35 // pred_check
          %p334 = pneg %p157
        $region50: #{tpu_custom_call.1} parent=35 // pred_check_branch
          %336 = sbr.rel (%p334) target = $region52
        $region51: #{tpu_custom_call.1} parent=35 // pred_region
          %s337 = sadd.s32 %s25, %s26
          %s338 = smul.u32 16, %s337
          %p339 = scmp.lt.s32.totalorder %s338, 31
          %s340 = scalar_select %p339, %s338, 31
          %s341 = smul.addr %s340, 8
          %s342 = scalar_lea.vmem %s4, %s341
          %s343 = sadd.s32 %s25, %s26
          %s344 = smul.u32 16, %s343
        $region52: #{tpu_custom_call.1} parent=35 // pred_fallthru
          _
      $region36: #{tpu_custom_call.1} parent=5 // pred_fallthru
        _
      %p345 = scmp.le.s32.totalorder 1, %s18
      %p346 = scmp.lt.s32.totalorder %s18, 3
      %p347 = pnand %p345, %p346
      %p348 = pneg %p347
      // Predicated region
      $region53: #{tpu_custom_call.1} parent=5 // pred_check
        _
      $region54: #{tpu_custom_call.1} parent=5 // pred_check_branch
        %350 = sbr.rel (%p347) target = $region56
      $region55: #{tpu_custom_call.1} parent=5 // pred_region
        %s351 = ssub.s32 %s18, 1
        %p352 = pneg %p51
        %p353 = pneg %p48
        %s354 = sadd.s32 %s27, %s28
        %s355 = smul.u32 16, %s354
        %p356 = scmp.lt.s32.totalorder %s355, 31
        %s357 = scalar_select %p356, %s355, 31
        %s358 = smul.addr %s357, 8
        %s359 = scalar_lea.vmem %s1, %s358
        %p360 = pneg %p79
        %p361 = pneg %p76
        %s362 = sadd.s32 %s27, %s28
        %p363 = scmp.lt.s32.totalorder %s362, 1
        %s364 = scalar_select %p363, %s362, 1
        %s365 = scalar_lea.vmem %s2, %s364
        %p366 = pneg %p107
        %p367 = pneg %p104
        %s368 = sadd.s32 %s27, %s28
        %p369 = scmp.lt.s32.totalorder %s368, 1
        %s370 = scalar_select %p369, %s368, 1
        %s371 = scalar_lea.vmem %s3, %s370
        %p372 = pneg %p135
        %p373 = pneg %p132
        %s374 = sadd.s32 %s27, %s28
        %s375 = smul.u32 16, %s374
        %p376 = scmp.lt.s32.totalorder %s375, 31
        %s377 = scalar_select %p376, %s375, 31
        %s378 = smul.addr %s377, 8
        %s379 = scalar_lea.vmem %s4, %s378
        %p380 = pneg %p163
        %p381 = pneg %p160
        %p382 = pneg %p184
        %p383 = pneg %p181
        %p384 = pneg %p205
        %p385 = pneg %p202
        %p386 = pneg %p226
        %p387 = pneg %p223
        %p388 = pneg %p247
        %p389 = pneg %p244
        %p390 = pneg %p273
        %p391 = pneg %p270
        %s392 = sand.u32 %s260, 1
        %s393 = scalar_lea.sflag [#allocation3], %s392
        %s394 = sand.u32 %s260, 1
        %s395 = smul.addr %s394, 8
        %s396 = scalar_lea.vmem [#allocation2], %s395
        %s397 = sadd.s32 %s27, %s28
        %s398 = smul.u32 16, %s397
        %p399 = scmp.lt.s32.totalorder %s398, 31
        %s400 = scalar_select %p399, %s398, 31
        %s401 = smul.addr %s400, 8
        %s402 = scalar_lea.vmem %s1, %s401
        %s403 = sadd.s32 %s27, %s28
        %s404 = smul.u32 16, %s403
        %s405 = sadd.s32 %s27, %s28
        %p406 = scmp.lt.s32.totalorder %s405, 1
        %s407 = scalar_select %p406, %s405, 1
        %s408 = scalar_lea.vmem %s2, %s407
        %s409 = sadd.s32 %s27, %s28
        %s410 = sadd.s32 %s27, %s28
        %p411 = scmp.lt.s32.totalorder %s410, 1
        %s412 = scalar_select %p411, %s410, 1
        %s413 = scalar_lea.vmem %s3, %s412
        %s414 = sadd.s32 %s27, %s28
        %s415 = sadd.s32 %s27, %s28
        %s416 = smul.u32 16, %s415
        %p417 = scmp.lt.s32.totalorder %s416, 31
        %s418 = scalar_select %p417, %s416, 31
        %s419 = smul.addr %s418, 8
        %s420 = scalar_lea.vmem %s4, %s419
        %s421 = sadd.s32 %s27, %s28
        %s422 = smul.u32 16, %s421
        %p424 = scmp.eq.s32.totalorder %s28, 0
        // Predicated region
        $region57: #{tpu_custom_call.1} parent=55 // pred_check
          %p425 = pneg %p424
        $region58: #{tpu_custom_call.1} parent=55 // pred_check_branch
          %427 = sbr.rel (%p425) target = $region60
        $region59: #{tpu_custom_call.1} parent=55 // pred_region
          %428 = vst [vmem:[%s396] sm:$0xff] 0.0
        $region60: #{tpu_custom_call.1} parent=55 // pred_fallthru
          _
        %v429 = vld [vmem:[%s402] sm:$0xff]
        %v430 = vld [vmem:[%s402 + $0x8] sm:$0xff]
        %v431 = vld [vmem:[%s402 + $0x10] sm:$0xff]
        %v432 = vld [vmem:[%s402 + $0x18] sm:$0xff]
        %v433 = vld [vmem:[%s402 + $0x20] sm:$0xff]
        %v434 = vld [vmem:[%s402 + $0x28] sm:$0xff]
        %v435 = vld [vmem:[%s402 + $0x30] sm:$0xff]
        %v436 = vld [vmem:[%s402 + $0x38] sm:$0xff]
        %v437 = vld [vmem:[%s402 + $0x40] sm:$0xff]
        %v438 = vld [vmem:[%s402 + $0x48] sm:$0xff]
        %v439 = vld [vmem:[%s402 + $0x50] sm:$0xff]
        %v440 = vld [vmem:[%s402 + $0x58] sm:$0xff]
        %v441 = vld [vmem:[%s402 + $0x60] sm:$0xff]
        %v442 = vld [vmem:[%s402 + $0x68] sm:$0xff]
        %v443 = vld [vmem:[%s402 + $0x70] sm:$0xff]
        %v444 = vld [vmem:[%s402 + $0x78] sm:$0xff]
        %v445 = vpack.c.bf16 %v430, %v429
        %v446 = vpack.c.bf16 %v432, %v431
        %v447 = vpack.c.bf16 %v434, %v433
        %v448 = vpack.c.bf16 %v436, %v435
        %v449 = vpack.c.bf16 %v438, %v437
        %v450 = vpack.c.bf16 %v440, %v439
        %v451 = vpack.c.bf16 %v442, %v441
        %v452 = vpack.c.bf16 %v444, %v443
        %v453 = vld [vmem:[%s5] sm:$0xf]
        %v454 = vld [vmem:[%s5 + $0x4] sm:$0xf]
        %v455 = vld [vmem:[%s6] sm:$0x1]
        %v457 = vlaneseq
        %v458 = vshrl.u32 %v457, 7
        %v459 = vsub.s32 0, %v458
        %v460 = vrot.slane %v455, %v459
        %v464 = vunpack.c.l.b16 %v453
        %v465 = vunpack.c.l.b16 %v454
        %v466 = vpack.c.b16 %v465, %v464
        %vm468 = vcmask 130048
        %v470 = vsel %vm468, %v445, 0
        %v473 = vsel %vm468, %v446, 0
        %v476 = vsel %vm468, %v447, 0
        %v479 = vsel %vm468, %v448, 0
        %v482 = vsel %vm468, %v449, 0
        %v485 = vsel %vm468, %v450, 0
        %v488 = vsel %vm468, %v451, 0
        %v491 = vsel %vm468, %v452, 0
        %493 = vmatprep.subr.bf16.mxu0 0
        %494 = vmatpush1.bf16.msra.mxu0 %v466
        %495 = vmatprep.subr.bf16.mxu0 0
        %496 = vmatpush1.bf16.msra.mxu0 0
        %497 = vmatprep.subr.bf16.mxu0 0
        %498 = vmatpush1.bf16.msra.mxu0 0
        %499 = vmatprep.subr.bf16.mxu0 0
        %500 = vmatpush1.bf16.msra.mxu0 0
        %501 = vmatprep.subr.bf16.mxu0 0
        %502 = vmatpush1.bf16.msra.mxu0 0
        %503 = vmatprep.subr.bf16.mxu0 0
        %504 = vmatpush1.bf16.msra.mxu0 0
        %505 = vmatprep.subr.bf16.mxu0 0
        %506 = vmatpush1.bf16.msra.mxu0 0
        %507 = vmatprep.subr.bf16.mxu0 0
        %508 = vmatpush1.bf16.msra.mxu0 0
        %509 = vmatprep.subr.bf16.mxu0 0
        %510 = vmatpush1.bf16.msra.mxu0 0
        %511 = vmatprep.subr.bf16.mxu0 0
        %512 = vmatpush1.bf16.msra.mxu0 0
        %513 = vmatprep.subr.bf16.mxu0 0
        %514 = vmatpush1.bf16.msra.mxu0 0
        %515 = vmatprep.subr.bf16.mxu0 0
        %516 = vmatpush1.bf16.msra.mxu0 0
        %517 = vmatprep.subr.bf16.mxu0 0
        %518 = vmatpush1.bf16.msra.mxu0 0
        %519 = vmatprep.subr.bf16.mxu0 0
        %520 = vmatpush1.bf16.msra.mxu0 0
        %521 = vmatprep.subr.bf16.mxu0 0
        %522 = vmatpush1.bf16.msra.mxu0 0
        %523 = vmatprep.subr.bf16.mxu0 0
        %524 = vmatpush1.bf16.msra.mxu0 0
        %525 = vmatprep.mubr.bf16.mxu0 0
        %526 = vmatmul.mubr.bf16.gmra.mrb[0].mxu0 %v470
        %v527 = vpop.f32.mrb[0].mxu0
        %v528 = vadd.f32 %v460, %v527
        %v529 = vpop.f32.mrb[0].mxu0
        %v530 = vpop.f32.mrb[0].mxu0
        %v531 = vadd.f32 %v460, %v530
        %v532 = vpop.f32.mrb[0].mxu0
        %533 = vmatprep.mubr.bf16.mxu0 0
        %534 = vmatmul.mubr.bf16.gmra.mrb[0].mxu0 %v473
        %v535 = vpop.f32.mrb[0].mxu0
        %v536 = vadd.f32 %v460, %v535
        %v537 = vpop.f32.mrb[0].mxu0
        %v538 = vpop.f32.mrb[0].mxu0
        %v539 = vadd.f32 %v460, %v538
        %v540 = vpop.f32.mrb[0].mxu0
        %541 = vmatprep.mubr.bf16.mxu0 0
        %542 = vmatmul.mubr.bf16.gmra.mrb[0].mxu0 %v476
        %v543 = vpop.f32.mrb[0].mxu0
        %v544 = vadd.f32 %v460, %v543
        %v545 = vpop.f32.mrb[0].mxu0
        %v546 = vpop.f32.mrb[0].mxu0
        %v547 = vadd.f32 %v460, %v546
        %v548 = vpop.f32.mrb[0].mxu0
        %549 = vmatprep.mubr.bf16.mxu0 0
        %550 = vmatmul.mubr.bf16.gmra.mrb[0].mxu0 %v479
        %v551 = vpop.f32.mrb[0].mxu0
        %v552 = vadd.f32 %v460, %v551
        %v553 = vpop.f32.mrb[0].mxu0
        %v554 = vpop.f32.mrb[0].mxu0
        %v555 = vadd.f32 %v460, %v554
        %v556 = vpop.f32.mrb[0].mxu0
        %557 = vmatprep.mubr.bf16.mxu0 0
        %558 = vmatmul.mubr.bf16.gmra.mrb[0].mxu0 %v482
        %v559 = vpop.f32.mrb[0].mxu0
        %v560 = vadd.f32 %v460, %v559
        %v561 = vpop.f32.mrb[0].mxu0
        %v562 = vpop.f32.mrb[0].mxu0
        %v563 = vadd.f32 %v460, %v562
        %v564 = vpop.f32.mrb[0].mxu0
        %565 = vmatprep.mubr.bf16.mxu0 0
        %566 = vmatmul.mubr.bf16.gmra.mrb[0].mxu0 %v485
        %v567 = vpop.f32.mrb[0].mxu0
        %v568 = vadd.f32 %v460, %v567
        %v569 = vpop.f32.mrb[0].mxu0
        %v570 = vpop.f32.mrb[0].mxu0
        %v571 = vadd.f32 %v460, %v570
        %v572 = vpop.f32.mrb[0].mxu0
        %573 = vmatprep.mubr.bf16.mxu0 0
        %574 = vmatmul.mubr.bf16.gmra.mrb[0].mxu0 %v488
        %v575 = vpop.f32.mrb[0].mxu0
        %v576 = vadd.f32 %v460, %v575
        %v577 = vpop.f32.mrb[0].mxu0
        %v578 = vpop.f32.mrb[0].mxu0
        %v579 = vadd.f32 %v460, %v578
        %v580 = vpop.f32.mrb[0].mxu0
        %581 = vmatprep.mubr.bf16.mxu0 0
        %582 = vmatmul.mubr.bf16.gmra.mrb[0].mxu0 %v491
        %v583 = vpop.f32.mrb[0].mxu0
        %v584 = vadd.f32 %v460, %v583
        %v585 = vpop.f32.mrb[0].mxu0
        %v586 = vpop.f32.mrb[0].mxu0
        %v587 = vadd.f32 %v460, %v586
        %v588 = vpop.f32.mrb[0].mxu0
        %589 = vdwg.mxu0
        %v590 = vmax.f32 %v528, 0.0
        %v591 = vmax.f32 %v531, 0.0
        %v592 = vmax.f32 %v536, 0.0
        %v593 = vmax.f32 %v539, 0.0
        %v594 = vmax.f32 %v544, 0.0
        %v595 = vmax.f32 %v547, 0.0
        %v596 = vmax.f32 %v552, 0.0
        %v597 = vmax.f32 %v555, 0.0
        %v598 = vmax.f32 %v560, 0.0
        %v599 = vmax.f32 %v563, 0.0
        %v600 = vmax.f32 %v568, 0.0
        %v601 = vmax.f32 %v571, 0.0
        %v602 = vmax.f32 %v576, 0.0
        %v603 = vmax.f32 %v579, 0.0
        %v604 = vmax.f32 %v584, 0.0
        %v605 = vmax.f32 %v587, 0.0
        %vm606 = vcmp.ne.f32.partialorder %v528, %v528
        %vm607 = vcmp.ne.f32.partialorder %v531, %v531
        %vm608 = vcmp.ne.f32.partialorder %v536, %v536
        %vm609 = vcmp.ne.f32.partialorder %v539, %v539
        %vm610 = vcmp.ne.f32.partialorder %v544, %v544
        %vm611 = vcmp.ne.f32.partialorder %v547, %v547
        %vm612 = vcmp.ne.f32.partialorder %v552, %v552
        %vm613 = vcmp.ne.f32.partialorder %v555, %v555
        %vm614 = vcmp.ne.f32.partialorder %v560, %v560
        %vm615 = vcmp.ne.f32.partialorder %v563, %v563
        %vm616 = vcmp.ne.f32.partialorder %v568, %v568
        %vm617 = vcmp.ne.f32.partialorder %v571, %v571
        %vm618 = vcmp.ne.f32.partialorder %v576, %v576
        %vm619 = vcmp.ne.f32.partialorder %v579, %v579
        %vm620 = vcmp.ne.f32.partialorder %v584, %v584
        %vm621 = vcmp.ne.f32.partialorder %v587, %v587
        %v622 = vadd.f32 %v528, 0.0
        %v623 = vadd.f32 %v531, 0.0
        %v624 = vadd.f32 %v536, 0.0
        %v625 = vadd.f32 %v539, 0.0
        %v626 = vadd.f32 %v544, 0.0
        %v627 = vadd.f32 %v547, 0.0
        %v628 = vadd.f32 %v552, 0.0
        %v629 = vadd.f32 %v555, 0.0
        %v630 = vadd.f32 %v560, 0.0
        %v631 = vadd.f32 %v563, 0.0
        %v632 = vadd.f32 %v568, 0.0
        %v633 = vadd.f32 %v571, 0.0
        %v634 = vadd.f32 %v576, 0.0
        %v635 = vadd.f32 %v579, 0.0
        %v636 = vadd.f32 %v584, 0.0
        %v637 = vadd.f32 %v587, 0.0
        %v638 = vand.u32 2147483647, %v528
        %v639 = vand.u32 2147483647, %v531
        %v640 = vand.u32 2147483647, %v536
        %v641 = vand.u32 2147483647, %v539
        %v642 = vand.u32 2147483647, %v544
        %v643 = vand.u32 2147483647, %v547
        %v644 = vand.u32 2147483647, %v552
        %v645 = vand.u32 2147483647, %v555
        %v646 = vand.u32 2147483647, %v560
        %v647 = vand.u32 2147483647, %v563
        %v648 = vand.u32 2147483647, %v568
        %v649 = vand.u32 2147483647, %v571
        %v650 = vand.u32 2147483647, %v576
        %v651 = vand.u32 2147483647, %v579
        %v652 = vand.u32 2147483647, %v584
        %v653 = vand.u32 2147483647, %v587
        %v654 = vsub.f32 0.0, %v638
        %v655 = vsub.f32 0.0, %v639
        %v656 = vsub.f32 0.0, %v640
        %v657 = vsub.f32 0.0, %v641
        %v658 = vsub.f32 0.0, %v642
        %v659 = vsub.f32 0.0, %v643
        %v660 = vsub.f32 0.0, %v644
        %v661 = vsub.f32 0.0, %v645
        %v662 = vsub.f32 0.0, %v646
        %v663 = vsub.f32 0.0, %v647
        %v664 = vsub.f32 0.0, %v648
        %v665 = vsub.f32 0.0, %v649
        %v666 = vsub.f32 0.0, %v650
        %v667 = vsub.f32 0.0, %v651
        %v668 = vsub.f32 0.0, %v652
        %v669 = vsub.f32 0.0, %v653
        %v670 = vmul.f32 %v654, 1.442695
        %v671 = vpow.pop %v670
        %v672 = vmul.f32 %v655, 1.442695
        %v673 = vpow.pop %v672
        %v674 = vmul.f32 %v656, 1.442695
        %v675 = vpow.pop %v674
        %v676 = vmul.f32 %v657, 1.442695
        %v677 = vpow.pop %v676
        %v678 = vmul.f32 %v658, 1.442695
        %v679 = vpow.pop %v678
        %v680 = vmul.f32 %v659, 1.442695
        %v681 = vpow.pop %v680
        %v682 = vmul.f32 %v660, 1.442695
        %v683 = vpow.pop %v682
        %v684 = vmul.f32 %v661, 1.442695
        %v685 = vpow.pop %v684
        %v686 = vmul.f32 %v662, 1.442695
        %v687 = vpow.pop %v686
        %v688 = vmul.f32 %v663, 1.442695
        %v689 = vpow.pop %v688
        %v690 = vmul.f32 %v664, 1.442695
        %v691 = vpow.pop %v690
        %v692 = vmul.f32 %v665, 1.442695
        %v693 = vpow.pop %v692
        %v694 = vmul.f32 %v666, 1.442695
        %v695 = vpow.pop %v694
        %v696 = vmul.f32 %v667, 1.442695
        %v697 = vpow.pop %v696
        %v698 = vmul.f32 %v668, 1.442695
        %v699 = vpow.pop %v698
        %v700 = vmul.f32 %v669, 1.442695
        %v701 = vpow.pop %v700
        %v702 = vadd.f32 %v671, 1.0
        %v703 = vlog2.pop %v702
        %v704 = vmul.f32 %v703, 0.6931472
        %v705 = vmul.f32 -0.5, %v671
        %v706 = vadd.f32 %v705, 1.0
        %v707 = vmul.f32 %v706, %v671
        %v708 = vand.u32 2147483647, %v671
        %vm709 = vcmp.lt.f32.partialorder %v708, 0.0004427343
        %v710 = vsel %vm709, %v707, %v704
        %v711 = vadd.f32 %v673, 1.0
        %v712 = vlog2.pop %v711
        %v713 = vmul.f32 %v712, 0.6931472
        %v714 = vmul.f32 -0.5, %v673
        %v715 = vadd.f32 %v714, 1.0
        %v716 = vmul.f32 %v715, %v673
        %v717 = vand.u32 2147483647, %v673
        %vm718 = vcmp.lt.f32.partialorder %v717, 0.0004427343
        %v719 = vsel %vm718, %v716, %v713
        %v720 = vadd.f32 %v675, 1.0
        %v721 = vlog2.pop %v720
        %v722 = vmul.f32 %v721, 0.6931472
        %v723 = vmul.f32 -0.5, %v675
        %v724 = vadd.f32 %v723, 1.0
        %v725 = vmul.f32 %v724, %v675
        %v726 = vand.u32 2147483647, %v675
        %vm727 = vcmp.lt.f32.partialorder %v726, 0.0004427343
        %v728 = vsel %vm727, %v725, %v722
        %v729 = vadd.f32 %v677, 1.0
        %v730 = vlog2.pop %v729
        %v731 = vmul.f32 %v730, 0.6931472
        %v732 = vmul.f32 -0.5, %v677
        %v733 = vadd.f32 %v732, 1.0
        %v734 = vmul.f32 %v733, %v677
        %v735 = vand.u32 2147483647, %v677
        %vm736 = vcmp.lt.f32.partialorder %v735, 0.0004427343
        %v737 = vsel %vm736, %v734, %v731
        %v738 = vadd.f32 %v679, 1.0
        %v739 = vlog2.pop %v738
        %v740 = vmul.f32 %v739, 0.6931472
        %v741 = vmul.f32 -0.5, %v679
        %v742 = vadd.f32 %v741, 1.0
        %v743 = vmul.f32 %v742, %v679
        %v744 = vand.u32 2147483647, %v679
        %vm745 = vcmp.lt.f32.partialorder %v744, 0.0004427343
        %v746 = vsel %vm745, %v743, %v740
        %v747 = vadd.f32 %v681, 1.0
        %v748 = vlog2.pop %v747
        %v749 = vmul.f32 %v748, 0.6931472
        %v750 = vmul.f32 -0.5, %v681
        %v751 = vadd.f32 %v750, 1.0
        %v752 = vmul.f32 %v751, %v681
        %v753 = vand.u32 2147483647, %v681
        %vm754 = vcmp.lt.f32.partialorder %v753, 0.0004427343
        %v755 = vsel %vm754, %v752, %v749
        %v756 = vadd.f32 %v683, 1.0
        %v757 = vlog2.pop %v756
        %v758 = vmul.f32 %v757, 0.6931472
        %v759 = vmul.f32 -0.5, %v683
        %v760 = vadd.f32 %v759, 1.0
        %v761 = vmul.f32 %v760, %v683
        %v762 = vand.u32 2147483647, %v683
        %vm763 = vcmp.lt.f32.partialorder %v762, 0.0004427343
        %v764 = vsel %vm763, %v761, %v758
        %v765 = vadd.f32 %v685, 1.0
        %v766 = vlog2.pop %v765
        %v767 = vmul.f32 %v766, 0.6931472
        %v768 = vmul.f32 -0.5, %v685
        %v769 = vadd.f32 %v768, 1.0
        %v770 = vmul.f32 %v769, %v685
        %v771 = vand.u32 2147483647, %v685
        %vm772 = vcmp.lt.f32.partialorder %v771, 0.0004427343
        %v773 = vsel %vm772, %v770, %v767
        %v774 = vadd.f32 %v687, 1.0
        %v775 = vlog2.pop %v774
        %v776 = vmul.f32 %v775, 0.6931472
        %v777 = vmul.f32 -0.5, %v687
        %v778 = vadd.f32 %v777, 1.0
        %v779 = vmul.f32 %v778, %v687
        %v780 = vand.u32 2147483647, %v687
        %vm781 = vcmp.lt.f32.partialorder %v780, 0.0004427343
        %v782 = vsel %vm781, %v779, %v776
        %v783 = vadd.f32 %v689, 1.0
        %v784 = vlog2.pop %v783
        %v785 = vmul.f32 %v784, 0.6931472
        %v786 = vmul.f32 -0.5, %v689
        %v787 = vadd.f32 %v786, 1.0
        %v788 = vmul.f32 %v787, %v689
        %v789 = vand.u32 2147483647, %v689
        %vm790 = vcmp.lt.f32.partialorder %v789, 0.0004427343
        %v791 = vsel %vm790, %v788, %v785
        %v792 = vadd.f32 %v691, 1.0
        %v793 = vlog2.pop %v792
        %v794 = vmul.f32 %v793, 0.6931472
        %v795 = vmul.f32 -0.5, %v691
        %v796 = vadd.f32 %v795, 1.0
        %v797 = vmul.f32 %v796, %v691
        %v798 = vand.u32 2147483647, %v691
        %vm799 = vcmp.lt.f32.partialorder %v798, 0.0004427343
        %v800 = vsel %vm799, %v797, %v794
        %v801 = vadd.f32 %v693, 1.0
        %v802 = vlog2.pop %v801
        %v803 = vmul.f32 %v802, 0.6931472
        %v804 = vmul.f32 -0.5, %v693
        %v805 = vadd.f32 %v804, 1.0
        %v806 = vmul.f32 %v805, %v693
        %v807 = vand.u32 2147483647, %v693
        %vm808 = vcmp.lt.f32.partialorder %v807, 0.0004427343
        %v809 = vsel %vm808, %v806, %v803
        %v810 = vadd.f32 %v695, 1.0
        %v811 = vlog2.pop %v810
        %v812 = vmul.f32 %v811, 0.6931472
        %v813 = vmul.f32 -0.5, %v695
        %v814 = vadd.f32 %v813, 1.0
        %v815 = vmul.f32 %v814, %v695
        %v816 = vand.u32 2147483647, %v695
        %vm817 = vcmp.lt.f32.partialorder %v816, 0.0004427343
        %v818 = vsel %vm817, %v815, %v812
        %v819 = vadd.f32 %v697, 1.0
        %v820 = vlog2.pop %v819
        %v821 = vmul.f32 %v820, 0.6931472
        %v822 = vmul.f32 -0.5, %v697
        %v823 = vadd.f32 %v822, 1.0
        %v824 = vmul.f32 %v823, %v697
        %v825 = vand.u32 2147483647, %v697
        %vm826 = vcmp.lt.f32.partialorder %v825, 0.0004427343
        %v827 = vsel %vm826, %v824, %v821
        %v828 = vadd.f32 %v699, 1.0
        %v829 = vlog2.pop %v828
        %v830 = vmul.f32 %v829, 0.6931472
        %v831 = vmul.f32 -0.5, %v699
        %v832 = vadd.f32 %v831, 1.0
        %v833 = vmul.f32 %v832, %v699
        %v834 = vand.u32 2147483647, %v699
        %vm835 = vcmp.lt.f32.partialorder %v834, 0.0004427343
        %v836 = vsel %vm835, %v833, %v830
        %v837 = vadd.f32 %v701, 1.0
        %v838 = vlog2.pop %v837
        %v839 = vmul.f32 %v838, 0.6931472
        %v840 = vmul.f32 -0.5, %v701
        %v841 = vadd.f32 %v840, 1.0
        %v842 = vmul.f32 %v841, %v701
        %v843 = vand.u32 2147483647, %v701
        %vm844 = vcmp.lt.f32.partialorder %v843, 0.0004427343
        %v845 = vsel %vm844, %v842, %v839
        %v846 = vadd.f32 %v590, %v710
        %v847 = vadd.f32 %v591, %v719
        %v848 = vadd.f32 %v592, %v728
        %v849 = vadd.f32 %v593, %v737
        %v850 = vadd.f32 %v594, %v746
        %v851 = vadd.f32 %v595, %v755
        %v852 = vadd.f32 %v596, %v764
        %v853 = vadd.f32 %v597, %v773
        %v854 = vadd.f32 %v598, %v782
        %v855 = vadd.f32 %v599, %v791
        %v856 = vadd.f32 %v600, %v800
        %v857 = vadd.f32 %v601, %v809
        %v858 = vadd.f32 %v602, %v818
        %v859 = vadd.f32 %v603, %v827
        %v860 = vadd.f32 %v604, %v836
        %v861 = vadd.f32 %v605, %v845
        %v862 = vsel %vm606, %v622, %v846
        %v863 = vsel %vm607, %v623, %v847
        %v864 = vsel %vm608, %v624, %v848
        %v865 = vsel %vm609, %v625, %v849
        %v866 = vsel %vm610, %v626, %v850
        %v867 = vsel %vm611, %v627, %v851
        %v868 = vsel %vm612, %v628, %v852
        %v869 = vsel %vm613, %v629, %v853
        %v870 = vsel %vm614, %v630, %v854
        %v871 = vsel %vm615, %v631, %v855
        %v872 = vsel %vm616, %v632, %v856
        %v873 = vsel %vm617, %v633, %v857
        %v874 = vsel %vm618, %v634, %v858
        %v875 = vsel %vm619, %v635, %v859
        %v876 = vsel %vm620, %v636, %v860
        %v877 = vsel %vm621, %v637, %v861
        %v878 = vsub.f32 %v862, 0.6931472
        %v879 = vsub.f32 %v863, 0.6931472
        %v880 = vsub.f32 %v864, 0.6931472
        %v881 = vsub.f32 %v865, 0.6931472
        %v882 = vsub.f32 %v866, 0.6931472
        %v883 = vsub.f32 %v867, 0.6931472
        %v884 = vsub.f32 %v868, 0.6931472
        %v885 = vsub.f32 %v869, 0.6931472
        %v886 = vsub.f32 %v870, 0.6931472
        %v887 = vsub.f32 %v871, 0.6931472
        %v888 = vsub.f32 %v872, 0.6931472
        %v889 = vsub.f32 %v873, 0.6931472
        %v890 = vsub.f32 %v874, 0.6931472
        %v891 = vsub.f32 %v875, 0.6931472
        %v892 = vsub.f32 %v876, 0.6931472
        %v893 = vsub.f32 %v877, 0.6931472
        %v894 = vpack.c.bf16 %v879, %v878
        %v895 = vpack.c.bf16 %v881, %v880
        %v896 = vpack.c.bf16 %v883, %v882
        %v897 = vpack.c.bf16 %v885, %v884
        %v898 = vpack.c.bf16 %v887, %v886
        %v899 = vpack.c.bf16 %v889, %v888
        %v900 = vpack.c.bf16 %v891, %v890
        %v901 = vpack.c.bf16 %v893, %v892
        %v902 = vld [vmem:[%s7] sm:$0xf]
        %v903 = vld [vmem:[%s7 + $0x4] sm:$0xf]
        %v904 = vld [vmem:[%s7 + $0x8] sm:$0xf]
        %v905 = vld [vmem:[%s7 + $0xc] sm:$0xf]
        %v906 = vld [vmem:[%s7 + $0x10] sm:$0xf]
        %v907 = vld [vmem:[%s7 + $0x14] sm:$0xf]
        %v908 = vld [vmem:[%s7 + $0x18] sm:$0xf]
        %v909 = vld [vmem:[%s7 + $0x1c] sm:$0xf]
        %v910 = vld [vmem:[%s7 + $0x20] sm:$0xf]
        %v911 = vld [vmem:[%s7 + $0x24] sm:$0xf]
        %v912 = vld [vmem:[%s7 + $0x28] sm:$0xf]
        %v913 = vld [vmem:[%s7 + $0x2c] sm:$0xf]
        %v914 = vld [vmem:[%s7 + $0x30] sm:$0xf]
        %v915 = vld [vmem:[%s7 + $0x34] sm:$0xf]
        %v916 = vld [vmem:[%s7 + $0x38] sm:$0xf]
        %v917 = vld [vmem:[%s7 + $0x3c] sm:$0xf]
        %v918 = vld [vmem:[%s8] sm:$0x1]
        %v920 = vlaneseq
        %v921 = vshrl.u32 %v920, 7
        %v922 = vsub.s32 0, %v921
        %v923 = vrot.slane %v918, %v922
        %v941 = vunpack.c.l.b16 %v902
        %v942 = vunpack.c.l.b16 %v903
        %v943 = vunpack.c.l.b16 %v904
        %v944 = vunpack.c.l.b16 %v905
        %v945 = vunpack.c.l.b16 %v906
        %v946 = vunpack.c.l.b16 %v907
        %v947 = vunpack.c.l.b16 %v908
        %v948 = vunpack.c.l.b16 %v909
        %v949 = vunpack.c.l.b16 %v910
        %v950 = vunpack.c.l.b16 %v911
        %v951 = vunpack.c.l.b16 %v912
        %v952 = vunpack.c.l.b16 %v913
        %v953 = vunpack.c.l.b16 %v914
        %v954 = vunpack.c.l.b16 %v915
        %v955 = vunpack.c.l.b16 %v916
        %v956 = vunpack.c.l.b16 %v917
        %v957 = vpack.c.b16 %v942, %v941
        %v958 = vpack.c.b16 %v944, %v943
        %v959 = vpack.c.b16 %v946, %v945
        %v960 = vpack.c.b16 %v948, %v947
        %v961 = vpack.c.b16 %v950, %v949
        %v962 = vpack.c.b16 %v952, %v951
        %v963 = vpack.c.b16 %v954, %v953
        %v964 = vpack.c.b16 %v956, %v955
        %973 = vmatprep.subr.bf16.mxu0 0
        %974 = vmatpush1.bf16.msra.mxu0 %v957
        %975 = vmatprep.subr.bf16.mxu0 0
        %976 = vmatpush1.bf16.msra.mxu0 %v958
        %977 = vmatprep.subr.bf16.mxu0 0
        %978 = vmatpush1.bf16.msra.mxu0 %v959
        %979 = vmatprep.subr.bf16.mxu0 0
        %980 = vmatpush1.bf16.msra.mxu0 %v960
        %981 = vmatprep.subr.bf16.mxu0 0
        %982 = vmatpush1.bf16.msra.mxu0 %v961
        %983 = vmatprep.subr.bf16.mxu0 0
        %984 = vmatpush1.bf16.msra.mxu0 %v962
        %985 = vmatprep.subr.bf16.mxu0 0
        %986 = vmatpush1.bf16.msra.mxu0 %v963
        %987 = vmatprep.subr.bf16.mxu0 0
        %988 = vmatpush1.bf16.msra.mxu0 %v964
        %989 = vmatprep.subr.bf16.mxu0 0
        %990 = vmatpush1.bf16.msra.mxu0 0
        %991 = vmatprep.subr.bf16.mxu0 0
        %992 = vmatpush1.bf16.msra.mxu0 0
        %993 = vmatprep.subr.bf16.mxu0 0
        %994 = vmatpush1.bf16.msra.mxu0 0
        %995 = vmatprep.subr.bf16.mxu0 0
        %996 = vmatpush1.bf16.msra.mxu0 0
        %997 = vmatprep.subr.bf16.mxu0 0
        %998 = vmatpush1.bf16.msra.mxu0 0
        %999 = vmatprep.subr.bf16.mxu0 0
        %1000 = vmatpush1.bf16.msra.mxu0 0
        %1001 = vmatprep.subr.bf16.mxu0 0
        %1002 = vmatpush1.bf16.msra.mxu0 0
        %1003 = vmatprep.subr.bf16.mxu0 0
        %1004 = vmatpush1.bf16.msra.mxu0 0
        %1005 = vmatprep.mubr.bf16.mxu0 0
        %1006 = vmatmul.mubr.bf16.gmra.mrb[0].mxu0 %v894
        %v1007 = vpop.f32.mrb[0].mxu0
        %v1008 = vadd.f32 %v923, %v1007
        %v1009 = vpop.f32.mrb[0].mxu0
        %v1010 = vpop.f32.mrb[0].mxu0
        %v1011 = vadd.f32 %v923, %v1010
        %v1012 = vpop.f32.mrb[0].mxu0
        %1013 = vmatprep.mubr.bf16.mxu0 0
        %1014 = vmatmul.mubr.bf16.gmra.mrb[0].mxu0 %v895
        %v1015 = vpop.f32.mrb[0].mxu0
        %v1016 = vadd.f32 %v923, %v1015
        %v1017 = vpop.f32.mrb[0].mxu0
        %v1018 = vpop.f32.mrb[0].mxu0
        %v1019 = vadd.f32 %v923, %v1018
        %v1020 = vpop.f32.mrb[0].mxu0
        %1021 = vmatprep.mubr.bf16.mxu0 0
        %1022 = vmatmul.mubr.bf16.gmra.mrb[0].mxu0 %v896
        %v1023 = vpop.f32.mrb[0].mxu0
        %v1024 = vadd.f32 %v923, %v1023
        %v1025 = vpop.f32.mrb[0].mxu0
        %v1026 = vpop.f32.mrb[0].mxu0
        %v1027 = vadd.f32 %v923, %v1026
        %v1028 = vpop.f32.mrb[0].mxu0
        %1029 = vmatprep.mubr.bf16.mxu0 0
        %1030 = vmatmul.mubr.bf16.gmra.mrb[0].mxu0 %v897
        %v1031 = vpop.f32.mrb[0].mxu0
        %v1032 = vadd.f32 %v923, %v1031
        %v1033 = vpop.f32.mrb[0].mxu0
        %v1034 = vpop.f32.mrb[0].mxu0
        %v1035 = vadd.f32 %v923, %v1034
        %v1036 = vpop.f32.mrb[0].mxu0
        %1037 = vmatprep.mubr.bf16.mxu0 0
        %1038 = vmatmul.mubr.bf16.gmra.mrb[0].mxu0 %v898
        %v1039 = vpop.f32.mrb[0].mxu0
        %v1040 = vadd.f32 %v923, %v1039
        %v1041 = vpop.f32.mrb[0].mxu0
        %v1042 = vpop.f32.mrb[0].mxu0
        %v1043 = vadd.f32 %v923, %v1042
        %v1044 = vpop.f32.mrb[0].mxu0
        %1045 = vmatprep.mubr.bf16.mxu0 0
        %1046 = vmatmul.mubr.bf16.gmra.mrb[0].mxu0 %v899
        %v1047 = vpop.f32.mrb[0].mxu0
        %v1048 = vadd.f32 %v923, %v1047
        %v1049 = vpop.f32.mrb[0].mxu0
        %v1050 = vpop.f32.mrb[0].mxu0
        %v1051 = vadd.f32 %v923, %v1050
        %v1052 = vpop.f32.mrb[0].mxu0
        %1053 = vmatprep.mubr.bf16.mxu0 0
        %1054 = vmatmul.mubr.bf16.gmra.mrb[0].mxu0 %v900
        %v1055 = vpop.f32.mrb[0].mxu0
        %v1056 = vadd.f32 %v923, %v1055
        %v1057 = vpop.f32.mrb[0].mxu0
        %v1058 = vpop.f32.mrb[0].mxu0
        %v1059 = vadd.f32 %v923, %v1058
        %v1060 = vpop.f32.mrb[0].mxu0
        %1061 = vmatprep.mubr.bf16.mxu0 0
        %1062 = vmatmul.mubr.bf16.gmra.mrb[0].mxu0 %v901
        %v1063 = vpop.f32.mrb[0].mxu0
        %v1064 = vadd.f32 %v923, %v1063
        %v1065 = vpop.f32.mrb[0].mxu0
        %v1066 = vpop.f32.mrb[0].mxu0
        %v1067 = vadd.f32 %v923, %v1066
        %v1068 = vpop.f32.mrb[0].mxu0
        %1069 = vdwg.mxu0
        %v1070 = vld [vmem:[%s420] sm:$0xff]
        %v1071 = vld [vmem:[%s420 + $0x8] sm:$0xff]
        %v1072 = vld [vmem:[%s420 + $0x10] sm:$0xff]
        %v1073 = vld [vmem:[%s420 + $0x18] sm:$0xff]
        %v1074 = vld [vmem:[%s420 + $0x20] sm:$0xff]
        %v1075 = vld [vmem:[%s420 + $0x28] sm:$0xff]
        %v1076 = vld [vmem:[%s420 + $0x30] sm:$0xff]
        %v1077 = vld [vmem:[%s420 + $0x38] sm:$0xff]
        %v1078 = vld [vmem:[%s420 + $0x40] sm:$0xff]
        %v1079 = vld [vmem:[%s420 + $0x48] sm:$0xff]
        %v1080 = vld [vmem:[%s420 + $0x50] sm:$0xff]
        %v1081 = vld [vmem:[%s420 + $0x58] sm:$0xff]
        %v1082 = vld [vmem:[%s420 + $0x60] sm:$0xff]
        %v1083 = vld [vmem:[%s420 + $0x68] sm:$0xff]
        %v1084 = vld [vmem:[%s420 + $0x70] sm:$0xff]
        %v1085 = vld [vmem:[%s420 + $0x78] sm:$0xff]
        %1087 = vset.pattern.permute.xlu0 0
        %1088 = vperm.xlu0 %1087, %v1070
        %v1089 = vpop.permute.xlu0 %1088
        %1092 = vset.pattern.permute.xlu0 0
        %1093 = vperm.xlu0 %1092, %v1071
        %v1094 = vpop.permute.xlu0 %1093
        %1097 = vset.pattern.permute.xlu0 0
        %1098 = vperm.xlu0 %1097, %v1072
        %v1099 = vpop.permute.xlu0 %1098
        %1102 = vset.pattern.permute.xlu0 0
        %1103 = vperm.xlu0 %1102, %v1073
        %v1104 = vpop.permute.xlu0 %1103
        %1107 = vset.pattern.permute.xlu0 0
        %1108 = vperm.xlu0 %1107, %v1074
        %v1109 = vpop.permute.xlu0 %1108
        %1112 = vset.pattern.permute.xlu0 0
        %1113 = vperm.xlu0 %1112, %v1075
        %v1114 = vpop.permute.xlu0 %1113
        %1117 = vset.pattern.permute.xlu0 0
        %1118 = vperm.xlu0 %1117, %v1076
        %v1119 = vpop.permute.xlu0 %1118
        %1122 = vset.pattern.permute.xlu0 0
        %1123 = vperm.xlu0 %1122, %v1077
        %v1124 = vpop.permute.xlu0 %1123
        %1127 = vset.pattern.permute.xlu0 0
        %1128 = vperm.xlu0 %1127, %v1078
        %v1129 = vpop.permute.xlu0 %1128
        %1132 = vset.pattern.permute.xlu0 0
        %1133 = vperm.xlu0 %1132, %v1079
        %v1134 = vpop.permute.xlu0 %1133
        %1137 = vset.pattern.permute.xlu0 0
        %1138 = vperm.xlu0 %1137, %v1080
        %v1139 = vpop.permute.xlu0 %1138
        %1142 = vset.pattern.permute.xlu0 0
        %1143 = vperm.xlu0 %1142, %v1081
        %v1144 = vpop.permute.xlu0 %1143
        %1147 = vset.pattern.permute.xlu0 0
        %1148 = vperm.xlu0 %1147, %v1082
        %v1149 = vpop.permute.xlu0 %1148
        %1152 = vset.pattern.permute.xlu0 0
        %1153 = vperm.xlu0 %1152, %v1083
        %v1154 = vpop.permute.xlu0 %1153
        %1157 = vset.pattern.permute.xlu0 0
        %1158 = vperm.xlu0 %1157, %v1084
        %v1159 = vpop.permute.xlu0 %1158
        %1162 = vset.pattern.permute.xlu0 0
        %1163 = vperm.xlu0 %1162, %v1085
        %v1164 = vpop.permute.xlu0 %1163
        %v1166 = vmul.f32 %v1008, %v1089
        %v1167 = vmul.f32 %v1011, %v1094
        %v1168 = vmul.f32 %v1016, %v1099
        %v1169 = vmul.f32 %v1019, %v1104
        %v1170 = vmul.f32 %v1024, %v1109
        %v1171 = vmul.f32 %v1027, %v1114
        %v1172 = vmul.f32 %v1032, %v1119
        %v1173 = vmul.f32 %v1035, %v1124
        %v1174 = vmul.f32 %v1040, %v1129
        %v1175 = vmul.f32 %v1043, %v1134
        %v1176 = vmul.f32 %v1048, %v1139
        %v1177 = vmul.f32 %v1051, %v1144
        %v1178 = vmul.f32 %v1056, %v1149
        %v1179 = vmul.f32 %v1059, %v1154
        %v1180 = vmul.f32 %v1064, %v1159
        %v1181 = vmul.f32 %v1067, %v1164
        %v1182 = vlaneseq
        %v1183 = vshrl.u32 %v1182, 7
        %v1184 = vld [vmem:[%s413] sm:$0x1]
        %v1185 = vlaneseq
        %v1186 = vshrl.u32 %v1185, 7
        %v1187 = vsub.s32 0, %v1186
        %v1188 = vrot.slane %v1184, %v1187
        %vm1189 = vcmp.eq.s32.totalorder %v1183, %v1188
        %v1190 = vsel %vm1189, 1, 0
        %v1191 = vcvt.s32.f32 %v1190
        %v1192 = vpack.c.bf16 %v1191, %v1191
        %v1193 = vld [vmem:[%s408] sm:$0x1]
        %v1194 = vlaneseq
        %v1195 = vshrl.u32 %v1194, 7
        %v1196 = vsub.s32 0, %v1195
        %v1197 = vrot.slane %v1193, %v1196
        %vm1198 = vcmp.eq.s32.totalorder %v1183, %v1197
        %v1199 = vsel %vm1198, 1, 0
        %v1200 = vcvt.s32.f32 %v1199
        %v1201 = vpack.c.bf16 %v1200, %v1200
        %v1202 = vld [vmem:[%s0] sm:$0xf]
        %1203 = vxpose.xlu0.c.b16.start [1/8] %v1192, 128
        %1204 = vxpose.xlu0.c.b16.cont [2/8] 0, 128
        %1205 = vxpose.xlu0.c.b16.cont [3/8] 0, 128
        %1206 = vxpose.xlu0.c.b16.cont [4/8] 0, 128
        %1207 = vxpose.xlu0.c.b16.cont [5/8] 0, 128
        %1208 = vxpose.xlu0.c.b16.cont [6/8] 0, 128
        %1209 = vxpose.xlu0.c.b16.cont [7/8] 0, 128
        %1210 = vxpose.xlu0.c.b16.end [8/8] 0, 128
        %v1211 = vpop.trf.xlu0
        %v1212 = vpop.trf.xlu0
        %v1213 = vpop.trf.xlu0
        %v1214 = vpop.trf.xlu0
        %v1215 = vpop.trf.xlu0
        %v1216 = vpop.trf.xlu0
        %v1217 = vpop.trf.xlu0
        %v1218 = vpop.trf.xlu0
        %vm1219 = vcmask 64512
        %v1221 = vsel %vm1219, %v1211, 0
        %v1224 = vsel %vm1219, %v1212, 0
        %v1227 = vsel %vm1219, %v1213, 0
        %v1230 = vsel %vm1219, %v1214, 0
        %v1233 = vsel %vm1219, %v1215, 0
        %v1236 = vsel %vm1219, %v1216, 0
        %v1239 = vsel %vm1219, %v1217, 0
        %v1242 = vsel %vm1219, %v1218, 0
        %vm1244 = vcmask 1043456
        %v1246 = vsel %vm1244, %v1202, 0
        %1248 = vmatprep.subr.bf16.mxu0 0
        %1249 = vmatpush1.bf16.msra.mxu0 %v1246
        %1250 = vmatprep.subr.bf16.mxu0 0
        %1251 = vmatpush1.bf16.msra.mxu0 0
        %1252 = vmatprep.subr.bf16.mxu0 0
        %1253 = vmatpush1.bf16.msra.mxu0 0
        %1254 = vmatprep.subr.bf16.mxu0 0
        %1255 = vmatpush1.bf16.msra.mxu0 0
        %1256 = vmatprep.subr.bf16.mxu0 0
        %1257 = vmatpush1.bf16.msra.mxu0 0
        %1258 = vmatprep.subr.bf16.mxu0 0
        %1259 = vmatpush1.bf16.msra.mxu0 0
        %1260 = vmatprep.subr.bf16.mxu0 0
        %1261 = vmatpush1.bf16.msra.mxu0 0
        %1262 = vmatprep.subr.bf16.mxu0 0
        %1263 = vmatpush1.bf16.msra.mxu0 0
        %1264 = vmatprep.subr.bf16.mxu0 0
        %1265 = vmatpush1.bf16.msra.mxu0 0
        %1266 = vmatprep.subr.bf16.mxu0 0
        %1267 = vmatpush1.bf16.msra.mxu0 0
        %1268 = vmatprep.subr.bf16.mxu0 0
        %1269 = vmatpush1.bf16.msra.mxu0 0
        %1270 = vmatprep.subr.bf16.mxu0 0
        %1271 = vmatpush1.bf16.msra.mxu0 0
        %1272 = vmatprep.subr.bf16.mxu0 0
        %1273 = vmatpush1.bf16.msra.mxu0 0
        %1274 = vmatprep.subr.bf16.mxu0 0
        %1275 = vmatpush1.bf16.msra.mxu0 0
        %1276 = vmatprep.subr.bf16.mxu0 0
        %1277 = vmatpush1.bf16.msra.mxu0 0
        %1278 = vmatprep.subr.bf16.mxu0 0
        %1279 = vmatpush1.bf16.msra.mxu0 0
        %1280 = vmatprep.mubr.bf16.mxu0 0
        %1281 = vmatmul.mubr.bf16.gmra.mrb[0].mxu0 %v1221
        %v1282 = vpop.f32.mrb[0].mxu0
        %v1283 = vadd.f32 0.0, %v1282
        %v1284 = vpop.f32.mrb[0].mxu0
        %v1285 = vpop.f32.mrb[0].mxu0
        %v1286 = vadd.f32 0.0, %v1285
        %v1287 = vpop.f32.mrb[0].mxu0
        %1288 = vmatprep.mubr.bf16.mxu0 0
        %1289 = vmatmul.mubr.bf16.gmra.mrb[0].mxu0 %v1224
        %v1290 = vpop.f32.mrb[0].mxu0
        %v1291 = vadd.f32 0.0, %v1290
        %v1292 = vpop.f32.mrb[0].mxu0
        %v1293 = vpop.f32.mrb[0].mxu0
        %v1294 = vadd.f32 0.0, %v1293
        %v1295 = vpop.f32.mrb[0].mxu0
        %1296 = vmatprep.mubr.bf16.mxu0 0
        %1297 = vmatmul.mubr.bf16.gmra.mrb[0].mxu0 %v1227
        %v1298 = vpop.f32.mrb[0].mxu0
        %v1299 = vadd.f32 0.0, %v1298
        %v1300 = vpop.f32.mrb[0].mxu0
        %v1301 = vpop.f32.mrb[0].mxu0
        %v1302 = vadd.f32 0.0, %v1301
        %v1303 = vpop.f32.mrb[0].mxu0
        %1304 = vmatprep.mubr.bf16.mxu0 0
        %1305 = vmatmul.mubr.bf16.gmra.mrb[0].mxu0 %v1230
        %v1306 = vpop.f32.mrb[0].mxu0
        %v1307 = vadd.f32 0.0, %v1306
        %v1308 = vpop.f32.mrb[0].mxu0
        %v1309 = vpop.f32.mrb[0].mxu0
        %v1310 = vadd.f32 0.0, %v1309
        %v1311 = vpop.f32.mrb[0].mxu0
        %1312 = vmatprep.mubr.bf16.mxu0 0
        %1313 = vmatmul.mubr.bf16.gmra.mrb[0].mxu0 %v1233
        %v1314 = vpop.f32.mrb[0].mxu0
        %v1315 = vadd.f32 0.0, %v1314
        %v1316 = vpop.f32.mrb[0].mxu0
        %v1317 = vpop.f32.mrb[0].mxu0
        %v1318 = vadd.f32 0.0, %v1317
        %v1319 = vpop.f32.mrb[0].mxu0
        %1320 = vmatprep.mubr.bf16.mxu0 0
        %1321 = vmatmul.mubr.bf16.gmra.mrb[0].mxu0 %v1236
        %v1322 = vpop.f32.mrb[0].mxu0
        %v1323 = vadd.f32 0.0, %v1322
        %v1324 = vpop.f32.mrb[0].mxu0
        %v1325 = vpop.f32.mrb[0].mxu0
        %v1326 = vadd.f32 0.0, %v1325
        %v1327 = vpop.f32.mrb[0].mxu0
        %1328 = vmatprep.mubr.bf16.mxu0 0
        %1329 = vmatmul.mubr.bf16.gmra.mrb[0].mxu0 %v1239
        %v1330 = vpop.f32.mrb[0].mxu0
        %v1331 = vadd.f32 0.0, %v1330
        %v1332 = vpop.f32.mrb[0].mxu0
        %v1333 = vpop.f32.mrb[0].mxu0
        %v1334 = vadd.f32 0.0, %v1333
        %v1335 = vpop.f32.mrb[0].mxu0
        %1336 = vmatprep.mubr.bf16.mxu0 0
        %1337 = vmatmul.mubr.bf16.gmra.mrb[0].mxu0 %v1242
        %v1338 = vpop.f32.mrb[0].mxu0
        %v1339 = vadd.f32 0.0, %v1338
        %v1340 = vpop.f32.mrb[0].mxu0
        %v1341 = vpop.f32.mrb[0].mxu0
        %v1342 = vadd.f32 0.0, %v1341
        %v1343 = vpop.f32.mrb[0].mxu0
        %1344 = vdwg.mxu0
        %v1345 = vmul.f32 %v1283, %v1166
        %v1346 = vmul.f32 %v1286, %v1167
        %v1347 = vmul.f32 %v1291, %v1168
        %v1348 = vmul.f32 %v1294, %v1169
        %v1349 = vmul.f32 %v1299, %v1170
        %v1350 = vmul.f32 %v1302, %v1171
        %v1351 = vmul.f32 %v1307, %v1172
        %v1352 = vmul.f32 %v1310, %v1173
        %v1353 = vmul.f32 %v1315, %v1174
        %v1354 = vmul.f32 %v1318, %v1175
        %v1355 = vmul.f32 %v1323, %v1176
        %v1356 = vmul.f32 %v1326, %v1177
        %v1357 = vmul.f32 %v1331, %v1178
        %v1358 = vmul.f32 %v1334, %v1179
        %v1359 = vmul.f32 %v1339, %v1180
        %v1360 = vmul.f32 %v1342, %v1181
        %v1361 = vpack.c.bf16 %v1346, %v1345
        %v1362 = vpack.c.bf16 %v1348, %v1347
        %v1363 = vpack.c.bf16 %v1350, %v1349
        %v1364 = vpack.c.bf16 %v1352, %v1351
        %v1365 = vpack.c.bf16 %v1354, %v1353
        %v1366 = vpack.c.bf16 %v1356, %v1355
        %v1367 = vpack.c.bf16 %v1358, %v1357
        %v1368 = vpack.c.bf16 %v1360, %v1359
        %v1369 = vld [vmem:[%s396] sm:$0xff]
        %1370 = vmatprep.subr.bf16.mxu0 0
        %1371 = vmatpush1.bf16.msra.mxu0 %v1361
        %1372 = vmatprep.subr.bf16.mxu0 0
        %1373 = vmatpush1.bf16.msra.mxu0 %v1362
        %1374 = vmatprep.subr.bf16.mxu0 0
        %1375 = vmatpush1.bf16.msra.mxu0 %v1363
        %1376 = vmatprep.subr.bf16.mxu0 0
        %1377 = vmatpush1.bf16.msra.mxu0 %v1364
        %1378 = vmatprep.subr.bf16.mxu0 0
        %1379 = vmatpush1.bf16.msra.mxu0 %v1365
        %1380 = vmatprep.subr.bf16.mxu0 0
        %1381 = vmatpush1.bf16.msra.mxu0 %v1366
        %1382 = vmatprep.subr.bf16.mxu0 0
        %1383 = vmatpush1.bf16.msra.mxu0 %v1367
        %1384 = vmatprep.subr.bf16.mxu0 0
        %1385 = vmatpush1.bf16.msra.mxu0 %v1368
        %1386 = vmatprep.subr.bf16.mxu0 0
        %1387 = vmatpush1.bf16.msra.mxu0 0
        %1388 = vmatprep.subr.bf16.mxu0 0
        %1389 = vmatpush1.bf16.msra.mxu0 0
        %1390 = vmatprep.subr.bf16.mxu0 0
        %1391 = vmatpush1.bf16.msra.mxu0 0
        %1392 = vmatprep.subr.bf16.mxu0 0
        %1393 = vmatpush1.bf16.msra.mxu0 0
        %1394 = vmatprep.subr.bf16.mxu0 0
        %1395 = vmatpush1.bf16.msra.mxu0 0
        %1396 = vmatprep.subr.bf16.mxu0 0
        %1397 = vmatpush1.bf16.msra.mxu0 0
        %1398 = vmatprep.subr.bf16.mxu0 0
        %1399 = vmatpush1.bf16.msra.mxu0 0
        %1400 = vmatprep.subr.bf16.mxu0 0
        %1401 = vmatpush1.bf16.msra.mxu0 0
        %1402 = vmatprep.mubr.bf16.mxu0 0
        %1403 = vmatmul.mubr.bf16.gmra.mrb[0].mxu0 %v1201
        %v1404 = vpop.f32.mrb[0].mxu0
        %v1405 = vadd.f32 0.0, %v1404
        %v1406 = vpop.f32.mrb[0].mxu0
        %v1407 = vpop.f32.mrb[0].mxu0
        %v1408 = vpop.f32.mrb[0].mxu0
        %1409 = vdwg.mxu0
        %v1410 = vadd.f32 %v1369, %v1405
        %1411 = vst [vmem:[%s396] sm:$0xff] %v1410
        %s1412 = sand.u32 %s260, 1
        %s1413 = scalar_lea.sflag [#allocation3], %s1412
        %s1414 = sand.u32 %s260, 1
        %s1415 = smul.addr %s1414, 8
        %s1416 = scalar_lea.vmem [#allocation2], %s1415
        // Predicated region
        $region61: #{tpu_custom_call.1} parent=55 // pred_check
          %p1417 = pneg %p270
        $region62: #{tpu_custom_call.1} parent=55 // pred_check_branch
          %1419 = sbr.rel (%p1417) target = $region64
        $region63: #{tpu_custom_call.1} parent=55 // pred_region
          %s1421 = ssub.s32 128, 128
          %1422 = vsyncadd %s1413, %s1421
          %s1423 = smul.addr %s27, 128
          %s1424 = scalar_lea.hbm %s9, %s1423
          %s1426 = sshll.u32 %s1416, 4
          %s1427 = int_to_ptr.vmem [resolvable:$true] %s1426
          %1429 = dma.vmem_to_hbm [thread:$0]  %s1427, 128, %s1424, %s1413
        $region64: #{tpu_custom_call.1} parent=55 // pred_fallthru
          _
      $region56: #{tpu_custom_call.1} parent=5 // pred_fallthru
        _
      %p1430 = scmp.le.s32.totalorder 2, %s18
      // Predicated region
      $region65: #{tpu_custom_call.1} parent=5 // pred_check
        %p1431 = pneg %p1430
      $region66: #{tpu_custom_call.1} parent=5 // pred_check_branch
        %1433 = sbr.rel (%p1431) target = $region68
      $region67: #{tpu_custom_call.1} parent=5 // pred_region
        %s1434 = ssub.s32 %s18, 2
        // Predicated region
        $region69: #{tpu_custom_call.1} parent=67 // pred_check
          %p1435 = pneg %p276
        $region70: #{tpu_custom_call.1} parent=67 // pred_check_branch
          %1437 = sbr.rel (%p1435) target = $region72
        $region71: #{tpu_custom_call.1} parent=67 // pred_region
          %s1438 = sand.u32 %s261, 1
          %s1439 = scalar_lea.sflag [#allocation3], %s1438
          %s1440 = sand.u32 %s261, 1
          %s1441 = smul.addr %s1440, 8
          %s1442 = scalar_lea.vmem [#allocation2], %s1441
          %1443 = dma.done %s1439, 128
        $region72: #{tpu_custom_call.1} parent=67 // pred_fallthru
          _
      $region68: #{tpu_custom_call.1} parent=5 // pred_fallthru
        _
    $region6: #{tpu_custom_call.1} parent=1 // loop_footer
      %s22 = sadd.s32 1, %s18
    $region7: #{tpu_custom_call.1} parent=1 // loop_footer_branch
      %17 = sbr.rel target = $region3
    $region8: #{tpu_custom_call.1} parent=1 // loop_exit
      _
    %1444 = vsyncpa [#allocation3], 1
    %s1445 = scalar_lea.sflag [#allocation3], 1
    %1446 = vsyncpa %s1445, 1

// kernel: tpu_custom_call.1
$region0: #{tpu_custom_call.1}
  #allocation0 [shape = 'u32[]', space=smem, size = 0x4, offset = 0x4, fixed_abs, tag = 'smem constant byte address 0x4 - core index']
  #allocation1 [shape = 'u32[144,128]{1,0:T(1,128)}', space=vmem, size = 0x12000, scoped, tag = 'internal scratch']
  %s0 = inlined_call_operand.vmem [shape: bf16[8,128], index: 0, kind: input, shape index: {}]
  %s1 = inlined_call_operand.vmem [shape: f32[256,16], index: 1, kind: input, shape index: {}]
  %s2 = inlined_call_operand.vmem [shape: s32[1,256], index: 2, kind: input, shape index: {}]
  %s3 = inlined_call_operand.vmem [shape: s32[1,256], index: 3, kind: input, shape index: {}]
  %s4 = inlined_call_operand.vmem [shape: f32[256,1], index: 4, kind: input, shape index: {}]
  %s5 = inlined_call_operand.vmem [shape: bf16[16,128], index: 5, kind: input, shape index: {}]
  %s6 = inlined_call_operand.vmem [shape: f32[1,128], index: 6, kind: input, shape index: {}]
  %s7 = inlined_call_operand.vmem [shape: bf16[128,128], index: 7, kind: input, shape index: {}]
  %s8 = inlined_call_operand.vmem [shape: f32[1,128], index: 8, kind: input, shape index: {}]
  %s9 = inlined_call_operand.hbm [shape: f32[2,8,128], index: 9, kind: output, shape index: {}]
  %s10 = sld [smem:[#allocation0]]
  $region73: #{tpu_custom_call.1} parent=0
    _
  %s12 = ssub.s32 1, %s10
  %s13 = scalar_select 0, %s12, %s10
  $region1: #{tpu_custom_call.1} parent=0
    #allocation2 [shape = 'u8[8192]{0}', space=vmem, size = 0x2000, scoped, tag = 'output window, operand 0']
    #allocation3 [shape = 's32[2]{0}', space=sflag, size = 0x8, scoped, tag = 'scoped memory for tpu_custom_call.1']
    %14 = vsyncpa [#allocation3], 0
    %s15 = scalar_lea.sflag [#allocation3], 1
    %16 = vsyncpa %s15, 0
    loop: start=0, step=1, limit=4
    $region2: #{tpu_custom_call.1} parent=1 // loop_pre_header
      _
    $region3: #{tpu_custom_call.1} parent=1 // loop_header
      %s18 = sphi 0, %s22
      %p19 = scmp.ge.s32.totalorder %s18, 4
      %s25 = sphi 0, %s37
      %s26 = sphi 0, %s33
      %s27 = sphi 0, %s25
      %s28 = sphi 0, %s26
      %s29 = sphi 0, %s27
      %s30 = sphi 0, %s28
      %s38 = sphi 0, %s38
      %s40 = sphi 0, %s38
      %s41 = sphi 0, %s40
      %s55 = sphi 0, %s41
      %s63 = sphi 0, %s65
      %s66 = sphi 0, %s63
      %s67 = sphi 0, %s66
      %s83 = sphi 0, %s67
      %s91 = sphi 0, %s93
      %s94 = sphi 0, %s91
      %s95 = sphi 0, %s94
      %s111 = sphi 0, %s95
      %s119 = sphi 0, %s121
      %s122 = sphi 0, %s119
      %s123 = sphi 0, %s122
      %s139 = sphi 0, %s123
      %s147 = sphi 0, %s149
      %s150 = sphi 0, %s147
      %s151 = sphi 0, %s150
      %s167 = sphi 0, %s151
      %s171 = sphi 0, %s171
      %s173 = sphi 0, %s171
      %s174 = sphi 0, %s173
      %s188 = sphi 0, %s174
      %s192 = sphi 0, %s192
      %s194 = sphi 0, %s192
      %s195 = sphi 0, %s194
      %s209 = sphi 0, %s195
      %s213 = sphi 0, %s213
      %s215 = sphi 0, %s213
      %s216 = sphi 0, %s215
      %s230 = sphi 0, %s216
      %s234 = sphi 0, %s234
      %s236 = sphi 0, %s234
      %s237 = sphi 0, %s236
      %s251 = sphi 0, %s237
      %s257 = sphi 0, %s259
      %s260 = sphi 0, %s257
      %s261 = sphi 0, %s260
      %s277 = sphi 0, %s261
    $region4: #{tpu_custom_call.1} parent=1 // loop_header_branch
      %21 = sbr.rel (%p19) target = $region8
    $region5: #{tpu_custom_call.1} parent=1 // loop_body
      %s23 = ssub.s32 %s18, 1
      %s24 = ssub.s32 %s18, 2
      %s31 = sadd.s32 1, %s26
      %p32 = scmp.ge.s32.totalorder %s31, 1
      %s33 = scalar_select %p32, 0, %s31
      %s34 = sadd.s32 1, %s25
      %s35 = scalar_select %p32, %s34, %s25
      %p36 = scmp.ge.s32.totalorder %s35, 2
      %s37 = scalar_select %p36, 0, %s35
      %s39 = sadd.s32 %s38, 1
      %p42 = scmp.eq.s32.totalorder %s18, 1
      %p43 = scmp.ne.s32.totalorder %s38, %s40
      %p44 = scmp.eq.s32.totalorder %s18, 0
      %p45 = por %p43, %p44
      %p46 = scmp.ne.s32.totalorder %s38, %s40
      %p47 = scmp.eq.s32.totalorder %s23, 1
      %p48 = por %p46, %p47
      %p49 = scmp.ne.s32.totalorder %s40, %s41
      %p50 = scmp.eq.s32.totalorder %s23, 0
      %p51 = por %p49, %p50
      %p52 = scmp.ne.s32.totalorder %s40, %s41
      %p53 = scmp.eq.s32.totalorder %s24, 1
      %p54 = por %p52, %p53
      %p56 = scmp.ne.s32.totalorder %s41, %s55
      %p57 = scmp.eq.s32.totalorder %s24, 0
      %p58 = por %p56, %p57
      %s59 = sadd.s32 %s25, %s26
      %s60 = sadd.s32 %s37, %s33
      %s61 = ssub.s32 %s59, %s60
      %p62 = scmp.eq.s32.totalorder %s61, 0
      %s64 = sadd.s32 %s63, 1
      %s65 = scalar_select %p62, %s63, %s64
      %p68 = pneg %p62
      %p69 = scmp.eq.s32.totalorder %s18, 1
      %p70 = por %p68, %p69
      %p71 = scmp.ne.s32.totalorder %s63, %s66
      %p72 = scmp.eq.s32.totalorder %s18, 0
      %p73 = por %p71, %p72
      %p74 = scmp.ne.s32.totalorder %s63, %s66
      %p75 = scmp.eq.s32.totalorder %s23, 1
      %p76 = por %p74, %p75
      %p77 = scmp.ne.s32.totalorder %s66, %s67
      %p78 = scmp.eq.s32.totalorder %s23, 0
      %p79 = por %p77, %p78
      %p80 = scmp.ne.s32.totalorder %s66, %s67
      %p81 = scmp.eq.s32.totalorder %s24, 1
      %p82 = por %p80, %p81
      %p84 = scmp.ne.s32.totalorder %s67, %s83
      %p85 = scmp.eq.s32.totalorder %s24, 0
      %p86 = por %p84, %p85
      %s87 = sadd.s32 %s25, %s26
      %s88 = sadd.s32 %s37, %s33
      %s89 = ssub.s32 %s87, %s88
      %p90 = scmp.eq.s32.totalorder %s89, 0
      %s92 = sadd.s32 %s91, 1
      %s93 = scalar_select %p90, %s91, %s92
      %p96 = pneg %p90
      %p97 = scmp.eq.s32.totalorder %s18, 1
      %p98 = por %p96, %p97
      %p99 = scmp.ne.s32.totalorder %s91, %s94
      %p100 = scmp.eq.s32.totalorder %s18, 0
      %p101 = por %p99, %p100
      %p102 = scmp.ne.s32.totalorder %s91, %s94
      %p103 = scmp.eq.s32.totalorder %s23, 1
      %p104 = por %p102, %p103
      %p105 = scmp.ne.s32.totalorder %s94, %s95
      %p106 = scmp.eq.s32.totalorder %s23, 0
      %p107 = por %p105, %p106
      %p108 = scmp.ne.s32.totalorder %s94, %s95
      %p109 = scmp.eq.s32.totalorder %s24, 1
      %p110 = por %p108, %p109
      %p112 = scmp.ne.s32.totalorder %s95, %s111
      %p113 = scmp.eq.s32.totalorder %s24, 0
      %p114 = por %p112, %p113
      %s115 = sadd.s32 %s25, %s26
      %s116 = sadd.s32 %s37, %s33
      %s117 = ssub.s32 %s115, %s116
      %p118 = scmp.eq.s32.totalorder %s117, 0
      %s120 = sadd.s32 %s119, 1
      %s121 = scalar_select %p118, %s119, %s120
      %p124 = pneg %p118
      %p125 = scmp.eq.s32.totalorder %s18, 1
      %p126 = por %p124, %p125
      %p127 = scmp.ne.s32.totalorder %s119, %s122
      %p128 = scmp.eq.s32.totalorder %s18, 0
      %p129 = por %p127, %p128
      %p130 = scmp.ne.s32.totalorder %s119, %s122
      %p131 = scmp.eq.s32.totalorder %s23, 1
      %p132 = por %p130, %p131
      %p133 = scmp.ne.s32.totalorder %s122, %s123
      %p134 = scmp.eq.s32.totalorder %s23, 0
      %p135 = por %p133, %p134
      %p136 = scmp.ne.s32.totalorder %s122, %s123
      %p137 = scmp.eq.s32.totalorder %s24, 1
      %p138 = por %p136, %p137
      %p140 = scmp.ne.s32.totalorder %s123, %s139
      %p141 = scmp.eq.s32.totalorder %s24, 0
      %p142 = por %p140, %p141
      %s143 = sadd.s32 %s25, %s26
      %s144 = sadd.s32 %s37, %s33
      %s145 = ssub.s32 %s143, %s144
      %p146 = scmp.eq.s32.totalorder %s145, 0
      %s148 = sadd.s32 %s147, 1
      %s149 = scalar_select %p146, %s147, %s148
      %p152 = pneg %p146
      %p153 = scmp.eq.s32.totalorder %s18, 1
      %p154 = por %p152, %p153
      %p155 = scmp.ne.s32.totalorder %s147, %s150
      %p156 = scmp.eq.s32.totalorder %s18, 0
      %p157 = por %p155, %p156
      %p158 = scmp.ne.s32.totalorder %s147, %s150
      %p159 = scmp.eq.s32.totalorder %s23, 1
      %p160 = por %p158, %p159
      %p161 = scmp.ne.s32.totalorder %s150, %s151
      %p162 = scmp.eq.s32.totalorder %s23, 0
      %p163 = por %p161, %p162
      %p164 = scmp.ne.s32.totalorder %s150, %s151
      %p165 = scmp.eq.s32.totalorder %s24, 1
      %p166 = por %p164, %p165
      %p168 = scmp.ne.s32.totalorder %s151, %s167
      %p169 = scmp.eq.s32.totalorder %s24, 0
      %p170 = por %p168, %p169
      %s172 = sadd.s32 %s171, 1
      %p175 = scmp.eq.s32.totalorder %s18, 1
      %p176 = scmp.ne.s32.totalorder %s171, %s173
      %p177 = scmp.eq.s32.totalorder %s18, 0
      %p178 = por %p176, %p177
      %p179 = scmp.ne.s32.totalorder %s171, %s173
      %p180 = scmp.eq.s32.totalorder %s23, 1
      %p181 = por %p179, %p180
      %p182 = scmp.ne.s32.totalorder %s173, %s174
      %p183 = scmp.eq.s32.totalorder %s23, 0
      %p184 = por %p182, %p183
      %p185 = scmp.ne.s32.totalorder %s173, %s174
      %p186 = scmp.eq.s32.totalorder %s24, 1
      %p187 = por %p185, %p186
      %p189 = scmp.ne.s32.totalorder %s174, %s188
      %p190 = scmp.eq.s32.totalorder %s24, 0
      %p191 = por %p189, %p190
      %s193 = sadd.s32 %s192, 1
      %p196 = scmp.eq.s32.totalorder %s18, 1
      %p197 = scmp.ne.s32.totalorder %s192, %s194
      %p198 = scmp.eq.s32.totalorder %s18, 0
      %p199 = por %p197, %p198
      %p200 = scmp.ne.s32.totalorder %s192, %s194
      %p201 = scmp.eq.s32.totalorder %s23, 1
      %p202 = por %p200, %p201
      %p203 = scmp.ne.s32.totalorder %s194, %s195
      %p204 = scmp.eq.s32.totalorder %s23, 0
      %p205 = por %p203, %p204
      %p206 = scmp.ne.s32.totalorder %s194, %s195
      %p207 = scmp.eq.s32.totalorder %s24, 1
      %p208 = por %p206, %p207
      %p210 = scmp.ne.s32.totalorder %s195, %s209
      %p211 = scmp.eq.s32.totalorder %s24, 0
      %p212 = por %p210, %p211
      %s214 = sadd.s32 %s213, 1
      %p217 = scmp.eq.s32.totalorder %s18, 1
      %p218 = scmp.ne.s32.totalorder %s213, %s215
      %p219 = scmp.eq.s32.totalorder %s18, 0
      %p220 = por %p218, %p219
      %p221 = scmp.ne.s32.totalorder %s213, %s215
      %p222 = scmp.eq.s32.totalorder %s23, 1
      %p223 = por %p221, %p222
      %p224 = scmp.ne.s32.totalorder %s215, %s216
      %p225 = scmp.eq.s32.totalorder %s23, 0
      %p226 = por %p224, %p225
      %p227 = scmp.ne.s32.totalorder %s215, %s216
      %p228 = scmp.eq.s32.totalorder %s24, 1
      %p229 = por %p227, %p228
      %p231 = scmp.ne.s32.totalorder %s216, %s230
      %p232 = scmp.eq.s32.totalorder %s24, 0
      %p233 = por %p231, %p232
      %s235 = sadd.s32 %s234, 1
      %p238 = scmp.eq.s32.totalorder %s18, 1
      %p239 = scmp.ne.s32.totalorder %s234, %s236
      %p240 = scmp.eq.s32.totalorder %s18, 0
      %p241 = por %p239, %p240
      %p242 = scmp.ne.s32.totalorder %s234, %s236
      %p243 = scmp.eq.s32.totalorder %s23, 1
      %p244 = por %p242, %p243
      %p245 = scmp.ne.s32.totalorder %s236, %s237
      %p246 = scmp.eq.s32.totalorder %s23, 0
      %p247 = por %p245, %p246
      %p248 = scmp.ne.s32.totalorder %s236, %s237
      %p249 = scmp.eq.s32.totalorder %s24, 1
      %p250 = por %p248, %p249
      %p252 = scmp.ne.s32.totalorder %s237, %s251
      %p253 = scmp.eq.s32.totalorder %s24, 0
      %p254 = por %p252, %p253
      %s255 = ssub.s32 %s25, %s37
      %p256 = scmp.eq.s32.totalorder %s255, 0
      %s258 = sadd.s32 %s257, 1
      %s259 = scalar_select %p256, %s257, %s258
      %p262 = pneg %p256
      %p263 = scmp.eq.s32.totalorder %s18, 1
      %p264 = por %p262, %p263
      %p265 = scmp.ne.s32.totalorder %s257, %s260
      %p266 = scmp.eq.s32.totalorder %s18, 0
      %p267 = por %p265, %p266
      %p268 = scmp.ne.s32.totalorder %s257, %s260
      %p269 = scmp.eq.s32.totalorder %s23, 1
      %p270 = por %p268, %p269
      %p271 = scmp.ne.s32.totalorder %s260, %s261
      %p272 = scmp.eq.s32.totalorder %s23, 0
      %p273 = por %p271, %p272
      %p274 = scmp.ne.s32.totalorder %s260, %s261
      %p275 = scmp.eq.s32.totalorder %s24, 1
      %p276 = por %p274, %p275
      %p278 = scmp.ne.s32.totalorder %s261, %s277
      %p279 = scmp.eq.s32.totalorder %s24, 0
      %p280 = por %p278, %p279
      %p281 = scmp.le.s32.totalorder 1, %s18
      %p282 = scmp.lt.s32.totalorder %s18, 3
      %p283 = pnand %p281, %p282
      %p284 = pneg %p283
      // Predicated region
      $region9: #{tpu_custom_call.1} parent=5 // pred_check
        _
      $region10: #{tpu_custom_call.1} parent=5 // pred_check_branch
        %286 = sbr.rel (%p283) target = $region12
      $region11: #{tpu_custom_call.1} parent=5 // pred_region
        %s287 = ssub.s32 %s18, 1
        // Predicated region
        $region13: #{tpu_custom_call.1} parent=11 // pred_check
          %p288 = pneg %p51
        $region14: #{tpu_custom_call.1} parent=11 // pred_check_branch
          %290 = sbr.rel (%p288) target = $region16
        $region15: #{tpu_custom_call.1} parent=11 // pred_region
          _
        $region16: #{tpu_custom_call.1} parent=11 // pred_fallthru
          _
        // Predicated region
        $region17: #{tpu_custom_call.1} parent=11 // pred_check
          %p291 = pneg %p184
        $region18: #{tpu_custom_call.1} parent=11 // pred_check_branch
          %293 = sbr.rel (%p291) target = $region20
        $region19: #{tpu_custom_call.1} parent=11 // pred_region
          _
        $region20: #{tpu_custom_call.1} parent=11 // pred_fallthru
          _
        // Predicated region
        $region21: #{tpu_custom_call.1} parent=11 // pred_check
          %p294 = pneg %p205
        $region22: #{tpu_custom_call.1} parent=11 // pred_check_branch
          %296 = sbr.rel (%p294) target = $region24
        $region23: #{tpu_custom_call.1} parent=11 // pred_region
          _
        $region24: #{tpu_custom_call.1} parent=11 // pred_fallthru
          _
        // Predicated region
        $region25: #{tpu_custom_call.1} parent=11 // pred_check
          %p297 = pneg %p226
        $region26: #{tpu_custom_call.1} parent=11 // pred_check_branch
          %299 = sbr.rel (%p297) target = $region28
        $region27: #{tpu_custom_call.1} parent=11 // pred_region
          _
        $region28: #{tpu_custom_call.1} parent=11 // pred_fallthru
          _
        // Predicated region
        $region29: #{tpu_custom_call.1} parent=11 // pred_check
          %p300 = pneg %p247
        $region30: #{tpu_custom_call.1} parent=11 // pred_check_branch
          %302 = sbr.rel (%p300) target = $region32
        $region31: #{tpu_custom_call.1} parent=11 // pred_region
          _
        $region32: #{tpu_custom_call.1} parent=11 // pred_fallthru
          _
      $region12: #{tpu_custom_call.1} parent=5 // pred_fallthru
        _
      %p303 = scmp.lt.s32.totalorder %s18, 2
      // Predicated region
      $region33: #{tpu_custom_call.1} parent=5 // pred_check
        %p304 = pneg %p303
      $region34: #{tpu_custom_call.1} parent=5 // pred_check_branch
        %306 = sbr.rel (%p304) target = $region36
      $region35: #{tpu_custom_call.1} parent=5 // pred_region
        // Predicated region
        $region37: #{tpu_custom_call.1} parent=35 // pred_check
          %p307 = pneg %p73
        $region38: #{tpu_custom_call.1} parent=35 // pred_check_branch
          %309 = sbr.rel (%p307) target = $region40
        $region39: #{tpu_custom_call.1} parent=35 // pred_region
          %s310 = sadd.s32 %s25, %s26
          %s311 = smul.u32 16, %s310
          %p312 = scmp.lt.s32.totalorder %s311, 31
          %s313 = scalar_select %p312, %s311, 31
          %s314 = smul.addr %s313, 8
          %s315 = scalar_lea.vmem %s1, %s314
          %s316 = sadd.s32 %s25, %s26
          %s317 = smul.u32 16, %s316
        $region40: #{tpu_custom_call.1} parent=35 // pred_fallthru
          _
        // Predicated region
        $region41: #{tpu_custom_call.1} parent=35 // pred_check
          %p318 = pneg %p101
        $region42: #{tpu_custom_call.1} parent=35 // pred_check_branch
          %320 = sbr.rel (%p318) target = $region44
        $region43: #{tpu_custom_call.1} parent=35 // pred_region
          %s321 = sadd.s32 %s25, %s26
          %p322 = scmp.lt.s32.totalorder %s321, 1
          %s323 = scalar_select %p322, %s321, 1
          %s324 = scalar_lea.vmem %s2, %s323
          %s325 = sadd.s32 %s25, %s26
        $region44: #{tpu_custom_call.1} parent=35 // pred_fallthru
          _
        // Predicated region
        $region45: #{tpu_custom_call.1} parent=35 // pred_check
          %p326 = pneg %p129
        $region46: #{tpu_custom_call.1} parent=35 // pred_check_branch
          %328 = sbr.rel (%p326) target = $region48
        $region47: #{tpu_custom_call.1} parent=35 // pred_region
          %s329 = sadd.s32 %s25, %s26
          %p330 = scmp.lt.s32.totalorder %s329, 1
          %s331 = scalar_select %p330, %s329, 1
          %s332 = scalar_lea.vmem %s3, %s331
          %s333 = sadd.s32 %s25, %s26
        $region48: #{tpu_custom_call.1} parent=35 // pred_fallthru
          _
        // Predicated region
        $region49: #{tpu_custom_call.1} parent=35 // pred_check
          %p334 = pneg %p157
        $region50: #{tpu_custom_call.1} parent=35 // pred_check_branch
          %336 = sbr.rel (%p334) target = $region52
        $region51: #{tpu_custom_call.1} parent=35 // pred_region
          %s337 = sadd.s32 %s25, %s26
          %s338 = smul.u32 16, %s337
          %p339 = scmp.lt.s32.totalorder %s338, 31
          %s340 = scalar_select %p339, %s338, 31
          %s341 = smul.addr %s340, 8
          %s342 = scalar_lea.vmem %s4, %s341
          %s343 = sadd.s32 %s25, %s26
          %s344 = smul.u32 16, %s343
        $region52: #{tpu_custom_call.1} parent=35 // pred_fallthru
          _
      $region36: #{tpu_custom_call.1} parent=5 // pred_fallthru
        _
      %p345 = scmp.le.s32.totalorder 1, %s18
      %p346 = scmp.lt.s32.totalorder %s18, 3
      %p347 = pnand %p345, %p346
      %p348 = pneg %p347
      // Predicated region
      $region53: #{tpu_custom_call.1} parent=5 // pred_check
        _
      $region54: #{tpu_custom_call.1} parent=5 // pred_check_branch
        %350 = sbr.rel (%p347) target = $region56
      $region55: #{tpu_custom_call.1} parent=5 // pred_region
        %s351 = ssub.s32 %s18, 1
        %p352 = pneg %p51
        %p353 = pneg %p48
        %s354 = sadd.s32 %s27, %s28
        %s355 = smul.u32 16, %s354
        %p356 = scmp.lt.s32.totalorder %s355, 31
        %s357 = scalar_select %p356, %s355, 31
        %s358 = smul.addr %s357, 8
        %s359 = scalar_lea.vmem %s1, %s358
        %p360 = pneg %p79
        %p361 = pneg %p76
        %s362 = sadd.s32 %s27, %s28
        %p363 = scmp.lt.s32.totalorder %s362, 1
        %s364 = scalar_select %p363, %s362, 1
        %s365 = scalar_lea.vmem %s2, %s364
        %p366 = pneg %p107
        %p367 = pneg %p104
        %s368 = sadd.s32 %s27, %s28
        %p369 = scmp.lt.s32.totalorder %s368, 1
        %s370 = scalar_select %p369, %s368, 1
        %s371 = scalar_lea.vmem %s3, %s370
        %p372 = pneg %p135
        %p373 = pneg %p132
        %s374 = sadd.s32 %s27, %s28
        %s375 = smul.u32 16, %s374
        %p376 = scmp.lt.s32.totalorder %s375, 31
        %s377 = scalar_select %p376, %s375, 31
        %s378 = smul.addr %s377, 8
        %s379 = scalar_lea.vmem %s4, %s378
        %p380 = pneg %p163
        %p381 = pneg %p160
        %p382 = pneg %p184
        %p383 = pneg %p181
        %p384 = pneg %p205
        %p385 = pneg %p202
        %p386 = pneg %p226
        %p387 = pneg %p223
        %p388 = pneg %p247
        %p389 = pneg %p244
        %p390 = pneg %p273
        %p391 = pneg %p270
        %s392 = sand.u32 %s260, 1
        %s393 = scalar_lea.sflag [#allocation3], %s392
        %s394 = sand.u32 %s260, 1
        %s395 = smul.addr %s394, 8
        %s396 = scalar_lea.vmem [#allocation2], %s395
        %s397 = sadd.s32 %s27, %s28
        %s398 = smul.u32 16, %s397
        %p399 = scmp.lt.s32.totalorder %s398, 31
        %s400 = scalar_select %p399, %s398, 31
        %s401 = smul.addr %s400, 8
        %s402 = scalar_lea.vmem %s1, %s401
        %s403 = sadd.s32 %s27, %s28
        %s404 = smul.u32 16, %s403
        %s405 = sadd.s32 %s27, %s28
        %p406 = scmp.lt.s32.totalorder %s405, 1
        %s407 = scalar_select %p406, %s405, 1
        %s408 = scalar_lea.vmem %s2, %s407
        %s409 = sadd.s32 %s27, %s28
        %s410 = sadd.s32 %s27, %s28
        %p411 = scmp.lt.s32.totalorder %s410, 1
        %s412 = scalar_select %p411, %s410, 1
        %s413 = scalar_lea.vmem %s3, %s412
        %s414 = sadd.s32 %s27, %s28
        %s415 = sadd.s32 %s27, %s28
        %s416 = smul.u32 16, %s415
        %p417 = scmp.lt.s32.totalorder %s416, 31
        %s418 = scalar_select %p417, %s416, 31
        %s419 = smul.addr %s418, 8
        %s420 = scalar_lea.vmem %s4, %s419
        %s421 = sadd.s32 %s27, %s28
        %s422 = smul.u32 16, %s421
        %p424 = scmp.eq.s32.totalorder %s28, 0
        // Predicated region
        $region57: #{tpu_custom_call.1} parent=55 // pred_check
          %p425 = pneg %p424
        $region58: #{tpu_custom_call.1} parent=55 // pred_check_branch
          %427 = sbr.rel (%p425) target = $region60
        $region59: #{tpu_custom_call.1} parent=55 // pred_region
          %428 = vst [vmem:[%s396] sm:$0xff] 0.0
        $region60: #{tpu_custom_call.1} parent=55 // pred_fallthru
          _
        %v429 = vld [vmem:[%s402] sm:$0xff]
        %v430 = vld [vmem:[%s402 + $0x8] sm:$0xff]
        %v431 = vld [vmem:[%s402 + $0x10] sm:$0xff]
        %v432 = vld [vmem:[%s402 + $0x18] sm:$0xff]
        %v433 = vld [vmem:[%s402 + $0x20] sm:$0xff]
        %v434 = vld [vmem:[%s402 + $0x28] sm:$0xff]
        %v435 = vld [vmem:[%s402 + $0x30] sm:$0xff]
        %v436 = vld [vmem:[%s402 + $0x38] sm:$0xff]
        %v437 = vld [vmem:[%s402 + $0x40] sm:$0xff]
        %v438 = vld [vmem:[%s402 + $0x48] sm:$0xff]
        %v439 = vld [vmem:[%s402 + $0x50] sm:$0xff]
        %v440 = vld [vmem:[%s402 + $0x58] sm:$0xff]
        %v441 = vld [vmem:[%s402 + $0x60] sm:$0xff]
        %v442 = vld [vmem:[%s402 + $0x68] sm:$0xff]
        %v443 = vld [vmem:[%s402 + $0x70] sm:$0xff]
        %v444 = vld [vmem:[%s402 + $0x78] sm:$0xff]
        %v445 = vpack.c.bf16 %v430, %v429
        %v446 = vpack.c.bf16 %v432, %v431
        %v447 = vpack.c.bf16 %v434, %v433
        %v448 = vpack.c.bf16 %v436, %v435
        %v449 = vpack.c.bf16 %v438, %v437
        %v450 = vpack.c.bf16 %v440, %v439
        %v451 = vpack.c.bf16 %v442, %v441
        %v452 = vpack.c.bf16 %v444, %v443
        %v453 = vld [vmem:[%s5] sm:$0xf]
        %v454 = vld [vmem:[%s5 + $0x4] sm:$0xf]
        %v455 = vld [vmem:[%s6] sm:$0x1]
        %v457 = vlaneseq
        %v458 = vshrl.u32 %v457, 7
        %v459 = vsub.s32 0, %v458
        %v460 = vrot.slane %v455, %v459
        %v464 = vunpack.c.l.b16 %v453
        %v465 = vunpack.c.l.b16 %v454
        %v466 = vpack.c.b16 %v465, %v464
        %vm468 = vcmask 130048
        %v470 = vsel %vm468, %v445, 0
        %v473 = vsel %vm468, %v446, 0
        %v476 = vsel %vm468, %v447, 0
        %v479 = vsel %vm468, %v448, 0
        %v482 = vsel %vm468, %v449, 0
        %v485 = vsel %vm468, %v450, 0
        %v488 = vsel %vm468, %v451, 0
        %v491 = vsel %vm468, %v452, 0
        %493 = vmatprep.subr.bf16.mxu0 0
        %494 = vmatpush1.bf16.msra.mxu0 %v466
        %495 = vmatprep.subr.bf16.mxu0 0
        %496 = vmatpush1.bf16.msra.mxu0 0
        %497 = vmatprep.subr.bf16.mxu0 0
        %498 = vmatpush1.bf16.msra.mxu0 0
        %499 = vmatprep.subr.bf16.mxu0 0
        %500 = vmatpush1.bf16.msra.mxu0 0
        %501 = vmatprep.subr.bf16.mxu0 0
        %502 = vmatpush1.bf16.msra.mxu0 0
        %503 = vmatprep.subr.bf16.mxu0 0
        %504 = vmatpush1.bf16.msra.mxu0 0
        %505 = vmatprep.subr.bf16.mxu0 0
        %506 = vmatpush1.bf16.msra.mxu0 0
        %507 = vmatprep.subr.bf16.mxu0 0
        %508 = vmatpush1.bf16.msra.mxu0 0
        %509 = vmatprep.subr.bf16.mxu0 0
        %510 = vmatpush1.bf16.msra.mxu0 0
        %511 = vmatprep.subr.bf16.mxu0 0
        %512 = vmatpush1.bf16.msra.mxu0 0
        %513 = vmatprep.subr.bf16.mxu0 0
        %514 = vmatpush1.bf16.msra.mxu0 0
        %515 = vmatprep.subr.bf16.mxu0 0
        %516 = vmatpush1.bf16.msra.mxu0 0
        %517 = vmatprep.subr.bf16.mxu0 0
        %518 = vmatpush1.bf16.msra.mxu0 0
        %519 = vmatprep.subr.bf16.mxu0 0
        %520 = vmatpush1.bf16.msra.mxu0 0
        %521 = vmatprep.subr.bf16.mxu0 0
        %522 = vmatpush1.bf16.msra.mxu0 0
        %523 = vmatprep.subr.bf16.mxu0 0
        %524 = vmatpush1.bf16.msra.mxu0 0
        %525 = vmatprep.mubr.bf16.mxu0 0
        %526 = vmatmul.mubr.bf16.gmra.mrb[0].mxu0 %v470
        %v527 = vpop.f32.mrb[0].mxu0
        %v528 = vadd.f32 %v460, %v527
        %v529 = vpop.f32.mrb[0].mxu0
        %v530 = vpop.f32.mrb[0].mxu0
        %v531 = vadd.f32 %v460, %v530
        %v532 = vpop.f32.mrb[0].mxu0
        %533 = vmatprep.mubr.bf16.mxu0 0
        %534 = vmatmul.mubr.bf16.gmra.mrb[0].mxu0 %v473
        %v535 = vpop.f32.mrb[0].mxu0
        %v536 = vadd.f32 %v460, %v535
        %v537 = vpop.f32.mrb[0].mxu0
        %v538 = vpop.f32.mrb[0].mxu0
        %v539 = vadd.f32 %v460, %v538
        %v540 = vpop.f32.mrb[0].mxu0
        %541 = vmatprep.mubr.bf16.mxu0 0
        %542 = vmatmul.mubr.bf16.gmra.mrb[0].mxu0 %v476
        %v543 = vpop.f32.mrb[0].mxu0
        %v544 = vadd.f32 %v460, %v543
        %v545 = vpop.f32.mrb[0].mxu0
        %v546 = vpop.f32.mrb[0].mxu0
        %v547 = vadd.f32 %v460, %v546
        %v548 = vpop.f32.mrb[0].mxu0
        %549 = vmatprep.mubr.bf16.mxu0 0
        %550 = vmatmul.mubr.bf16.gmra.mrb[0].mxu0 %v479
        %v551 = vpop.f32.mrb[0].mxu0
        %v552 = vadd.f32 %v460, %v551
        %v553 = vpop.f32.mrb[0].mxu0
        %v554 = vpop.f32.mrb[0].mxu0
        %v555 = vadd.f32 %v460, %v554
        %v556 = vpop.f32.mrb[0].mxu0
        %557 = vmatprep.mubr.bf16.mxu0 0
        %558 = vmatmul.mubr.bf16.gmra.mrb[0].mxu0 %v482
        %v559 = vpop.f32.mrb[0].mxu0
        %v560 = vadd.f32 %v460, %v559
        %v561 = vpop.f32.mrb[0].mxu0
        %v562 = vpop.f32.mrb[0].mxu0
        %v563 = vadd.f32 %v460, %v562
        %v564 = vpop.f32.mrb[0].mxu0
        %565 = vmatprep.mubr.bf16.mxu0 0
        %566 = vmatmul.mubr.bf16.gmra.mrb[0].mxu0 %v485
        %v567 = vpop.f32.mrb[0].mxu0
        %v568 = vadd.f32 %v460, %v567
        %v569 = vpop.f32.mrb[0].mxu0
        %v570 = vpop.f32.mrb[0].mxu0
        %v571 = vadd.f32 %v460, %v570
        %v572 = vpop.f32.mrb[0].mxu0
        %573 = vmatprep.mubr.bf16.mxu0 0
        %574 = vmatmul.mubr.bf16.gmra.mrb[0].mxu0 %v488
        %v575 = vpop.f32.mrb[0].mxu0
        %v576 = vadd.f32 %v460, %v575
        %v577 = vpop.f32.mrb[0].mxu0
        %v578 = vpop.f32.mrb[0].mxu0
        %v579 = vadd.f32 %v460, %v578
        %v580 = vpop.f32.mrb[0].mxu0
        %581 = vmatprep.mubr.bf16.mxu0 0
        %582 = vmatmul.mubr.bf16.gmra.mrb[0].mxu0 %v491
        %v583 = vpop.f32.mrb[0].mxu0
        %v584 = vadd.f32 %v460, %v583
        %v585 = vpop.f32.mrb[0].mxu0
        %v586 = vpop.f32.mrb[0].mxu0
        %v587 = vadd.f32 %v460, %v586
        %v588 = vpop.f32.mrb[0].mxu0
        %589 = vdwg.mxu0
        %v590 = vmax.f32 %v528, 0.0
        %v591 = vmax.f32 %v531, 0.0
        %v592 = vmax.f32 %v536, 0.0
        %v593 = vmax.f32 %v539, 0.0
        %v594 = vmax.f32 %v544, 0.0
        %v595 = vmax.f32 %v547, 0.0
        %v596 = vmax.f32 %v552, 0.0
        %v597 = vmax.f32 %v555, 0.0
        %v598 = vmax.f32 %v560, 0.0
        %v599 = vmax.f32 %v563, 0.0
        %v600 = vmax.f32 %v568, 0.0
        %v601 = vmax.f32 %v571, 0.0
        %v602 = vmax.f32 %v576, 0.0
        %v603 = vmax.f32 %v579, 0.0
        %v604 = vmax.f32 %v584, 0.0
        %v605 = vmax.f32 %v587, 0.0
        %vm606 = vcmp.ne.f32.partialorder %v528, %v528
        %vm607 = vcmp.ne.f32.partialorder %v531, %v531
        %vm608 = vcmp.ne.f32.partialorder %v536, %v536
        %vm609 = vcmp.ne.f32.partialorder %v539, %v539
        %vm610 = vcmp.ne.f32.partialorder %v544, %v544
        %vm611 = vcmp.ne.f32.partialorder %v547, %v547
        %vm612 = vcmp.ne.f32.partialorder %v552, %v552
        %vm613 = vcmp.ne.f32.partialorder %v555, %v555
        %vm614 = vcmp.ne.f32.partialorder %v560, %v560
        %vm615 = vcmp.ne.f32.partialorder %v563, %v563
        %vm616 = vcmp.ne.f32.partialorder %v568, %v568
        %vm617 = vcmp.ne.f32.partialorder %v571, %v571
        %vm618 = vcmp.ne.f32.partialorder %v576, %v576
        %vm619 = vcmp.ne.f32.partialorder %v579, %v579
        %vm620 = vcmp.ne.f32.partialorder %v584, %v584
        %vm621 = vcmp.ne.f32.partialorder %v587, %v587
        %v622 = vadd.f32 %v528, 0.0
        %v623 = vadd.f32 %v531, 0.0
        %v624 = vadd.f32 %v536, 0.0
        %v625 = vadd.f32 %v539, 0.0
        %v626 = vadd.f32 %v544, 0.0
        %v627 = vadd.f32 %v547, 0.0
        %v628 = vadd.f32 %v552, 0.0
        %v629 = vadd.f32 %v555, 0.0
        %v630 = vadd.f32 %v560, 0.0
        %v631 = vadd.f32 %v563, 0.0
        %v632 = vadd.f32 %v568, 0.0
        %v633 = vadd.f32 %v571, 0.0
        %v634 = vadd.f32 %v576, 0.0
        %v635 = vadd.f32 %v579, 0.0
        %v636 = vadd.f32 %v584, 0.0
        %v637 = vadd.f32 %v587, 0.0
        %v638 = vand.u32 2147483647, %v528
        %v639 = vand.u32 2147483647, %v531
        %v640 = vand.u32 2147483647, %v536
        %v641 = vand.u32 2147483647, %v539
        %v642 = vand.u32 2147483647, %v544
        %v643 = vand.u32 2147483647, %v547
        %v644 = vand.u32 2147483647, %v552
        %v645 = vand.u32 2147483647, %v555
        %v646 = vand.u32 2147483647, %v560
        %v647 = vand.u32 2147483647, %v563
        %v648 = vand.u32 2147483647, %v568
        %v649 = vand.u32 2147483647, %v571
        %v650 = vand.u32 2147483647, %v576
        %v651 = vand.u32 2147483647, %v579
        %v652 = vand.u32 2147483647, %v584
        %v653 = vand.u32 2147483647, %v587
        %v654 = vsub.f32 0.0, %v638
        %v655 = vsub.f32 0.0, %v639
        %v656 = vsub.f32 0.0, %v640
        %v657 = vsub.f32 0.0, %v641
        %v658 = vsub.f32 0.0, %v642
        %v659 = vsub.f32 0.0, %v643
        %v660 = vsub.f32 0.0, %v644
        %v661 = vsub.f32 0.0, %v645
        %v662 = vsub.f32 0.0, %v646
        %v663 = vsub.f32 0.0, %v647
        %v664 = vsub.f32 0.0, %v648
        %v665 = vsub.f32 0.0, %v649
        %v666 = vsub.f32 0.0, %v650
        %v667 = vsub.f32 0.0, %v651
        %v668 = vsub.f32 0.0, %v652
        %v669 = vsub.f32 0.0, %v653
        %v670 = vmul.f32 %v654, 1.442695
        %v671 = vpow.pop %v670
        %v672 = vmul.f32 %v655, 1.442695
        %v673 = vpow.pop %v672
        %v674 = vmul.f32 %v656, 1.442695
        %v675 = vpow.pop %v674
        %v676 = vmul.f32 %v657, 1.442695
        %v677 = vpow.pop %v676
        %v678 = vmul.f32 %v658, 1.442695
        %v679 = vpow.pop %v678
        %v680 = vmul.f32 %v659, 1.442695
        %v681 = vpow.pop %v680
        %v682 = vmul.f32 %v660, 1.442695
        %v683 = vpow.pop %v682
        %v684 = vmul.f32 %v661, 1.442695
        %v685 = vpow.pop %v684
        %v686 = vmul.f32 %v662, 1.442695
        %v687 = vpow.pop %v686
        %v688 = vmul.f32 %v663, 1.442695
        %v689 = vpow.pop %v688
        %v690 = vmul.f32 %v664, 1.442695
        %v691 = vpow.pop %v690
        %v692 = vmul.f32 %v665, 1.442695
        %v693 = vpow.pop %v692
        %v694 = vmul.f32 %v666, 1.442695
        %v695 = vpow.pop %v694
        %v696 = vmul.f32 %v667, 1.442695
        %v697 = vpow.pop %v696
        %v698 = vmul.f32 %v668, 1.442695
        %v699 = vpow.pop %v698
        %v700 = vmul.f32 %v669, 1.442695
        %v701 = vpow.pop %v700
        %v702 = vadd.f32 %v671, 1.0
        %v703 = vlog2.pop %v702
        %v704 = vmul.f32 %v703, 0.6931472
        %v705 = vmul.f32 -0.5, %v671
        %v706 = vadd.f32 %v705, 1.0
        %v707 = vmul.f32 %v706, %v671
        %v708 = vand.u32 2147483647, %v671
        %vm709 = vcmp.lt.f32.partialorder %v708, 0.0004427343
        %v710 = vsel %vm709, %v707, %v704
        %v711 = vadd.f32 %v673, 1.0
        %v712 = vlog2.pop %v711
        %v713 = vmul.f32 %v712, 0.6931472
        %v714 = vmul.f32 -0.5, %v673
        %v715 = vadd.f32 %v714, 1.0
        %v716 = vmul.f32 %v715, %v673
        %v717 = vand.u32 2147483647, %v673
        %vm718 = vcmp.lt.f32.partialorder %v717, 0.0004427343
        %v719 = vsel %vm718, %v716, %v713
        %v720 = vadd.f32 %v675, 1.0
        %v721 = vlog2.pop %v720
        %v722 = vmul.f32 %v721, 0.6931472
        %v723 = vmul.f32 -0.5, %v675
        %v724 = vadd.f32 %v723, 1.0
        %v725 = vmul.f32 %v724, %v675
        %v726 = vand.u32 2147483647, %v675
        %vm727 = vcmp.lt.f32.partialorder %v726, 0.0004427343
        %v728 = vsel %vm727, %v725, %v722
        %v729 = vadd.f32 %v677, 1.0
        %v730 = vlog2.pop %v729
        %v731 = vmul.f32 %v730, 0.6931472
        %v732 = vmul.f32 -0.5, %v677
        %v733 = vadd.f32 %v732, 1.0
        %v734 = vmul.f32 %v733, %v677
        %v735 = vand.u32 2147483647, %v677
        %vm736 = vcmp.lt.f32.partialorder %v735, 0.0004427343
        %v737 = vsel %vm736, %v734, %v731
        %v738 = vadd.f32 %v679, 1.0
        %v739 = vlog2.pop %v738
        %v740 = vmul.f32 %v739, 0.6931472
        %v741 = vmul.f32 -0.5, %v679
        %v742 = vadd.f32 %v741, 1.0
        %v743 = vmul.f32 %v742, %v679
        %v744 = vand.u32 2147483647, %v679
        %vm745 = vcmp.lt.f32.partialorder %v744, 0.0004427343
        %v746 = vsel %vm745, %v743, %v740
        %v747 = vadd.f32 %v681, 1.0
        %v748 = vlog2.pop %v747
        %v749 = vmul.f32 %v748, 0.6931472
        %v750 = vmul.f32 -0.5, %v681
        %v751 = vadd.f32 %v750, 1.0
        %v752 = vmul.f32 %v751, %v681
        %v753 = vand.u32 2147483647, %v681
        %vm754 = vcmp.lt.f32.partialorder %v753, 0.0004427343
        %v755 = vsel %vm754, %v752, %v749
        %v756 = vadd.f32 %v683, 1.0
        %v757 = vlog2.pop %v756
        %v758 = vmul.f32 %v757, 0.6931472
        %v759 = vmul.f32 -0.5, %v683
        %v760 = vadd.f32 %v759, 1.0
        %v761 = vmul.f32 %v760, %v683
        %v762 = vand.u32 2147483647, %v683
        %vm763 = vcmp.lt.f32.partialorder %v762, 0.0004427343
        %v764 = vsel %vm763, %v761, %v758
        %v765 = vadd.f32 %v685, 1.0
        %v766 = vlog2.pop %v765
        %v767 = vmul.f32 %v766, 0.6931472
        %v768 = vmul.f32 -0.5, %v685
        %v769 = vadd.f32 %v768, 1.0
        %v770 = vmul.f32 %v769, %v685
        %v771 = vand.u32 2147483647, %v685
        %vm772 = vcmp.lt.f32.partialorder %v771, 0.0004427343
        %v773 = vsel %vm772, %v770, %v767
        %v774 = vadd.f32 %v687, 1.0
        %v775 = vlog2.pop %v774
        %v776 = vmul.f32 %v775, 0.6931472
        %v777 = vmul.f32 -0.5, %v687
        %v778 = vadd.f32 %v777, 1.0
        %v779 = vmul.f32 %v778, %v687
        %v780 = vand.u32 2147483647, %v687
        %vm781 = vcmp.lt.f32.partialorder %v780, 0.0004427343
        %v782 = vsel %vm781, %v779, %v776
        %v783 = vadd.f32 %v689, 1.0
        %v784 = vlog2.pop %v783
        %v785 = vmul.f32 %v784, 0.6931472
        %v786 = vmul.f32 -0.5, %v689
        %v787 = vadd.f32 %v786, 1.0
        %v788 = vmul.f32 %v787, %v689
        %v789 = vand.u32 2147483647, %v689
        %vm790 = vcmp.lt.f32.partialorder %v789, 0.0004427343
        %v791 = vsel %vm790, %v788, %v785
        %v792 = vadd.f32 %v691, 1.0
        %v793 = vlog2.pop %v792
        %v794 = vmul.f32 %v793, 0.6931472
        %v795 = vmul.f32 -0.5, %v691
        %v796 = vadd.f32 %v795, 1.0
        %v797 = vmul.f32 %v796, %v691
        %v798 = vand.u32 2147483647, %v691
        %vm799 = vcmp.lt.f32.partialorder %v798, 0.0004427343
        %v800 = vsel %vm799, %v797, %v794
        %v801 = vadd.f32 %v693, 1.0
        %v802 = vlog2.pop %v801
        %v803 = vmul.f32 %v802, 0.6931472
        %v804 = vmul.f32 -0.5, %v693
        %v805 = vadd.f32 %v804, 1.0
        %v806 = vmul.f32 %v805, %v693
        %v807 = vand.u32 2147483647, %v693
        %vm808 = vcmp.lt.f32.partialorder %v807, 0.0004427343
        %v809 = vsel %vm808, %v806, %v803
        %v810 = vadd.f32 %v695, 1.0
        %v811 = vlog2.pop %v810
        %v812 = vmul.f32 %v811, 0.6931472
        %v813 = vmul.f32 -0.5, %v695
        %v814 = vadd.f32 %v813, 1.0
        %v815 = vmul.f32 %v814, %v695
        %v816 = vand.u32 2147483647, %v695
        %vm817 = vcmp.lt.f32.partialorder %v816, 0.0004427343
        %v818 = vsel %vm817, %v815, %v812
        %v819 = vadd.f32 %v697, 1.0
        %v820 = vlog2.pop %v819
        %v821 = vmul.f32 %v820, 0.6931472
        %v822 = vmul.f32 -0.5, %v697
        %v823 = vadd.f32 %v822, 1.0
        %v824 = vmul.f32 %v823, %v697
        %v825 = vand.u32 2147483647, %v697
        %vm826 = vcmp.lt.f32.partialorder %v825, 0.0004427343
        %v827 = vsel %vm826, %v824, %v821
        %v828 = vadd.f32 %v699, 1.0
        %v829 = vlog2.pop %v828
        %v830 = vmul.f32 %v829, 0.6931472
        %v831 = vmul.f32 -0.5, %v699
        %v832 = vadd.f32 %v831, 1.0
        %v833 = vmul.f32 %v832, %v699
        %v834 = vand.u32 2147483647, %v699
        %vm835 = vcmp.lt.f32.partialorder %v834, 0.0004427343
        %v836 = vsel %vm835, %v833, %v830
        %v837 = vadd.f32 %v701, 1.0
        %v838 = vlog2.pop %v837
        %v839 = vmul.f32 %v838, 0.6931472
        %v840 = vmul.f32 -0.5, %v701
        %v841 = vadd.f32 %v840, 1.0
        %v842 = vmul.f32 %v841, %v701
        %v843 = vand.u32 2147483647, %v701
        %vm844 = vcmp.lt.f32.partialorder %v843, 0.0004427343
        %v845 = vsel %vm844, %v842, %v839
        %v846 = vadd.f32 %v590, %v710
        %v847 = vadd.f32 %v591, %v719
        %v848 = vadd.f32 %v592, %v728
        %v849 = vadd.f32 %v593, %v737
        %v850 = vadd.f32 %v594, %v746
        %v851 = vadd.f32 %v595, %v755
        %v852 = vadd.f32 %v596, %v764
        %v853 = vadd.f32 %v597, %v773
        %v854 = vadd.f32 %v598, %v782
        %v855 = vadd.f32 %v599, %v791
        %v856 = vadd.f32 %v600, %v800
        %v857 = vadd.f32 %v601, %v809
        %v858 = vadd.f32 %v602, %v818
        %v859 = vadd.f32 %v603, %v827
        %v860 = vadd.f32 %v604, %v836
        %v861 = vadd.f32 %v605, %v845
        %v862 = vsel %vm606, %v622, %v846
        %v863 = vsel %vm607, %v623, %v847
        %v864 = vsel %vm608, %v624, %v848
        %v865 = vsel %vm609, %v625, %v849
        %v866 = vsel %vm610, %v626, %v850
        %v867 = vsel %vm611, %v627, %v851
        %v868 = vsel %vm612, %v628, %v852
        %v869 = vsel %vm613, %v629, %v853
        %v870 = vsel %vm614, %v630, %v854
        %v871 = vsel %vm615, %v631, %v855
        %v872 = vsel %vm616, %v632, %v856
        %v873 = vsel %vm617, %v633, %v857
        %v874 = vsel %vm618, %v634, %v858
        %v875 = vsel %vm619, %v635, %v859
        %v876 = vsel %vm620, %v636, %v860
        %v877 = vsel %vm621, %v637, %v861
        %v878 = vsub.f32 %v862, 0.6931472
        %v879 = vsub.f32 %v863, 0.6931472
        %v880 = vsub.f32 %v864, 0.6931472
        %v881 = vsub.f32 %v865, 0.6931472
        %v882 = vsub.f32 %v866, 0.6931472
        %v883 = vsub.f32 %v867, 0.6931472
        %v884 = vsub.f32 %v868, 0.6931472
        %v885 = vsub.f32 %v869, 0.6931472
        %v886 = vsub.f32 %v870, 0.6931472
        %v887 = vsub.f32 %v871, 0.6931472
        %v888 = vsub.f32 %v872, 0.6931472
        %v889 = vsub.f32 %v873, 0.6931472
        %v890 = vsub.f32 %v874, 0.6931472
        %v891 = vsub.f32 %v875, 0.6931472
        %v892 = vsub.f32 %v876, 0.6931472
        %v893 = vsub.f32 %v877, 0.6931472
        %v894 = vpack.c.bf16 %v879, %v878
        %v895 = vpack.c.bf16 %v881, %v880
        %v896 = vpack.c.bf16 %v883, %v882
        %v897 = vpack.c.bf16 %v885, %v884
        %v898 = vpack.c.bf16 %v887, %v886
        %v899 = vpack.c.bf16 %v889, %v888
        %v900 = vpack.c.bf16 %v891, %v890
        %v901 = vpack.c.bf16 %v893, %v892
        %v902 = vld [vmem:[%s7] sm:$0xf]
        %v903 = vld [vmem:[%s7 + $0x4] sm:$0xf]
        %v904 = vld [vmem:[%s7 + $0x8] sm:$0xf]
        %v905 = vld [vmem:[%s7 + $0xc] sm:$0xf]
        %v906 = vld [vmem:[%s7 + $0x10] sm:$0xf]
        %v907 = vld [vmem:[%s7 + $0x14] sm:$0xf]
        %v908 = vld [vmem:[%s7 + $0x18] sm:$0xf]
        %v909 = vld [vmem:[%s7 + $0x1c] sm:$0xf]
        %v910 = vld [vmem:[%s7 + $0x20] sm:$0xf]
        %v911 = vld [vmem:[%s7 + $0x24] sm:$0xf]
        %v912 = vld [vmem:[%s7 + $0x28] sm:$0xf]
        %v913 = vld [vmem:[%s7 + $0x2c] sm:$0xf]
        %v914 = vld [vmem:[%s7 + $0x30] sm:$0xf]
        %v915 = vld [vmem:[%s7 + $0x34] sm:$0xf]
        %v916 = vld [vmem:[%s7 + $0x38] sm:$0xf]
        %v917 = vld [vmem:[%s7 + $0x3c] sm:$0xf]
        %v918 = vld [vmem:[%s8] sm:$0x1]
        %v920 = vlaneseq
        %v921 = vshrl.u32 %v920, 7
        %v922 = vsub.s32 0, %v921
        %v923 = vrot.slane %v918, %v922
        %v941 = vunpack.c.l.b16 %v902
        %v942 = vunpack.c.l.b16 %v903
        %v943 = vunpack.c.l.b16 %v904
        %v944 = vunpack.c.l.b16 %v905
        %v945 = vunpack.c.l.b16 %v906
        %v946 = vunpack.c.l.b16 %v907
        %v947 = vunpack.c.l.b16 %v908
        %v948 = vunpack.c.l.b16 %v909
        %v949 = vunpack.c.l.b16 %v910
        %v950 = vunpack.c.l.b16 %v911
        %v951 = vunpack.c.l.b16 %v912
        %v952 = vunpack.c.l.b16 %v913
        %v953 = vunpack.c.l.b16 %v914
        %v954 = vunpack.c.l.b16 %v915
        %v955 = vunpack.c.l.b16 %v916
        %v956 = vunpack.c.l.b16 %v917
        %v957 = vpack.c.b16 %v942, %v941
        %v958 = vpack.c.b16 %v944, %v943
        %v959 = vpack.c.b16 %v946, %v945
        %v960 = vpack.c.b16 %v948, %v947
        %v961 = vpack.c.b16 %v950, %v949
        %v962 = vpack.c.b16 %v952, %v951
        %v963 = vpack.c.b16 %v954, %v953
        %v964 = vpack.c.b16 %v956, %v955
        %973 = vmatprep.subr.bf16.mxu0 0
        %974 = vmatpush1.bf16.msra.mxu0 %v957
        %975 = vmatprep.subr.bf16.mxu0 0
        %976 = vmatpush1.bf16.msra.mxu0 %v958
        %977 = vmatprep.subr.bf16.mxu0 0
        %978 = vmatpush1.bf16.msra.mxu0 %v959
        %979 = vmatprep.subr.bf16.mxu0 0
        %980 = vmatpush1.bf16.msra.mxu0 %v960
        %981 = vmatprep.subr.bf16.mxu0 0
        %982 = vmatpush1.bf16.msra.mxu0 %v961
        %983 = vmatprep.subr.bf16.mxu0 0
        %984 = vmatpush1.bf16.msra.mxu0 %v962
        %985 = vmatprep.subr.bf16.mxu0 0
        %986 = vmatpush1.bf16.msra.mxu0 %v963
        %987 = vmatprep.subr.bf16.mxu0 0
        %988 = vmatpush1.bf16.msra.mxu0 %v964
        %989 = vmatprep.subr.bf16.mxu0 0
        %990 = vmatpush1.bf16.msra.mxu0 0
        %991 = vmatprep.subr.bf16.mxu0 0
        %992 = vmatpush1.bf16.msra.mxu0 0
        %993 = vmatprep.subr.bf16.mxu0 0
        %994 = vmatpush1.bf16.msra.mxu0 0
        %995 = vmatprep.subr.bf16.mxu0 0
        %996 = vmatpush1.bf16.msra.mxu0 0
        %997 = vmatprep.subr.bf16.mxu0 0
        %998 = vmatpush1.bf16.msra.mxu0 0
        %999 = vmatprep.subr.bf16.mxu0 0
        %1000 = vmatpush1.bf16.msra.mxu0 0
        %1001 = vmatprep.subr.bf16.mxu0 0
        %1002 = vmatpush1.bf16.msra.mxu0 0
        %1003 = vmatprep.subr.bf16.mxu0 0
        %1004 = vmatpush1.bf16.msra.mxu0 0
        %1005 = vmatprep.mubr.bf16.mxu0 0
        %1006 = vmatmul.mubr.bf16.gmra.mrb[0].mxu0 %v894
        %v1007 = vpop.f32.mrb[0].mxu0
        %v1008 = vadd.f32 %v923, %v1007
        %v1009 = vpop.f32.mrb[0].mxu0
        %v1010 = vpop.f32.mrb[0].mxu0
        %v1011 = vadd.f32 %v923, %v1010
        %v1012 = vpop.f32.mrb[0].mxu0
        %1013 = vmatprep.mubr.bf16.mxu0 0
        %1014 = vmatmul.mubr.bf16.gmra.mrb[0].mxu0 %v895
        %v1015 = vpop.f32.mrb[0].mxu0
        %v1016 = vadd.f32 %v923, %v1015
        %v1017 = vpop.f32.mrb[0].mxu0
        %v1018 = vpop.f32.mrb[0].mxu0
        %v1019 = vadd.f32 %v923, %v1018
        %v1020 = vpop.f32.mrb[0].mxu0
        %1021 = vmatprep.mubr.bf16.mxu0 0
        %1022 = vmatmul.mubr.bf16.gmra.mrb[0].mxu0 %v896
        %v1023 = vpop.f32.mrb[0].mxu0
        %v1024 = vadd.f32 %v923, %v1023
        %v1025 = vpop.f32.mrb[0].mxu0
        %v1026 = vpop.f32.mrb[0].mxu0
        %v1027 = vadd.f32 %v923, %v1026
        %v1028 = vpop.f32.mrb[0].mxu0
        %1029 = vmatprep.mubr.bf16.mxu0 0
        %1030 = vmatmul.mubr.bf16.gmra.mrb[0].mxu0 %v897
        %v1031 = vpop.f32.mrb[0].mxu0
        %v1032 = vadd.f32 %v923, %v1031
        %v1033 = vpop.f32.mrb[0].mxu0
        %v1034 = vpop.f32.mrb[0].mxu0
        %v1035 = vadd.f32 %v923, %v1034
        %v1036 = vpop.f32.mrb[0].mxu0
        %1037 = vmatprep.mubr.bf16.mxu0 0
        %1038 = vmatmul.mubr.bf16.gmra.mrb[0].mxu0 %v898
        %v1039 = vpop.f32.mrb[0].mxu0
        %v1040 = vadd.f32 %v923, %v1039
        %v1041 = vpop.f32.mrb[0].mxu0
        %v1042 = vpop.f32.mrb[0].mxu0
        %v1043 = vadd.f32 %v923, %v1042
        %v1044 = vpop.f32.mrb[0].mxu0
        %1045 = vmatprep.mubr.bf16.mxu0 0
        %1046 = vmatmul.mubr.bf16.gmra.mrb[0].mxu0 %v899
        %v1047 = vpop.f32.mrb[0].mxu0
        %v1048 = vadd.f32 %v923, %v1047
        %v1049 = vpop.f32.mrb[0].mxu0
        %v1050 = vpop.f32.mrb[0].mxu0
        %v1051 = vadd.f32 %v923, %v1050
        %v1052 = vpop.f32.mrb[0].mxu0
        %1053 = vmatprep.mubr.bf16.mxu0 0
        %1054 = vmatmul.mubr.bf16.gmra.mrb[0].mxu0 %v900
        %v1055 = vpop.f32.mrb[0].mxu0
        %v1056 = vadd.f32 %v923, %v1055
        %v1057 = vpop.f32.mrb[0].mxu0
        %v1058 = vpop.f32.mrb[0].mxu0
        %v1059 = vadd.f32 %v923, %v1058
        %v1060 = vpop.f32.mrb[0].mxu0
        %1061 = vmatprep.mubr.bf16.mxu0 0
        %1062 = vmatmul.mubr.bf16.gmra.mrb[0].mxu0 %v901
        %v1063 = vpop.f32.mrb[0].mxu0
        %v1064 = vadd.f32 %v923, %v1063
        %v1065 = vpop.f32.mrb[0].mxu0
        %v1066 = vpop.f32.mrb[0].mxu0
        %v1067 = vadd.f32 %v923, %v1066
        %v1068 = vpop.f32.mrb[0].mxu0
        %1069 = vdwg.mxu0
        %v1070 = vld [vmem:[%s420] sm:$0xff]
        %v1071 = vld [vmem:[%s420 + $0x8] sm:$0xff]
        %v1072 = vld [vmem:[%s420 + $0x10] sm:$0xff]
        %v1073 = vld [vmem:[%s420 + $0x18] sm:$0xff]
        %v1074 = vld [vmem:[%s420 + $0x20] sm:$0xff]
        %v1075 = vld [vmem:[%s420 + $0x28] sm:$0xff]
        %v1076 = vld [vmem:[%s420 + $0x30] sm:$0xff]
        %v1077 = vld [vmem:[%s420 + $0x38] sm:$0xff]
        %v1078 = vld [vmem:[%s420 + $0x40] sm:$0xff]
        %v1079 = vld [vmem:[%s420 + $0x48] sm:$0xff]
        %v1080 = vld [vmem:[%s420 + $0x50] sm:$0xff]
        %v1081 = vld [vmem:[%s420 + $0x58] sm:$0xff]
        %v1082 = vld [vmem:[%s420 + $0x60] sm:$0xff]
        %v1083 = vld [vmem:[%s420 + $0x68] sm:$0xff]
        %v1084 = vld [vmem:[%s420 + $0x70] sm:$0xff]
        %v1085 = vld [vmem:[%s420 + $0x78] sm:$0xff]
        %1087 = vset.pattern.permute.xlu0 0
        %1088 = vperm.xlu0 %1087, %v1070
        %v1089 = vpop.permute.xlu0 %1088
        %1092 = vset.pattern.permute.xlu0 0
        %1093 = vperm.xlu0 %1092, %v1071
        %v1094 = vpop.permute.xlu0 %1093
        %1097 = vset.pattern.permute.xlu0 0
        %1098 = vperm.xlu0 %1097, %v1072
        %v1099 = vpop.permute.xlu0 %1098
        %1102 = vset.pattern.permute.xlu0 0
        %1103 = vperm.xlu0 %1102, %v1073
        %v1104 = vpop.permute.xlu0 %1103
        %1107 = vset.pattern.permute.xlu0 0
        %1108 = vperm.xlu0 %1107, %v1074
        %v1109 = vpop.permute.xlu0 %1108
        %1112 = vset.pattern.permute.xlu0 0
        %1113 = vperm.xlu0 %1112, %v1075
        %v1114 = vpop.permute.xlu0 %1113
        %1117 = vset.pattern.permute.xlu0 0
        %1118 = vperm.xlu0 %1117, %v1076
        %v1119 = vpop.permute.xlu0 %1118
        %1122 = vset.pattern.permute.xlu0 0
        %1123 = vperm.xlu0 %1122, %v1077
        %v1124 = vpop.permute.xlu0 %1123
        %1127 = vset.pattern.permute.xlu0 0
        %1128 = vperm.xlu0 %1127, %v1078
        %v1129 = vpop.permute.xlu0 %1128
        %1132 = vset.pattern.permute.xlu0 0
        %1133 = vperm.xlu0 %1132, %v1079
        %v1134 = vpop.permute.xlu0 %1133
        %1137 = vset.pattern.permute.xlu0 0
        %1138 = vperm.xlu0 %1137, %v1080
        %v1139 = vpop.permute.xlu0 %1138
        %1142 = vset.pattern.permute.xlu0 0
        %1143 = vperm.xlu0 %1142, %v1081
        %v1144 = vpop.permute.xlu0 %1143
        %1147 = vset.pattern.permute.xlu0 0
        %1148 = vperm.xlu0 %1147, %v1082
        %v1149 = vpop.permute.xlu0 %1148
        %1152 = vset.pattern.permute.xlu0 0
        %1153 = vperm.xlu0 %1152, %v1083
        %v1154 = vpop.permute.xlu0 %1153
        %1157 = vset.pattern.permute.xlu0 0
        %1158 = vperm.xlu0 %1157, %v1084
        %v1159 = vpop.permute.xlu0 %1158
        %1162 = vset.pattern.permute.xlu0 0
        %1163 = vperm.xlu0 %1162, %v1085
        %v1164 = vpop.permute.xlu0 %1163
        %v1166 = vmul.f32 %v1008, %v1089
        %v1167 = vmul.f32 %v1011, %v1094
        %v1168 = vmul.f32 %v1016, %v1099
        %v1169 = vmul.f32 %v1019, %v1104
        %v1170 = vmul.f32 %v1024, %v1109
        %v1171 = vmul.f32 %v1027, %v1114
        %v1172 = vmul.f32 %v1032, %v1119
        %v1173 = vmul.f32 %v1035, %v1124
        %v1174 = vmul.f32 %v1040, %v1129
        %v1175 = vmul.f32 %v1043, %v1134
        %v1176 = vmul.f32 %v1048, %v1139
        %v1177 = vmul.f32 %v1051, %v1144
        %v1178 = vmul.f32 %v1056, %v1149
        %v1179 = vmul.f32 %v1059, %v1154
        %v1180 = vmul.f32 %v1064, %v1159
        %v1181 = vmul.f32 %v1067, %v1164
        %v1182 = vlaneseq
        %v1183 = vshrl.u32 %v1182, 7
        %v1184 = vld [vmem:[%s413] sm:$0x1]
        %v1185 = vlaneseq
        %v1186 = vshrl.u32 %v1185, 7
        %v1187 = vsub.s32 0, %v1186
        %v1188 = vrot.slane %v1184, %v1187
        %vm1189 = vcmp.eq.s32.totalorder %v1183, %v1188
        %v1190 = vsel %vm1189, 1, 0
        %v1191 = vcvt.s32.f32 %v1190
        %v1192 = vpack.c.bf16 %v1191, %v1191
        %v1193 = vld [vmem:[%s408] sm:$0x1]
        %v1194 = vlaneseq
        %v1195 = vshrl.u32 %v1194, 7
        %v1196 = vsub.s32 0, %v1195
        %v1197 = vrot.slane %v1193, %v1196
        %vm1198 = vcmp.eq.s32.totalorder %v1183, %v1197
        %v1199 = vsel %vm1198, 1, 0
        %v1200 = vcvt.s32.f32 %v1199
        %v1201 = vpack.c.bf16 %v1200, %v1200
        %v1202 = vld [vmem:[%s0] sm:$0xf]
        %1203 = vxpose.xlu0.c.b16.start [1/8] %v1192, 128
        %1204 = vxpose.xlu0.c.b16.cont [2/8] 0, 128
        %1205 = vxpose.xlu0.c.b16.cont [3/8] 0, 128
        %1206 = vxpose.xlu0.c.b16.cont [4/8] 0, 128
        %1207 = vxpose.xlu0.c.b16.cont [5/8] 0, 128
        %1208 = vxpose.xlu0.c.b16.cont [6/8] 0, 128
        %1209 = vxpose.xlu0.c.b16.cont [7/8] 0, 128
        %1210 = vxpose.xlu0.c.b16.end [8/8] 0, 128
        %v1211 = vpop.trf.xlu0
        %v1212 = vpop.trf.xlu0
        %v1213 = vpop.trf.xlu0
        %v1214 = vpop.trf.xlu0
        %v1215 = vpop.trf.xlu0
        %v1216 = vpop.trf.xlu0
        %v1217 = vpop.trf.xlu0
        %v1218 = vpop.trf.xlu0
        %vm1219 = vcmask 64512
        %v1221 = vsel %vm1219, %v1211, 0
        %v1224 = vsel %vm1219, %v1212, 0
        %v1227 = vsel %vm1219, %v1213, 0
        %v1230 = vsel %vm1219, %v1214, 0
        %v1233 = vsel %vm1219, %v1215, 0
        %v1236 = vsel %vm1219, %v1216, 0
        %v1239 = vsel %vm1219, %v1217, 0
        %v1242 = vsel %vm1219, %v1218, 0
        %vm1244 = vcmask 1043456
        %v1246 = vsel %vm1244, %v1202, 0
        %1248 = vmatprep.subr.bf16.mxu0 0
        %1249 = vmatpush1.bf16.msra.mxu0 %v1246
        %1250 = vmatprep.subr.bf16.mxu0 0
        %1251 = vmatpush1.bf16.msra.mxu0 0
        %1252 = vmatprep.subr.bf16.mxu0 0
        %1253 = vmatpush1.bf16.msra.mxu0 0
        %1254 = vmatprep.subr.bf16.mxu0 0
        %1255 = vmatpush1.bf16.msra.mxu0 0
        %1256 = vmatprep.subr.bf16.mxu0 0
        %1257 = vmatpush1.bf16.msra.mxu0 0
        %1258 = vmatprep.subr.bf16.mxu0 0
        %1259 = vmatpush1.bf16.msra.mxu0 0
        %1260 = vmatprep.subr.bf16.mxu0 0
        %1261 = vmatpush1.bf16.msra.mxu0 0
        %1262 = vmatprep.subr.bf16.mxu0 0
        %1263 = vmatpush1.bf16.msra.mxu0 0
        %1264 = vmatprep.subr.bf16.mxu0 0
        %1265 = vmatpush1.bf16.msra.mxu0 0
        %1266 = vmatprep.subr.bf16.mxu0 0
        %1267 = vmatpush1.bf16.msra.mxu0 0
        %1268 = vmatprep.subr.bf16.mxu0 0
        %1269 = vmatpush1.bf16.msra.mxu0 0
        %1270 = vmatprep.subr.bf16.mxu0 0
        %1271 = vmatpush1.bf16.msra.mxu0 0
        %1272 = vmatprep.subr.bf16.mxu0 0
        %1273 = vmatpush1.bf16.msra.mxu0 0
        %1274 = vmatprep.subr.bf16.mxu0 0
        %1275 = vmatpush1.bf16.msra.mxu0 0
        %1276 = vmatprep.subr.bf16.mxu0 0
        %1277 = vmatpush1.bf16.msra.mxu0 0
        %1278 = vmatprep.subr.bf16.mxu0 0
        %1279 = vmatpush1.bf16.msra.mxu0 0
        %1280 = vmatprep.mubr.bf16.mxu0 0
        %1281 = vmatmul.mubr.bf16.gmra.mrb[0].mxu0 %v1221
        %v1282 = vpop.f32.mrb[0].mxu0
        %v1283 = vadd.f32 0.0, %v1282
        %v1284 = vpop.f32.mrb[0].mxu0
        %v1285 = vpop.f32.mrb[0].mxu0
        %v1286 = vadd.f32 0.0, %v1285
        %v1287 = vpop.f32.mrb[0].mxu0
        %1288 = vmatprep.mubr.bf16.mxu0 0
        %1289 = vmatmul.mubr.bf16.gmra.mrb[0].mxu0 %v1224
        %v1290 = vpop.f32.mrb[0].mxu0
        %v1291 = vadd.f32 0.0, %v1290
        %v1292 = vpop.f32.mrb[0].mxu0
        %v1293 = vpop.f32.mrb[0].mxu0
        %v1294 = vadd.f32 0.0, %v1293
        %v1295 = vpop.f32.mrb[0].mxu0
        %1296 = vmatprep.mubr.bf16.mxu0 0
        %1297 = vmatmul.mubr.bf16.gmra.mrb[0].mxu0 %v1227
        %v1298 = vpop.f32.mrb[0].mxu0
        %v1299 = vadd.f32 0.0, %v1298
        %v1300 = vpop.f32.mrb[0].mxu0
        %v1301 = vpop.f32.mrb[0].mxu0
        %v1302 = vadd.f32 0.0, %v1301
        %v1303 = vpop.f32.mrb[0].mxu0
        %1304 = vmatprep.mubr.bf16.mxu0 0
        %1305 = vmatmul.mubr.bf16.gmra.mrb[0].mxu0 %v1230
        %v1306 = vpop.f32.mrb[0].mxu0
        %v1307 = vadd.f32 0.0, %v1306
        %v1308 = vpop.f32.mrb[0].mxu0
        %v1309 = vpop.f32.mrb[0].mxu0
        %v1310 = vadd.f32 0.0, %v1309
        %v1311 = vpop.f32.mrb[0].mxu0
        %1312 = vmatprep.mubr.bf16.mxu0 0
        %1313 = vmatmul.mubr.bf16.gmra.mrb[0].mxu0 %v1233
        %v1314 = vpop.f32.mrb[0].mxu0
        %v1315 = vadd.f32 0.0, %v1314
        %v1316 = vpop.f32.mrb[0].mxu0
        %v1317 = vpop.f32.mrb[0].mxu0
        %v1318 = vadd.f32 0.0, %v1317
        %v1319 = vpop.f32.mrb[0].mxu0
        %1320 = vmatprep.mubr.bf16.mxu0 0
        %1321 = vmatmul.mubr.bf16.gmra.mrb[0].mxu0 %v1236
        %v1322 = vpop.f32.mrb[0].mxu0
        %v1323 = vadd.f32 0.0, %v1322
        %v1324 = vpop.f32.mrb[0].mxu0
        %v1325 = vpop.f32.mrb[0].mxu0
        %v1326 = vadd.f32 0.0, %v1325
        %v1327 = vpop.f32.mrb[0].mxu0
        %1328 = vmatprep.mubr.bf16.mxu0 0
        %1329 = vmatmul.mubr.bf16.gmra.mrb[0].mxu0 %v1239
        %v1330 = vpop.f32.mrb[0].mxu0
        %v1331 = vadd.f32 0.0, %v1330
        %v1332 = vpop.f32.mrb[0].mxu0
        %v1333 = vpop.f32.mrb[0].mxu0
        %v1334 = vadd.f32 0.0, %v1333
        %v1335 = vpop.f32.mrb[0].mxu0
        %1336 = vmatprep.mubr.bf16.mxu0 0
        %1337 = vmatmul.mubr.bf16.gmra.mrb[0].mxu0 %v1242
        %v1338 = vpop.f32.mrb[0].mxu0
        %v1339 = vadd.f32 0.0, %v1338
        %v1340 = vpop.f32.mrb[0].mxu0
        %v1341 = vpop.f32.mrb[0].mxu0
        %v1342 = vadd.f32 0.0, %v1341
        %v1343 = vpop.f32.mrb[0].mxu0
        %1344 = vdwg.mxu0
        %v1345 = vmul.f32 %v1283, %v1166
        %v1346 = vmul.f32 %v1286, %v1167
        %v1347 = vmul.f32 %v1291, %v1168
        %v1348 = vmul.f32 %v1294, %v1169
        %v1349 = vmul.f32 %v1299, %v1170
        %v1350 = vmul.f32 %v1302, %v1171
        %v1351 = vmul.f32 %v1307, %v1172
        %v1352 = vmul.f32 %v1310, %v1173
        %v1353 = vmul.f32 %v1315, %v1174
        %v1354 = vmul.f32 %v1318, %v1175
        %v1355 = vmul.f32 %v1323, %v1176
        %v1356 = vmul.f32 %v1326, %v1177
        %v1357 = vmul.f32 %v1331, %v1178
        %v1358 = vmul.f32 %v1334, %v1179
        %v1359 = vmul.f32 %v1339, %v1180
        %v1360 = vmul.f32 %v1342, %v1181
        %v1361 = vpack.c.bf16 %v1346, %v1345
        %v1362 = vpack.c.bf16 %v1348, %v1347
        %v1363 = vpack.c.bf16 %v1350, %v1349
        %v1364 = vpack.c.bf16 %v1352, %v1351
        %v1365 = vpack.c.bf16 %v1354, %v1353
        %v1366 = vpack.c.bf16 %v1356, %v1355
        %v1367 = vpack.c.bf16 %v1358, %v1357
        %v1368 = vpack.c.bf16 %v1360, %v1359
        %v1369 = vld [vmem:[%s396] sm:$0xff]
        %1370 = vmatprep.subr.bf16.mxu0 0
        %1371 = vmatpush1.bf16.msra.mxu0 %v1361
        %1372 = vmatprep.subr.bf16.mxu0 0
        %1373 = vmatpush1.bf16.msra.mxu0 %v1362
        %1374 = vmatprep.subr.bf16.mxu0 0
        %1375 = vmatpush1.bf16.msra.mxu0 %v1363
        %1376 = vmatprep.subr.bf16.mxu0 0
        %1377 = vmatpush1.bf16.msra.mxu0 %v1364
        %1378 = vmatprep.subr.bf16.mxu0 0
        %1379 = vmatpush1.bf16.msra.mxu0 %v1365
        %1380 = vmatprep.subr.bf16.mxu0 0
        %1381 = vmatpush1.bf16.msra.mxu0 %v1366
        %1382 = vmatprep.subr.bf16.mxu0 0
        %1383 = vmatpush1.bf16.msra.mxu0 %v1367
        %1384 = vmatprep.subr.bf16.mxu0 0
        %1385 = vmatpush1.bf16.msra.mxu0 %v1368
        %1386 = vmatprep.subr.bf16.mxu0 0
        %1387 = vmatpush1.bf16.msra.mxu0 0
        %1388 = vmatprep.subr.bf16.mxu0 0
        %1389 = vmatpush1.bf16.msra.mxu0 0
        %1390 = vmatprep.subr.bf16.mxu0 0
        %1391 = vmatpush1.bf16.msra.mxu0 0
        %1392 = vmatprep.subr.bf16.mxu0 0
        %1393 = vmatpush1.bf16.msra.mxu0 0
        %1394 = vmatprep.subr.bf16.mxu0 0
        %1395 = vmatpush1.bf16.msra.mxu0 0
        %1396 = vmatprep.subr.bf16.mxu0 0
        %1397 = vmatpush1.bf16.msra.mxu0 0
        %1398 = vmatprep.subr.bf16.mxu0 0
        %1399 = vmatpush1.bf16.msra.mxu0 0
        %1400 = vmatprep.subr.bf16.mxu0 0
        %1401 = vmatpush1.bf16.msra.mxu0 0
        %1402 = vmatprep.mubr.bf16.mxu0 0
        %1403 = vmatmul.mubr.bf16.gmra.mrb[0].mxu0 %v1201
        %v1404 = vpop.f32.mrb[0].mxu0
        %v1405 = vadd.f32 0.0, %v1404
        %v1406 = vpop.f32.mrb[0].mxu0
        %v1407 = vpop.f32.mrb[0].mxu0
        %v1408 = vpop.f32.mrb[0].mxu0
        %1409 = vdwg.mxu0
        %v1410 = vadd.f32 %v1369, %v1405
        %1411 = vst [vmem:[%s396] sm:$0xff] %v1410
        %s1412 = sand.u32 %s260, 1
        %s1413 = scalar_lea.sflag [#allocation3], %s1412
        %s1414 = sand.u32 %s260, 1
        %s1415 = smul.addr %s1414, 8
        %s1416 = scalar_lea.vmem [#allocation2], %s1415
        // Predicated region
        $region61: #{tpu_custom_call.1} parent=55 // pred_check
          %p1417 = pneg %p270
        $region62: #{tpu_custom_call.1} parent=55 // pred_check_branch
          %1419 = sbr.rel (%p1417) target = $region64
        $region63: #{tpu_custom_call.1} parent=55 // pred_region
          %s1421 = ssub.s32 128, 128
          %1422 = vsyncadd %s1413, %s1421
          %s1423 = smul.addr %s27, 128
          %s1424 = scalar_lea.hbm %s9, %s1423
          %s1426 = sshll.u32 %s1416, 4
          %s1427 = int_to_ptr.vmem [resolvable:$true] %s1426
          %1429 = dma.vmem_to_hbm [thread:$0]  %s1427, 128, %s1424, %s1413
        $region64: #{tpu_custom_call.1} parent=55 // pred_fallthru
          _
      $region56: #{tpu_custom_call.1} parent=5 // pred_fallthru
        _
      %p1430 = scmp.le.s32.totalorder 2, %s18
      // Predicated region
      $region65: #{tpu_custom_call.1} parent=5 // pred_check
        %p1431 = pneg %p1430
      $region66: #{tpu_custom_call.1} parent=5 // pred_check_branch
        %1433 = sbr.rel (%p1431) target = $region68
      $region67: #{tpu_custom_call.1} parent=5 // pred_region
        %s1434 = ssub.s32 %s18, 2
        // Predicated region
        $region69: #{tpu_custom_call.1} parent=67 // pred_check
          %p1435 = pneg %p276
        $region70: #{tpu_custom_call.1} parent=67 // pred_check_branch
          %1437 = sbr.rel (%p1435) target = $region72
        $region71: #{tpu_custom_call.1} parent=67 // pred_region
          %s1438 = sand.u32 %s261, 1
          %s1439 = scalar_lea.sflag [#allocation3], %s1438
          %s1440 = sand.u32 %s261, 1
          %s1441 = smul.addr %s1440, 8
          %s1442 = scalar_lea.vmem [#allocation2], %s1441
          %1443 = dma.done %s1439, 128
        $region72: #{tpu_custom_call.1} parent=67 // pred_fallthru
          _
      $region68: #{tpu_custom_call.1} parent=5 // pred_fallthru
        _
    $region6: #{tpu_custom_call.1} parent=1 // loop_footer
      %s22 = sadd.s32 1, %s18
    $region7: #{tpu_custom_call.1} parent=1 // loop_footer_branch
      %17 = sbr.rel target = $region3
    $region8: #{tpu_custom_call.1} parent=1 // loop_exit
      _
    %1444 = vsyncpa [#allocation3], 1
    %s1445 = scalar_lea.sflag [#allocation3], 1
    %1446 = vsyncpa %s1445, 1

</llo_original>
